<compile_context>
chip_gen: v7x
topology: tpu7x:2x2x1
jax: 0.10.0
libtpu: 0.0.40
codegen_flags: <defaults>
</compile_context>

<pallas_src>
import jax
import jax.numpy as jnp
from jax import lax
from jax.experimental import pallas as pl
from jax.experimental.pallas import tpu as pltpu


# Matmul operand dtype for the dense 3^3 convs (f32 accumulation always).
# Set to jnp.float32 for exact fp32 parity with the PyTorch reference.
_MATMUL_DTYPE = jnp.bfloat16

_GRID_SEM = pltpu.CompilerParams(
    dimension_semantics=("parallel", "parallel", "arbitrary"))


def _silu(x):
    return x * jax.nn.sigmoid(x)


# ----------------------------- Pallas kernels ------------------------------

def make_dw_kernel(lane_stride, out_lanes):
    """Depthwise 7x7x7 conv; kd handled by the grid, 49 (kh,kw) taps unrolled."""
    W1, L = lane_stride, out_lanes

    def kernel(x_ref, w_ref, off_ref, o_ref, acc_ref):
        kd = pl.program_id(2)

        @pl.when(kd == 0)
        def _():
            acc_ref[...] = jnp.zeros_like(acc_ref)

        x = x_ref[0]                       # (C, F1e) one padded depth slice
        acc = acc_ref[...]
        for kh in range(7):                # unrolled: static lane shifts, VPU MAC
            for kw in range(7):
                s = kh * W1 + kw
                acc = acc + x[:, s:s + L] * w_ref[kh * 7 + kw]
        acc_ref[...] = acc

        @pl.when(kd == pl.num_programs(2) - 1)
        def _():
            # fused epilogue: conv bias + per-(batch, channel) embedding offset
            o_ref[0] = acc_ref[...] + off_ref[...]

    return kernel


def make_conv3_kernel(lane_stride, out_lanes, mm_dtype, *, apply_silu, res_mode):
    """Dense 3x3x3 conv: one (Cout, 9*Cin) @ (9*Cin, L) MXU matmul per kd step."""
    W2, L = lane_stride, out_lanes

    def kernel(*refs):
        if res_mode == "proj":
            x_ref, w_ref, bias_ref, xr_ref, rw_ref, o_ref, acc_ref = refs
        elif res_mode == "identity":
            x_ref, w_ref, bias_ref, xr_ref, o_ref, acc_ref = refs
        else:
            x_ref, w_ref, bias_ref, o_ref, acc_ref = refs

        kd = pl.program_id(2)

        @pl.when(kd == 0)
        def _():
            acc_ref[...] = jnp.zeros_like(acc_ref)

        x = x_ref[0]                       # (Cin, F2e) one padded depth slice
        taps = jnp.concatenate(
            [x[:, kh * W2 + kw: kh * W2 + kw + L]
             for kh in range(3) for kw in range(3)],
            axis=0)                        # (9*Cin, L)
        acc_ref[...] += jnp.dot(w_ref[...], taps.astype(mm_dtype),
                                preferred_element_type=jnp.float32)

        @pl.when(kd == pl.num_programs(2) - 1)
        def _():
            out = acc_ref[...] + bias_ref[...]
            if apply_silu:
                out = out * jax.nn.sigmoid(out)
            if res_mode == "identity":
                out = out + xr_ref[0]
            elif res_mode == "proj":
                out = out + jnp.dot(rw_ref[...], xr_ref[0].astype(mm_dtype),
                                    preferred_element_type=jnp.float32)
            o_ref[0] = out

    return kernel


# ----------------------------- pallas_call wrappers ------------------------

def _dw_conv(x1f, w, off, D, H, W):
    # x1f: (B, D+6, C, F1e) padded input; w: (7, 49, C, 1); off: (B, C, 1)
    B, D1, C, F1e = x1f.shape
    W1 = W + 6
    L = H * W1
    return pl.pallas_call(
        make_dw_kernel(W1, L),
        out_shape=jax.ShapeDtypeStruct((B, D, C, L), jnp.float32),
        grid=(B, D, 7),
        in_specs=[
            pl.BlockSpec((None, 1, C, F1e), lambda b, d, kd: (b, d + kd, 0, 0)),
            pl.BlockSpec((None, 49, C, 1), lambda b, d, kd: (kd, 0, 0, 0)),
            pl.BlockSpec((None, C, 1), lambda b, d, kd: (b, 0, 0)),
        ],
        out_specs=pl.BlockSpec((None, 1, C, L), lambda b, d, kd: (b, d, 0, 0)),
        scratch_shapes=[pltpu.VMEM((C, L), jnp.float32)],
        compiler_params=_GRID_SEM,
    )(x1f, w, off)


def _conv3(xpf, w, bias, D, H, W, *, apply_silu, xr=None, rw=None):
    # xpf: (B, D+2, Cin, F2e); w: (3, Cout, 9*Cin); bias: (Cout, 1)
    # xr (optional): (B, D, Cres, L) residual operand in output lane layout
    # rw (optional): (Cout, Cres) 1x1x1 residual projection weight
    B, D2, Cin, F2e = xpf.shape
    Cout, KC = w.shape[1], w.shape[2]
    W2 = W + 2
    L = H * W2
    res_mode = None if xr is None else ("identity" if rw is None else "proj")

    in_specs = [
        pl.BlockSpec((None, 1, Cin, F2e), lambda b, d, kd: (b, d + kd, 0, 0)),
        pl.BlockSpec((None, Cout, KC), lambda b, d, kd: (kd, 0, 0)),
        pl.BlockSpec((Cout, 1), lambda b, d, kd: (0, 0)),
    ]
    args = [xpf, w, bias]
    if xr is not None:
        Cres = xr.shape[2]
        in_specs.append(
            pl.BlockSpec((None, 1, Cres, L), lambda b, d, kd: (b, d, 0, 0)))
        args.append(xr)
        if rw is not None:
            in_specs.append(pl.BlockSpec((Cout, Cres), lambda b, d, kd: (0, 0)))
            args.append(rw)

    return pl.pallas_call(
        make_conv3_kernel(W2, L, _MATMUL_DTYPE,
                          apply_silu=apply_silu, res_mode=res_mode),
        out_shape=jax.ShapeDtypeStruct((B, D, Cout, L), jnp.float32),
        grid=(B, D, 3),
        in_specs=in_specs,
        out_specs=pl.BlockSpec((None, 1, Cout, L), lambda b, d, kd: (b, d, 0, 0)),
        scratch_shapes=[pltpu.VMEM((Cout, L), jnp.float32)],
        compiler_params=_GRID_SEM,
    )(*args)


# ------------------------------ XLA glue -----------------------------------

def _to_flat_padded(h, pad):
    # h: (B, D, C, H, W) -> zero-pad D/H/W by `pad`, flatten (H, W) onto lanes,
    # and right-pad the lane axis by 2*pad so every in-kernel tap slice of
    # length H*(W+2*pad) stays in bounds.
    B, D, C, H, W = h.shape
    hp = jnp.pad(h, ((0, 0), (pad, pad), (0, 0), (pad, pad), (pad, pad)))
    hp = hp.reshape(B, D + 2 * pad, C, (H + 2 * pad) * (W + 2 * pad))
    return jnp.pad(hp, ((0, 0), (0, 0), (0, 0), (0, 2 * pad)))


def _extract(o, H, W, lane_stride):
    # (B, D, C, H*lane_stride) -> (B, D, C, H, W): drop the pad/filler columns.
    B, D, C, _ = o.shape
    return o.reshape(B, D, C, H, lane_stride)[..., :W]


def _group_norm(h, gamma, beta, eps=1e-5):
    # GroupNorm(num_groups=1) on (B, D, C, H, W): per-sample stats over
    # (D, C, H, W), single pass (E[x^2] - mu^2), fused by XLA into the
    # surrounding pad/reshape relayout.
    mu = jnp.mean(h, axis=(1, 2, 3, 4), keepdims=True)
    var = jnp.mean(jnp.square(h), axis=(1, 2, 3, 4), keepdims=True) - jnp.square(mu)
    inv = lax.rsqrt(jnp.maximum(var, 0.0) + eps)
    g = gamma.reshape(1, 1, -1, 1, 1)
    b = beta.reshape(1, 1, -1, 1, 1)
    return (h - mu) * inv * g + b


def convnext_block_forward(x, time_emb, input_emb, output_emb, params):
    """ConvNextBlock.forward (fn of the Residual).  x: (B, dim, D, H, W)."""
    B, C, D, H, W = x.shape
    x = x.astype(jnp.float32)
    xt = jnp.transpose(x, (0, 2, 1, 3, 4))                    # (B, D, C, H, W)

    # t + i + o conditioning: Linear(SiLU(emb)) — tiny matmuls, plain JAX.
    def branch(e, w, b):
        return _silu(e.astype(jnp.float32)) @ w + b
    off = (branch(time_emb, params["t_w"], params["t_b"])
           + branch(input_emb, params["i_w"], params["i_b"])
           + branch(output_emb, params["o_w"], params["o_b"]))  # (B, C)
    off_total = off[:, :, None] + params["dw_b"][None]          # (B, C, 1)

    # h = ds_conv(x) + bias + (t + i + o)   — one fused Pallas kernel.
    x1 = _to_flat_padded(xt, 3)                                 # (B, D+6, C, F1e)
    hflat = _dw_conv(x1, params["dw_w"], off_total, D, H, W)
    h = _extract(hflat, H, W, W + 6)                            # (B, D, C, H, W)

    # GroupNorm1 (glue) -> conv1 + bias + SiLU (fused Pallas kernel).
    y1 = _group_norm(h, params["gn1_g"], params["gn1_b"])
    y1f = _to_flat_padded(y1, 1)
    a1f = _conv3(y1f, params["conv1_w"].astype(_MATMUL_DTYPE),
                 params["conv1_b"], D, H, W, apply_silu=True)
    a1 = _extract(a1f, H, W, W + 2)                             # (B, D, hidden, H, W)

    # GroupNorm2 (glue) -> conv2 + bias + residual skip (fused Pallas kernel).
    y2 = _group_norm(a1, params["gn2_g"], params["gn2_b"])
    y2f = _to_flat_padded(y2, 1)
    # residual operand in conv2's output lane layout (stride W+2, zero filler)
    xr = jnp.pad(xt, ((0, 0), (0, 0), (0, 0), (0, 0), (0, 2)))
    xr = xr.reshape(B, D, C, H * (W + 2))
    if "res_w" in params:
        bias2 = params["conv2_b"] + params["res_b"]
        out_f = _conv3(y2f, params["conv2_w"].astype(_MATMUL_DTYPE), bias2,
                       D, H, W, apply_silu=False, xr=xr,
                       rw=params["res_w"].astype(_MATMUL_DTYPE))
    else:
        out_f = _conv3(y2f, params["conv2_w"].astype(_MATMUL_DTYPE),
                       params["conv2_b"], D, H, W, apply_silu=False, xr=xr)
    out = _extract(out_f, H, W, W + 2)                          # (B, D, dim_out, H, W)
    return jnp.transpose(out, (0, 2, 1, 3, 4))                  # (B, dim_out, D, H, W)


def init_params(key, dim, dim_out, emb_dim, mult=2):
    # Deterministic synthetic parameters; layouts (k = kd,kh,kw row-major):
    #   dw_w[kd, kh*7+kw, c, 0]                 == torch ds_conv.weight[c, 0, kd, kh, kw]
    #   convN_w[kd, co, (kh*3+kw)*Cin + ci]     == torch convN.weight[co, ci, kd, kh, kw]
    hidden = dim_out * mult
    ks = jax.random.split(key, 16)

    def nrm(k, shape, scale=0.05):
        return (scale * jax.random.normal(k, shape)).astype(jnp.float32)

    p = {
        "dw_w": nrm(ks[0], (7, 49, dim, 1)),
        "dw_b": nrm(ks[1], (dim, 1)),
        "t_w": nrm(ks[2], (emb_dim, dim)), "t_b": nrm(ks[3], (1, dim)),
        "i_w": nrm(ks[4], (emb_dim, dim)), "i_b": nrm(ks[5], (1, dim)),
        "o_w": nrm(ks[6], (emb_dim, dim)), "o_b": nrm(ks[7], (1, dim)),
        "gn1_g": jnp.ones((dim,), jnp.float32),
        "gn1_b": jnp.zeros((dim,), jnp.float32),
        "conv1_w": nrm(ks[8], (3, hidden, 9 * dim)),
        "conv1_b": nrm(ks[9], (hidden, 1)),
        "gn2_g": jnp.ones((hidden,), jnp.float32),
        "gn2_b": jnp.zeros((hidden,), jnp.float32),
        "conv2_w": nrm(ks[10], (3, dim_out, 9 * hidden)),
        "conv2_b": nrm(ks[11], (dim_out, 1)),
    }
    if dim != dim_out:
        p["res_w"] = nrm(ks[12], (dim_out, dim))
        p["res_b"] = nrm(ks[13], (dim_out, 1))
    return p


if __name__ == "__main__":
    # dim == dim_out: identity skip -> literally Residual(fn): fn(x, ...) + x.
    dim, dim_out, emb_dim, mult = 16, 16, 32, 2
    B, D, H, W = 2, 8, 8, 8

    key = jax.random.PRNGKey(0)
    k_x, k_t, k_i, k_o, k_p = jax.random.split(key, 5)
    x = jax.random.normal(k_x, (B, dim, D, H, W), jnp.float32)
    t_emb = jax.random.normal(k_t, (B, emb_dim), jnp.float32)
    i_emb = jax.random.normal(k_i, (B, emb_dim), jnp.float32)
    o_emb = jax.random.normal(k_o, (B, emb_dim), jnp.float32)
    params = init_params(k_p, dim, dim_out, emb_dim, mult)

    fwd = jax.jit(convnext_block_forward)
    out = fwd(x, t_emb, i_emb, o_emb, params)
    jax.block_until_ready(out)

    assert out.shape == (B, dim_out, D, H, W), out.shape
    assert out.dtype == jnp.float32
    assert bool(jnp.all(jnp.isfinite(out)))
    print("KERNEL_OK")
</pallas_src>

<mosaic_0001>
module attributes {stable_mosaic.version = 11 : i64} {
  func.func @kernel(%arg0: i32, %arg1: i32, %arg2: i32, %arg3: memref<1x1x16x202xf32, #tpu.memory_space<vmem>>, %arg4: memref<1x49x16x1xf32, #tpu.memory_space<vmem>>, %arg5: memref<1x16x1xf32, #tpu.memory_space<vmem>>, %arg6: memref<1x1x16x112xf32, #tpu.memory_space<vmem>>, %arg7: memref<16x112xf32, #tpu.memory_space<vmem>>) attributes {dimension_semantics = [#tpu.dimension_semantics<parallel>, #tpu.dimension_semantics<parallel>, #tpu.dimension_semantics<arbitrary>], iteration_bounds = array<i64: 2, 8, 7>, scalar_prefetch = 0 : i64, scratch_operands = 1 : i64, tpu.core_type = #tpu.core_type<tc>, window_params = [{transform_indices = @transform_0, window_bounds = array<i64: 1, 1, 16, 202>}, {transform_indices = @transform_1, window_bounds = array<i64: 1, 49, 16, 1>}, {transform_indices = @transform_2, window_bounds = array<i64: 1, 16, 1>}, {transform_indices = @transform_3, window_bounds = array<i64: 1, 1, 16, 112>}]} {
    %c0_i32 = arith.constant 0 : i32
    %0 = arith.cmpi eq, %arg2, %c0_i32 : i32
    %1 = arith.extui %0 : i1 to i32
    %c0_i32_0 = arith.constant 0 : i32
    %2 = arith.cmpi ne, %1, %c0_i32_0 : i32
    scf.if %2 {
      %cst = arith.constant 0.000000e+00 : f32
      %304 = vector.broadcast %cst : f32 to vector<16x112xf32>
      %c0_157 = arith.constant 0 : index
      %c0_158 = arith.constant 0 : index
      %305 = vector.load %arg7[%c0_157, %c0_158] : memref<16x112xf32, #tpu.memory_space<vmem>>, vector<16x112xf32>
      tpu.vector_store %arg7[%c0_157, %c0_158], %304 {strides = array<i32>} : memref<16x112xf32, #tpu.memory_space<vmem>>, vector<16x112xf32>,
    } else {
    }
    %c0 = arith.constant 0 : index
    %c0_1 = arith.constant 0 : index
    %c0_2 = arith.constant 0 : index
    %c0_3 = arith.constant 0 : index
    %3 = vector.load %arg3[%c0, %c0_1, %c0_2, %c0_3] : memref<1x1x16x202xf32, #tpu.memory_space<vmem>>, vector<1x1x16x202xf32>
    %4 = vector.shape_cast %3 : vector<1x1x16x202xf32> to vector<16x202xf32>
    %c0_4 = arith.constant 0 : index
    %c0_5 = arith.constant 0 : index
    %5 = vector.load %arg7[%c0_4, %c0_5] : memref<16x112xf32, #tpu.memory_space<vmem>>, vector<16x112xf32>
    %6 = vector.extract_strided_slice %4 {offsets = [0, 0], sizes = [16, 112], strides = [1, 1]} : vector<16x202xf32> to vector<16x112xf32>
    %c0_6 = arith.constant 0 : index
    %c0_7 = arith.constant 0 : index
    %c0_8 = arith.constant 0 : index
    %c0_9 = arith.constant 0 : index
    %7 = vector.load %arg4[%c0_6, %c0_7, %c0_8, %c0_9] : memref<1x49x16x1xf32, #tpu.memory_space<vmem>>, vector<1x1x16x1xf32>
    %8 = vector.shape_cast %7 : vector<1x1x16x1xf32> to vector<16x1xf32>
    %9 = vector.broadcast %8 : vector<16x1xf32> to vector<16x112xf32>
    %10 = arith.mulf %6, %9 : vector<16x112xf32>
    %11 = arith.addf %5, %10 : vector<16x112xf32>
    %12 = vector.extract_strided_slice %4 {offsets = [0, 1], sizes = [16, 112], strides = [1, 1]} : vector<16x202xf32> to vector<16x112xf32>
    %c0_10 = arith.constant 0 : index
    %c1 = arith.constant 1 : index
    %c0_11 = arith.constant 0 : index
    %c0_12 = arith.constant 0 : index
    %13 = vector.load %arg4[%c0_10, %c1, %c0_11, %c0_12] : memref<1x49x16x1xf32, #tpu.memory_space<vmem>>, vector<1x1x16x1xf32>
    %14 = vector.shape_cast %13 : vector<1x1x16x1xf32> to vector<16x1xf32>
    %15 = vector.broadcast %14 : vector<16x1xf32> to vector<16x112xf32>
    %16 = arith.mulf %12, %15 : vector<16x112xf32>
    %17 = arith.addf %11, %16 : vector<16x112xf32>
    %18 = vector.extract_strided_slice %4 {offsets = [0, 2], sizes = [16, 112], strides = [1, 1]} : vector<16x202xf32> to vector<16x112xf32>
    %c0_13 = arith.constant 0 : index
    %c2 = arith.constant 2 : index
    %c0_14 = arith.constant 0 : index
    %c0_15 = arith.constant 0 : index
    %19 = vector.load %arg4[%c0_13, %c2, %c0_14, %c0_15] : memref<1x49x16x1xf32, #tpu.memory_space<vmem>>, vector<1x1x16x1xf32>
    %20 = vector.shape_cast %19 : vector<1x1x16x1xf32> to vector<16x1xf32>
    %21 = vector.broadcast %20 : vector<16x1xf32> to vector<16x112xf32>
    %22 = arith.mulf %18, %21 : vector<16x112xf32>
    %23 = arith.addf %17, %22 : vector<16x112xf32>
    %24 = vector.extract_strided_slice %4 {offsets = [0, 3], sizes = [16, 112], strides = [1, 1]} : vector<16x202xf32> to vector<16x112xf32>
    %c0_16 = arith.constant 0 : index
    %c3 = arith.constant 3 : index
    %c0_17 = arith.constant 0 : index
    %c0_18 = arith.constant 0 : index
    %25 = vector.load %arg4[%c0_16, %c3, %c0_17, %c0_18] : memref<1x49x16x1xf32, #tpu.memory_space<vmem>>, vector<1x1x16x1xf32>
    %26 = vector.shape_cast %25 : vector<1x1x16x1xf32> to vector<16x1xf32>
    %27 = vector.broadcast %26 : vector<16x1xf32> to vector<16x112xf32>
    %28 = arith.mulf %24, %27 : vector<16x112xf32>
    %29 = arith.addf %23, %28 : vector<16x112xf32>
    %30 = vector.extract_strided_slice %4 {offsets = [0, 4], sizes = [16, 112], strides = [1, 1]} : vector<16x202xf32> to vector<16x112xf32>
    %c0_19 = arith.constant 0 : index
    %c4 = arith.constant 4 : index
    %c0_20 = arith.constant 0 : index
    %c0_21 = arith.constant 0 : index
    %31 = vector.load %arg4[%c0_19, %c4, %c0_20, %c0_21] : memref<1x49x16x1xf32, #tpu.memory_space<vmem>>, vector<1x1x16x1xf32>
    %32 = vector.shape_cast %31 : vector<1x1x16x1xf32> to vector<16x1xf32>
    %33 = vector.broadcast %32 : vector<16x1xf32> to vector<16x112xf32>
    %34 = arith.mulf %30, %33 : vector<16x112xf32>
    %35 = arith.addf %29, %34 : vector<16x112xf32>
    %36 = vector.extract_strided_slice %4 {offsets = [0, 5], sizes = [16, 112], strides = [1, 1]} : vector<16x202xf32> to vector<16x112xf32>
    %c0_22 = arith.constant 0 : index
    %c5 = arith.constant 5 : index
    %c0_23 = arith.constant 0 : index
    %c0_24 = arith.constant 0 : index
    %37 = vector.load %arg4[%c0_22, %c5, %c0_23, %c0_24] : memref<1x49x16x1xf32, #tpu.memory_space<vmem>>, vector<1x1x16x1xf32>
    %38 = vector.shape_cast %37 : vector<1x1x16x1xf32> to vector<16x1xf32>
    %39 = vector.broadcast %38 : vector<16x1xf32> to vector<16x112xf32>
    %40 = arith.mulf %36, %39 : vector<16x112xf32>
    %41 = arith.addf %35, %40 : vector<16x112xf32>
    %42 = vector.extract_strided_slice %4 {offsets = [0, 6], sizes = [16, 112], strides = [1, 1]} : vector<16x202xf32> to vector<16x112xf32>
    %c0_25 = arith.constant 0 : index
    %c6 = arith.constant 6 : index
    %c0_26 = arith.constant 0 : index
    %c0_27 = arith.constant 0 : index
    %43 = vector.load %arg4[%c0_25, %c6, %c0_26, %c0_27] : memref<1x49x16x1xf32, #tpu.memory_space<vmem>>, vector<1x1x16x1xf32>
    %44 = vector.shape_cast %43 : vector<1x1x16x1xf32> to vector<16x1xf32>
    %45 = vector.broadcast %44 : vector<16x1xf32> to vector<16x112xf32>
    %46 = arith.mulf %42, %45 : vector<16x112xf32>
    %47 = arith.addf %41, %46 : vector<16x112xf32>
    %48 = vector.extract_strided_slice %4 {offsets = [0, 14], sizes = [16, 112], strides = [1, 1]} : vector<16x202xf32> to vector<16x112xf32>
    %c0_28 = arith.constant 0 : index
    %c7 = arith.constant 7 : index
    %c0_29 = arith.constant 0 : index
    %c0_30 = arith.constant 0 : index
    %49 = vector.load %arg4[%c0_28, %c7, %c0_29, %c0_30] : memref<1x49x16x1xf32, #tpu.memory_space<vmem>>, vector<1x1x16x1xf32>
    %50 = vector.shape_cast %49 : vector<1x1x16x1xf32> to vector<16x1xf32>
    %51 = vector.broadcast %50 : vector<16x1xf32> to vector<16x112xf32>
    %52 = arith.mulf %48, %51 : vector<16x112xf32>
    %53 = arith.addf %47, %52 : vector<16x112xf32>
    %54 = vector.extract_strided_slice %4 {offsets = [0, 15], sizes = [16, 112], strides = [1, 1]} : vector<16x202xf32> to vector<16x112xf32>
    %c0_31 = arith.constant 0 : index
    %c8 = arith.constant 8 : index
    %c0_32 = arith.constant 0 : index
    %c0_33 = arith.constant 0 : index
    %55 = vector.load %arg4[%c0_31, %c8, %c0_32, %c0_33] : memref<1x49x16x1xf32, #tpu.memory_space<vmem>>, vector<1x1x16x1xf32>
    %56 = vector.shape_cast %55 : vector<1x1x16x1xf32> to vector<16x1xf32>
    %57 = vector.broadcast %56 : vector<16x1xf32> to vector<16x112xf32>
    %58 = arith.mulf %54, %57 : vector<16x112xf32>
    %59 = arith.addf %53, %58 : vector<16x112xf32>
    %60 = vector.extract_strided_slice %4 {offsets = [0, 16], sizes = [16, 112], strides = [1, 1]} : vector<16x202xf32> to vector<16x112xf32>
    %c0_34 = arith.constant 0 : index
    %c9 = arith.constant 9 : index
    %c0_35 = arith.constant 0 : index
    %c0_36 = arith.constant 0 : index
    %61 = vector.load %arg4[%c0_34, %c9, %c0_35, %c0_36] : memref<1x49x16x1xf32, #tpu.memory_space<vmem>>, vector<1x1x16x1xf32>
    %62 = vector.shape_cast %61 : vector<1x1x16x1xf32> to vector<16x1xf32>
    %63 = vector.broadcast %62 : vector<16x1xf32> to vector<16x112xf32>
    %64 = arith.mulf %60, %63 : vector<16x112xf32>
    %65 = arith.addf %59, %64 : vector<16x112xf32>
    %66 = vector.extract_strided_slice %4 {offsets = [0, 17], sizes = [16, 112], strides = [1, 1]} : vector<16x202xf32> to vector<16x112xf32>
    %c0_37 = arith.constant 0 : index
    %c10 = arith.constant 10 : index
    %c0_38 = arith.constant 0 : index
    %c0_39 = arith.constant 0 : index
    %67 = vector.load %arg4[%c0_37, %c10, %c0_38, %c0_39] : memref<1x49x16x1xf32, #tpu.memory_space<vmem>>, vector<1x1x16x1xf32>
    %68 = vector.shape_cast %67 : vector<1x1x16x1xf32> to vector<16x1xf32>
    %69 = vector.broadcast %68 : vector<16x1xf32> to vector<16x112xf32>
    %70 = arith.mulf %66, %69 : vector<16x112xf32>
    %71 = arith.addf %65, %70 : vector<16x112xf32>
    %72 = vector.extract_strided_slice %4 {offsets = [0, 18], sizes = [16, 112], strides = [1, 1]} : vector<16x202xf32> to vector<16x112xf32>
    %c0_40 = arith.constant 0 : index
    %c11 = arith.constant 11 : index
    %c0_41 = arith.constant 0 : index
    %c0_42 = arith.constant 0 : index
    %73 = vector.load %arg4[%c0_40, %c11, %c0_41, %c0_42] : memref<1x49x16x1xf32, #tpu.memory_space<vmem>>, vector<1x1x16x1xf32>
    %74 = vector.shape_cast %73 : vector<1x1x16x1xf32> to vector<16x1xf32>
    %75 = vector.broadcast %74 : vector<16x1xf32> to vector<16x112xf32>
    %76 = arith.mulf %72, %75 : vector<16x112xf32>
    %77 = arith.addf %71, %76 : vector<16x112xf32>
    %78 = vector.extract_strided_slice %4 {offsets = [0, 19], sizes = [16, 112], strides = [1, 1]} : vector<16x202xf32> to vector<16x112xf32>
    %c0_43 = arith.constant 0 : index
    %c12 = arith.constant 12 : index
    %c0_44 = arith.constant 0 : index
    %c0_45 = arith.constant 0 : index
    %79 = vector.load %arg4[%c0_43, %c12, %c0_44, %c0_45] : memref<1x49x16x1xf32, #tpu.memory_space<vmem>>, vector<1x1x16x1xf32>
    %80 = vector.shape_cast %79 : vector<1x1x16x1xf32> to vector<16x1xf32>
    %81 = vector.broadcast %80 : vector<16x1xf32> to vector<16x112xf32>
    %82 = arith.mulf %78, %81 : vector<16x112xf32>
    %83 = arith.addf %77, %82 : vector<16x112xf32>
    %84 = vector.extract_strided_slice %4 {offsets = [0, 20], sizes = [16, 112], strides = [1, 1]} : vector<16x202xf32> to vector<16x112xf32>
    %c0_46 = arith.constant 0 : index
    %c13 = arith.constant 13 : index
    %c0_47 = arith.constant 0 : index
    %c0_48 = arith.constant 0 : index
    %85 = vector.load %arg4[%c0_46, %c13, %c0_47, %c0_48] : memref<1x49x16x1xf32, #tpu.memory_space<vmem>>, vector<1x1x16x1xf32>
    %86 = vector.shape_cast %85 : vector<1x1x16x1xf32> to vector<16x1xf32>
    %87 = vector.broadcast %86 : vector<16x1xf32> to vector<16x112xf32>
    %88 = arith.mulf %84, %87 : vector<16x112xf32>
    %89 = arith.addf %83, %88 : vector<16x112xf32>
    %90 = vector.extract_strided_slice %4 {offsets = [0, 28], sizes = [16, 112], strides = [1, 1]} : vector<16x202xf32> to vector<16x112xf32>
    %c0_49 = arith.constant 0 : index
    %c14 = arith.constant 14 : index
    %c0_50 = arith.constant 0 : index
    %c0_51 = arith.constant 0 : index
    %91 = vector.load %arg4[%c0_49, %c14, %c0_50, %c0_51] : memref<1x49x16x1xf32, #tpu.memory_space<vmem>>, vector<1x1x16x1xf32>
    %92 = vector.shape_cast %91 : vector<1x1x16x1xf32> to vector<16x1xf32>
    %93 = vector.broadcast %92 : vector<16x1xf32> to vector<16x112xf32>
    %94 = arith.mulf %90, %93 : vector<16x112xf32>
    %95 = arith.addf %89, %94 : vector<16x112xf32>
    %96 = vector.extract_strided_slice %4 {offsets = [0, 29], sizes = [16, 112], strides = [1, 1]} : vector<16x202xf32> to vector<16x112xf32>
    %c0_52 = arith.constant 0 : index
    %c15 = arith.constant 15 : index
    %c0_53 = arith.constant 0 : index
    %c0_54 = arith.constant 0 : index
    %97 = vector.load %arg4[%c0_52, %c15, %c0_53, %c0_54] : memref<1x49x16x1xf32, #tpu.memory_space<vmem>>, vector<1x1x16x1xf32>
    %98 = vector.shape_cast %97 : vector<1x1x16x1xf32> to vector<16x1xf32>
    %99 = vector.broadcast %98 : vector<16x1xf32> to vector<16x112xf32>
    %100 = arith.mulf %96, %99 : vector<16x112xf32>
    %101 = arith.addf %95, %100 : vector<16x112xf32>
    %102 = vector.extract_strided_slice %4 {offsets = [0, 30], sizes = [16, 112], strides = [1, 1]} : vector<16x202xf32> to vector<16x112xf32>
    %c0_55 = arith.constant 0 : index
    %c16 = arith.constant 16 : index
    %c0_56 = arith.constant 0 : index
    %c0_57 = arith.constant 0 : index
    %103 = vector.load %arg4[%c0_55, %c16, %c0_56, %c0_57] : memref<1x49x16x1xf32, #tpu.memory_space<vmem>>, vector<1x1x16x1xf32>
    %104 = vector.shape_cast %103 : vector<1x1x16x1xf32> to vector<16x1xf32>
    %105 = vector.broadcast %104 : vector<16x1xf32> to vector<16x112xf32>
    %106 = arith.mulf %102, %105 : vector<16x112xf32>
    %107 = arith.addf %101, %106 : vector<16x112xf32>
    %108 = vector.extract_strided_slice %4 {offsets = [0, 31], sizes = [16, 112], strides = [1, 1]} : vector<16x202xf32> to vector<16x112xf32>
    %c0_58 = arith.constant 0 : index
    %c17 = arith.constant 17 : index
    %c0_59 = arith.constant 0 : index
    %c0_60 = arith.constant 0 : index
    %109 = vector.load %arg4[%c0_58, %c17, %c0_59, %c0_60] : memref<1x49x16x1xf32, #tpu.memory_space<vmem>>, vector<1x1x16x1xf32>
    %110 = vector.shape_cast %109 : vector<1x1x16x1xf32> to vector<16x1xf32>
    %111 = vector.broadcast %110 : vector<16x1xf32> to vector<16x112xf32>
    %112 = arith.mulf %108, %111 : vector<16x112xf32>
    %113 = arith.addf %107, %112 : vector<16x112xf32>
    %114 = vector.extract_strided_slice %4 {offsets = [0, 32], sizes = [16, 112], strides = [1, 1]} : vector<16x202xf32> to vector<16x112xf32>
    %c0_61 = arith.constant 0 : index
    %c18 = arith.constant 18 : index
    %c0_62 = arith.constant 0 : index
    %c0_63 = arith.constant 0 : index
    %115 = vector.load %arg4[%c0_61, %c18, %c0_62, %c0_63] : memref<1x49x16x1xf32, #tpu.memory_space<vmem>>, vector<1x1x16x1xf32>
    %116 = vector.shape_cast %115 : vector<1x1x16x1xf32> to vector<16x1xf32>
    %117 = vector.broadcast %116 : vector<16x1xf32> to vector<16x112xf32>
    %118 = arith.mulf %114, %117 : vector<16x112xf32>
    %119 = arith.addf %113, %118 : vector<16x112xf32>
    %120 = vector.extract_strided_slice %4 {offsets = [0, 33], sizes = [16, 112], strides = [1, 1]} : vector<16x202xf32> to vector<16x112xf32>
    %c0_64 = arith.constant 0 : index
    %c19 = arith.constant 19 : index
    %c0_65 = arith.constant 0 : index
    %c0_66 = arith.constant 0 : index
    %121 = vector.load %arg4[%c0_64, %c19, %c0_65, %c0_66] : memref<1x49x16x1xf32, #tpu.memory_space<vmem>>, vector<1x1x16x1xf32>
    %122 = vector.shape_cast %121 : vector<1x1x16x1xf32> to vector<16x1xf32>
    %123 = vector.broadcast %122 : vector<16x1xf32> to vector<16x112xf32>
    %124 = arith.mulf %120, %123 : vector<16x112xf32>
    %125 = arith.addf %119, %124 : vector<16x112xf32>
    %126 = vector.extract_strided_slice %4 {offsets = [0, 34], sizes = [16, 112], strides = [1, 1]} : vector<16x202xf32> to vector<16x112xf32>
    %c0_67 = arith.constant 0 : index
    %c20 = arith.constant 20 : index
    %c0_68 = arith.constant 0 : index
    %c0_69 = arith.constant 0 : index
    %127 = vector.load %arg4[%c0_67, %c20, %c0_68, %c0_69] : memref<1x49x16x1xf32, #tpu.memory_space<vmem>>, vector<1x1x16x1xf32>
    %128 = vector.shape_cast %127 : vector<1x1x16x1xf32> to vector<16x1xf32>
    %129 = vector.broadcast %128 : vector<16x1xf32> to vector<16x112xf32>
    %130 = arith.mulf %126, %129 : vector<16x112xf32>
    %131 = arith.addf %125, %130 : vector<16x112xf32>
    %132 = vector.extract_strided_slice %4 {offsets = [0, 42], sizes = [16, 112], strides = [1, 1]} : vector<16x202xf32> to vector<16x112xf32>
    %c0_70 = arith.constant 0 : index
    %c21 = arith.constant 21 : index
    %c0_71 = arith.constant 0 : index
    %c0_72 = arith.constant 0 : index
    %133 = vector.load %arg4[%c0_70, %c21, %c0_71, %c0_72] : memref<1x49x16x1xf32, #tpu.memory_space<vmem>>, vector<1x1x16x1xf32>
    %134 = vector.shape_cast %133 : vector<1x1x16x1xf32> to vector<16x1xf32>
    %135 = vector.broadcast %134 : vector<16x1xf32> to vector<16x112xf32>
    %136 = arith.mulf %132, %135 : vector<16x112xf32>
    %137 = arith.addf %131, %136 : vector<16x112xf32>
    %138 = vector.extract_strided_slice %4 {offsets = [0, 43], sizes = [16, 112], strides = [1, 1]} : vector<16x202xf32> to vector<16x112xf32>
    %c0_73 = arith.constant 0 : index
    %c22 = arith.constant 22 : index
    %c0_74 = arith.constant 0 : index
    %c0_75 = arith.constant 0 : index
    %139 = vector.load %arg4[%c0_73, %c22, %c0_74, %c0_75] : memref<1x49x16x1xf32, #tpu.memory_space<vmem>>, vector<1x1x16x1xf32>
    %140 = vector.shape_cast %139 : vector<1x1x16x1xf32> to vector<16x1xf32>
    %141 = vector.broadcast %140 : vector<16x1xf32> to vector<16x112xf32>
    %142 = arith.mulf %138, %141 : vector<16x112xf32>
    %143 = arith.addf %137, %142 : vector<16x112xf32>
    %144 = vector.extract_strided_slice %4 {offsets = [0, 44], sizes = [16, 112], strides = [1, 1]} : vector<16x202xf32> to vector<16x112xf32>
    %c0_76 = arith.constant 0 : index
    %c23 = arith.constant 23 : index
    %c0_77 = arith.constant 0 : index
    %c0_78 = arith.constant 0 : index
    %145 = vector.load %arg4[%c0_76, %c23, %c0_77, %c0_78] : memref<1x49x16x1xf32, #tpu.memory_space<vmem>>, vector<1x1x16x1xf32>
    %146 = vector.shape_cast %145 : vector<1x1x16x1xf32> to vector<16x1xf32>
    %147 = vector.broadcast %146 : vector<16x1xf32> to vector<16x112xf32>
    %148 = arith.mulf %144, %147 : vector<16x112xf32>
    %149 = arith.addf %143, %148 : vector<16x112xf32>
    %150 = vector.extract_strided_slice %4 {offsets = [0, 45], sizes = [16, 112], strides = [1, 1]} : vector<16x202xf32> to vector<16x112xf32>
    %c0_79 = arith.constant 0 : index
    %c24 = arith.constant 24 : index
    %c0_80 = arith.constant 0 : index
    %c0_81 = arith.constant 0 : index
    %151 = vector.load %arg4[%c0_79, %c24, %c0_80, %c0_81] : memref<1x49x16x1xf32, #tpu.memory_space<vmem>>, vector<1x1x16x1xf32>
    %152 = vector.shape_cast %151 : vector<1x1x16x1xf32> to vector<16x1xf32>
    %153 = vector.broadcast %152 : vector<16x1xf32> to vector<16x112xf32>
    %154 = arith.mulf %150, %153 : vector<16x112xf32>
    %155 = arith.addf %149, %154 : vector<16x112xf32>
    %156 = vector.extract_strided_slice %4 {offsets = [0, 46], sizes = [16, 112], strides = [1, 1]} : vector<16x202xf32> to vector<16x112xf32>
    %c0_82 = arith.constant 0 : index
    %c25 = arith.constant 25 : index
    %c0_83 = arith.constant 0 : index
    %c0_84 = arith.constant 0 : index
    %157 = vector.load %arg4[%c0_82, %c25, %c0_83, %c0_84] : memref<1x49x16x1xf32, #tpu.memory_space<vmem>>, vector<1x1x16x1xf32>
    %158 = vector.shape_cast %157 : vector<1x1x16x1xf32> to vector<16x1xf32>
    %159 = vector.broadcast %158 : vector<16x1xf32> to vector<16x112xf32>
    %160 = arith.mulf %156, %159 : vector<16x112xf32>
    %161 = arith.addf %155, %160 : vector<16x112xf32>
    %162 = vector.extract_strided_slice %4 {offsets = [0, 47], sizes = [16, 112], strides = [1, 1]} : vector<16x202xf32> to vector<16x112xf32>
    %c0_85 = arith.constant 0 : index
    %c26 = arith.constant 26 : index
    %c0_86 = arith.constant 0 : index
    %c0_87 = arith.constant 0 : index
    %163 = vector.load %arg4[%c0_85, %c26, %c0_86, %c0_87] : memref<1x49x16x1xf32, #tpu.memory_space<vmem>>, vector<1x1x16x1xf32>
    %164 = vector.shape_cast %163 : vector<1x1x16x1xf32> to vector<16x1xf32>
    %165 = vector.broadcast %164 : vector<16x1xf32> to vector<16x112xf32>
    %166 = arith.mulf %162, %165 : vector<16x112xf32>
    %167 = arith.addf %161, %166 : vector<16x112xf32>
    %168 = vector.extract_strided_slice %4 {offsets = [0, 48], sizes = [16, 112], strides = [1, 1]} : vector<16x202xf32> to vector<16x112xf32>
    %c0_88 = arith.constant 0 : index
    %c27 = arith.constant 27 : index
    %c0_89 = arith.constant 0 : index
    %c0_90 = arith.constant 0 : index
    %169 = vector.load %arg4[%c0_88, %c27, %c0_89, %c0_90] : memref<1x49x16x1xf32, #tpu.memory_space<vmem>>, vector<1x1x16x1xf32>
    %170 = vector.shape_cast %169 : vector<1x1x16x1xf32> to vector<16x1xf32>
    %171 = vector.broadcast %170 : vector<16x1xf32> to vector<16x112xf32>
    %172 = arith.mulf %168, %171 : vector<16x112xf32>
    %173 = arith.addf %167, %172 : vector<16x112xf32>
    %174 = vector.extract_strided_slice %4 {offsets = [0, 56], sizes = [16, 112], strides = [1, 1]} : vector<16x202xf32> to vector<16x112xf32>
    %c0_91 = arith.constant 0 : index
    %c28 = arith.constant 28 : index
    %c0_92 = arith.constant 0 : index
    %c0_93 = arith.constant 0 : index
    %175 = vector.load %arg4[%c0_91, %c28, %c0_92, %c0_93] : memref<1x49x16x1xf32, #tpu.memory_space<vmem>>, vector<1x1x16x1xf32>
    %176 = vector.shape_cast %175 : vector<1x1x16x1xf32> to vector<16x1xf32>
    %177 = vector.broadcast %176 : vector<16x1xf32> to vector<16x112xf32>
    %178 = arith.mulf %174, %177 : vector<16x112xf32>
    %179 = arith.addf %173, %178 : vector<16x112xf32>
    %180 = vector.extract_strided_slice %4 {offsets = [0, 57], sizes = [16, 112], strides = [1, 1]} : vector<16x202xf32> to vector<16x112xf32>
    %c0_94 = arith.constant 0 : index
    %c29 = arith.constant 29 : index
    %c0_95 = arith.constant 0 : index
    %c0_96 = arith.constant 0 : index
    %181 = vector.load %arg4[%c0_94, %c29, %c0_95, %c0_96] : memref<1x49x16x1xf32, #tpu.memory_space<vmem>>, vector<1x1x16x1xf32>
    %182 = vector.shape_cast %181 : vector<1x1x16x1xf32> to vector<16x1xf32>
    %183 = vector.broadcast %182 : vector<16x1xf32> to vector<16x112xf32>
    %184 = arith.mulf %180, %183 : vector<16x112xf32>
    %185 = arith.addf %179, %184 : vector<16x112xf32>
    %186 = vector.extract_strided_slice %4 {offsets = [0, 58], sizes = [16, 112], strides = [1, 1]} : vector<16x202xf32> to vector<16x112xf32>
    %c0_97 = arith.constant 0 : index
    %c30 = arith.constant 30 : index
    %c0_98 = arith.constant 0 : index
    %c0_99 = arith.constant 0 : index
    %187 = vector.load %arg4[%c0_97, %c30, %c0_98, %c0_99] : memref<1x49x16x1xf32, #tpu.memory_space<vmem>>, vector<1x1x16x1xf32>
    %188 = vector.shape_cast %187 : vector<1x1x16x1xf32> to vector<16x1xf32>
    %189 = vector.broadcast %188 : vector<16x1xf32> to vector<16x112xf32>
    %190 = arith.mulf %186, %189 : vector<16x112xf32>
    %191 = arith.addf %185, %190 : vector<16x112xf32>
    %192 = vector.extract_strided_slice %4 {offsets = [0, 59], sizes = [16, 112], strides = [1, 1]} : vector<16x202xf32> to vector<16x112xf32>
    %c0_100 = arith.constant 0 : index
    %c31 = arith.constant 31 : index
    %c0_101 = arith.constant 0 : index
    %c0_102 = arith.constant 0 : index
    %193 = vector.load %arg4[%c0_100, %c31, %c0_101, %c0_102] : memref<1x49x16x1xf32, #tpu.memory_space<vmem>>, vector<1x1x16x1xf32>
    %194 = vector.shape_cast %193 : vector<1x1x16x1xf32> to vector<16x1xf32>
    %195 = vector.broadcast %194 : vector<16x1xf32> to vector<16x112xf32>
    %196 = arith.mulf %192, %195 : vector<16x112xf32>
    %197 = arith.addf %191, %196 : vector<16x112xf32>
    %198 = vector.extract_strided_slice %4 {offsets = [0, 60], sizes = [16, 112], strides = [1, 1]} : vector<16x202xf32> to vector<16x112xf32>
    %c0_103 = arith.constant 0 : index
    %c32 = arith.constant 32 : index
    %c0_104 = arith.constant 0 : index
    %c0_105 = arith.constant 0 : index
    %199 = vector.load %arg4[%c0_103, %c32, %c0_104, %c0_105] : memref<1x49x16x1xf32, #tpu.memory_space<vmem>>, vector<1x1x16x1xf32>
    %200 = vector.shape_cast %199 : vector<1x1x16x1xf32> to vector<16x1xf32>
    %201 = vector.broadcast %200 : vector<16x1xf32> to vector<16x112xf32>
    %202 = arith.mulf %198, %201 : vector<16x112xf32>
    %203 = arith.addf %197, %202 : vector<16x112xf32>
    %204 = vector.extract_strided_slice %4 {offsets = [0, 61], sizes = [16, 112], strides = [1, 1]} : vector<16x202xf32> to vector<16x112xf32>
    %c0_106 = arith.constant 0 : index
    %c33 = arith.constant 33 : index
    %c0_107 = arith.constant 0 : index
    %c0_108 = arith.constant 0 : index
    %205 = vector.load %arg4[%c0_106, %c33, %c0_107, %c0_108] : memref<1x49x16x1xf32, #tpu.memory_space<vmem>>, vector<1x1x16x1xf32>
    %206 = vector.shape_cast %205 : vector<1x1x16x1xf32> to vector<16x1xf32>
    %207 = vector.broadcast %206 : vector<16x1xf32> to vector<16x112xf32>
    %208 = arith.mulf %204, %207 : vector<16x112xf32>
    %209 = arith.addf %203, %208 : vector<16x112xf32>
    %210 = vector.extract_strided_slice %4 {offsets = [0, 62], sizes = [16, 112], strides = [1, 1]} : vector<16x202xf32> to vector<16x112xf32>
    %c0_109 = arith.constant 0 : index
    %c34 = arith.constant 34 : index
    %c0_110 = arith.constant 0 : index
    %c0_111 = arith.constant 0 : index
    %211 = vector.load %arg4[%c0_109, %c34, %c0_110, %c0_111] : memref<1x49x16x1xf32, #tpu.memory_space<vmem>>, vector<1x1x16x1xf32>
    %212 = vector.shape_cast %211 : vector<1x1x16x1xf32> to vector<16x1xf32>
    %213 = vector.broadcast %212 : vector<16x1xf32> to vector<16x112xf32>
    %214 = arith.mulf %210, %213 : vector<16x112xf32>
    %215 = arith.addf %209, %214 : vector<16x112xf32>
    %216 = vector.extract_strided_slice %4 {offsets = [0, 70], sizes = [16, 112], strides = [1, 1]} : vector<16x202xf32> to vector<16x112xf32>
    %c0_112 = arith.constant 0 : index
    %c35 = arith.constant 35 : index
    %c0_113 = arith.constant 0 : index
    %c0_114 = arith.constant 0 : index
    %217 = vector.load %arg4[%c0_112, %c35, %c0_113, %c0_114] : memref<1x49x16x1xf32, #tpu.memory_space<vmem>>, vector<1x1x16x1xf32>
    %218 = vector.shape_cast %217 : vector<1x1x16x1xf32> to vector<16x1xf32>
    %219 = vector.broadcast %218 : vector<16x1xf32> to vector<16x112xf32>
    %220 = arith.mulf %216, %219 : vector<16x112xf32>
    %221 = arith.addf %215, %220 : vector<16x112xf32>
    %222 = vector.extract_strided_slice %4 {offsets = [0, 71], sizes = [16, 112], strides = [1, 1]} : vector<16x202xf32> to vector<16x112xf32>
    %c0_115 = arith.constant 0 : index
    %c36 = arith.constant 36 : index
    %c0_116 = arith.constant 0 : index
    %c0_117 = arith.constant 0 : index
    %223 = vector.load %arg4[%c0_115, %c36, %c0_116, %c0_117] : memref<1x49x16x1xf32, #tpu.memory_space<vmem>>, vector<1x1x16x1xf32>
    %224 = vector.shape_cast %223 : vector<1x1x16x1xf32> to vector<16x1xf32>
    %225 = vector.broadcast %224 : vector<16x1xf32> to vector<16x112xf32>
    %226 = arith.mulf %222, %225 : vector<16x112xf32>
    %227 = arith.addf %221, %226 : vector<16x112xf32>
    %228 = vector.extract_strided_slice %4 {offsets = [0, 72], sizes = [16, 112], strides = [1, 1]} : vector<16x202xf32> to vector<16x112xf32>
    %c0_118 = arith.constant 0 : index
    %c37 = arith.constant 37 : index
    %c0_119 = arith.constant 0 : index
    %c0_120 = arith.constant 0 : index
    %229 = vector.load %arg4[%c0_118, %c37, %c0_119, %c0_120] : memref<1x49x16x1xf32, #tpu.memory_space<vmem>>, vector<1x1x16x1xf32>
    %230 = vector.shape_cast %229 : vector<1x1x16x1xf32> to vector<16x1xf32>
    %231 = vector.broadcast %230 : vector<16x1xf32> to vector<16x112xf32>
    %232 = arith.mulf %228, %231 : vector<16x112xf32>
    %233 = arith.addf %227, %232 : vector<16x112xf32>
    %234 = vector.extract_strided_slice %4 {offsets = [0, 73], sizes = [16, 112], strides = [1, 1]} : vector<16x202xf32> to vector<16x112xf32>
    %c0_121 = arith.constant 0 : index
    %c38 = arith.constant 38 : index
    %c0_122 = arith.constant 0 : index
    %c0_123 = arith.constant 0 : index
    %235 = vector.load %arg4[%c0_121, %c38, %c0_122, %c0_123] : memref<1x49x16x1xf32, #tpu.memory_space<vmem>>, vector<1x1x16x1xf32>
    %236 = vector.shape_cast %235 : vector<1x1x16x1xf32> to vector<16x1xf32>
    %237 = vector.broadcast %236 : vector<16x1xf32> to vector<16x112xf32>
    %238 = arith.mulf %234, %237 : vector<16x112xf32>
    %239 = arith.addf %233, %238 : vector<16x112xf32>
    %240 = vector.extract_strided_slice %4 {offsets = [0, 74], sizes = [16, 112], strides = [1, 1]} : vector<16x202xf32> to vector<16x112xf32>
    %c0_124 = arith.constant 0 : index
    %c39 = arith.constant 39 : index
    %c0_125 = arith.constant 0 : index
    %c0_126 = arith.constant 0 : index
    %241 = vector.load %arg4[%c0_124, %c39, %c0_125, %c0_126] : memref<1x49x16x1xf32, #tpu.memory_space<vmem>>, vector<1x1x16x1xf32>
    %242 = vector.shape_cast %241 : vector<1x1x16x1xf32> to vector<16x1xf32>
    %243 = vector.broadcast %242 : vector<16x1xf32> to vector<16x112xf32>
    %244 = arith.mulf %240, %243 : vector<16x112xf32>
    %245 = arith.addf %239, %244 : vector<16x112xf32>
    %246 = vector.extract_strided_slice %4 {offsets = [0, 75], sizes = [16, 112], strides = [1, 1]} : vector<16x202xf32> to vector<16x112xf32>
    %c0_127 = arith.constant 0 : index
    %c40 = arith.constant 40 : index
    %c0_128 = arith.constant 0 : index
    %c0_129 = arith.constant 0 : index
    %247 = vector.load %arg4[%c0_127, %c40, %c0_128, %c0_129] : memref<1x49x16x1xf32, #tpu.memory_space<vmem>>, vector<1x1x16x1xf32>
    %248 = vector.shape_cast %247 : vector<1x1x16x1xf32> to vector<16x1xf32>
    %249 = vector.broadcast %248 : vector<16x1xf32> to vector<16x112xf32>
    %250 = arith.mulf %246, %249 : vector<16x112xf32>
    %251 = arith.addf %245, %250 : vector<16x112xf32>
    %252 = vector.extract_strided_slice %4 {offsets = [0, 76], sizes = [16, 112], strides = [1, 1]} : vector<16x202xf32> to vector<16x112xf32>
    %c0_130 = arith.constant 0 : index
    %c41 = arith.constant 41 : index
    %c0_131 = arith.constant 0 : index
    %c0_132 = arith.constant 0 : index
    %253 = vector.load %arg4[%c0_130, %c41, %c0_131, %c0_132] : memref<1x49x16x1xf32, #tpu.memory_space<vmem>>, vector<1x1x16x1xf32>
    %254 = vector.shape_cast %253 : vector<1x1x16x1xf32> to vector<16x1xf32>
    %255 = vector.broadcast %254 : vector<16x1xf32> to vector<16x112xf32>
    %256 = arith.mulf %252, %255 : vector<16x112xf32>
    %257 = arith.addf %251, %256 : vector<16x112xf32>
    %258 = vector.extract_strided_slice %4 {offsets = [0, 84], sizes = [16, 112], strides = [1, 1]} : vector<16x202xf32> to vector<16x112xf32>
    %c0_133 = arith.constant 0 : index
    %c42 = arith.constant 42 : index
    %c0_134 = arith.constant 0 : index
    %c0_135 = arith.constant 0 : index
    %259 = vector.load %arg4[%c0_133, %c42, %c0_134, %c0_135] : memref<1x49x16x1xf32, #tpu.memory_space<vmem>>, vector<1x1x16x1xf32>
    %260 = vector.shape_cast %259 : vector<1x1x16x1xf32> to vector<16x1xf32>
    %261 = vector.broadcast %260 : vector<16x1xf32> to vector<16x112xf32>
    %262 = arith.mulf %258, %261 : vector<16x112xf32>
    %263 = arith.addf %257, %262 : vector<16x112xf32>
    %264 = vector.extract_strided_slice %4 {offsets = [0, 85], sizes = [16, 112], strides = [1, 1]} : vector<16x202xf32> to vector<16x112xf32>
    %c0_136 = arith.constant 0 : index
    %c43 = arith.constant 43 : index
    %c0_137 = arith.constant 0 : index
    %c0_138 = arith.constant 0 : index
    %265 = vector.load %arg4[%c0_136, %c43, %c0_137, %c0_138] : memref<1x49x16x1xf32, #tpu.memory_space<vmem>>, vector<1x1x16x1xf32>
    %266 = vector.shape_cast %265 : vector<1x1x16x1xf32> to vector<16x1xf32>
    %267 = vector.broadcast %266 : vector<16x1xf32> to vector<16x112xf32>
    %268 = arith.mulf %264, %267 : vector<16x112xf32>
    %269 = arith.addf %263, %268 : vector<16x112xf32>
    %270 = vector.extract_strided_slice %4 {offsets = [0, 86], sizes = [16, 112], strides = [1, 1]} : vector<16x202xf32> to vector<16x112xf32>
    %c0_139 = arith.constant 0 : index
    %c44 = arith.constant 44 : index
    %c0_140 = arith.constant 0 : index
    %c0_141 = arith.constant 0 : index
    %271 = vector.load %arg4[%c0_139, %c44, %c0_140, %c0_141] : memref<1x49x16x1xf32, #tpu.memory_space<vmem>>, vector<1x1x16x1xf32>
    %272 = vector.shape_cast %271 : vector<1x1x16x1xf32> to vector<16x1xf32>
    %273 = vector.broadcast %272 : vector<16x1xf32> to vector<16x112xf32>
    %274 = arith.mulf %270, %273 : vector<16x112xf32>
    %275 = arith.addf %269, %274 : vector<16x112xf32>
    %276 = vector.extract_strided_slice %4 {offsets = [0, 87], sizes = [16, 112], strides = [1, 1]} : vector<16x202xf32> to vector<16x112xf32>
    %c0_142 = arith.constant 0 : index
    %c45 = arith.constant 45 : index
    %c0_143 = arith.constant 0 : index
    %c0_144 = arith.constant 0 : index
    %277 = vector.load %arg4[%c0_142, %c45, %c0_143, %c0_144] : memref<1x49x16x1xf32, #tpu.memory_space<vmem>>, vector<1x1x16x1xf32>
    %278 = vector.shape_cast %277 : vector<1x1x16x1xf32> to vector<16x1xf32>
    %279 = vector.broadcast %278 : vector<16x1xf32> to vector<16x112xf32>
    %280 = arith.mulf %276, %279 : vector<16x112xf32>
    %281 = arith.addf %275, %280 : vector<16x112xf32>
    %282 = vector.extract_strided_slice %4 {offsets = [0, 88], sizes = [16, 112], strides = [1, 1]} : vector<16x202xf32> to vector<16x112xf32>
    %c0_145 = arith.constant 0 : index
    %c46 = arith.constant 46 : index
    %c0_146 = arith.constant 0 : index
    %c0_147 = arith.constant 0 : index
    %283 = vector.load %arg4[%c0_145, %c46, %c0_146, %c0_147] : memref<1x49x16x1xf32, #tpu.memory_space<vmem>>, vector<1x1x16x1xf32>
    %284 = vector.shape_cast %283 : vector<1x1x16x1xf32> to vector<16x1xf32>
    %285 = vector.broadcast %284 : vector<16x1xf32> to vector<16x112xf32>
    %286 = arith.mulf %282, %285 : vector<16x112xf32>
    %287 = arith.addf %281, %286 : vector<16x112xf32>
    %288 = vector.extract_strided_slice %4 {offsets = [0, 89], sizes = [16, 112], strides = [1, 1]} : vector<16x202xf32> to vector<16x112xf32>
    %c0_148 = arith.constant 0 : index
    %c47 = arith.constant 47 : index
    %c0_149 = arith.constant 0 : index
    %c0_150 = arith.constant 0 : index
    %289 = vector.load %arg4[%c0_148, %c47, %c0_149, %c0_150] : memref<1x49x16x1xf32, #tpu.memory_space<vmem>>, vector<1x1x16x1xf32>
    %290 = vector.shape_cast %289 : vector<1x1x16x1xf32> to vector<16x1xf32>
    %291 = vector.broadcast %290 : vector<16x1xf32> to vector<16x112xf32>
    %292 = arith.mulf %288, %291 : vector<16x112xf32>
    %293 = arith.addf %287, %292 : vector<16x112xf32>
    %294 = vector.extract_strided_slice %4 {offsets = [0, 90], sizes = [16, 112], strides = [1, 1]} : vector<16x202xf32> to vector<16x112xf32>
    %c0_151 = arith.constant 0 : index
    %c48 = arith.constant 48 : index
    %c0_152 = arith.constant 0 : index
    %c0_153 = arith.constant 0 : index
    %295 = vector.load %arg4[%c0_151, %c48, %c0_152, %c0_153] : memref<1x49x16x1xf32, #tpu.memory_space<vmem>>, vector<1x1x16x1xf32>
    %296 = vector.shape_cast %295 : vector<1x1x16x1xf32> to vector<16x1xf32>
    %297 = vector.broadcast %296 : vector<16x1xf32> to vector<16x112xf32>
    %298 = arith.mulf %294, %297 : vector<16x112xf32>
    %299 = arith.addf %293, %298 : vector<16x112xf32>
    %c0_154 = arith.constant 0 : index
    %c0_155 = arith.constant 0 : index
    %300 = vector.load %arg7[%c0_154, %c0_155] : memref<16x112xf32, #tpu.memory_space<vmem>>, vector<16x112xf32>
    tpu.vector_store %arg7[%c0_154, %c0_155], %299 {strides = array<i32>} : memref<16x112xf32, #tpu.memory_space<vmem>>, vector<16x112xf32>,
    %c6_i32 = arith.constant 6 : i32
    %301 = arith.cmpi eq, %arg2, %c6_i32 : i32
    %302 = arith.extui %301 : i1 to i32
    %c0_i32_156 = arith.constant 0 : i32
    %303 = arith.cmpi ne, %302, %c0_i32_156 : i32
    scf.if %303 {
      %c0_157 = arith.constant 0 : index
      %c0_158 = arith.constant 0 : index
      %304 = vector.load %arg7[%c0_157, %c0_158] : memref<16x112xf32, #tpu.memory_space<vmem>>, vector<16x112xf32>
      %c0_159 = arith.constant 0 : index
      %c0_160 = arith.constant 0 : index
      %c0_161 = arith.constant 0 : index
      %305 = vector.load %arg5[%c0_159, %c0_160, %c0_161] : memref<1x16x1xf32, #tpu.memory_space<vmem>>, vector<1x16x1xf32>
      %306 = vector.shape_cast %305 : vector<1x16x1xf32> to vector<16x1xf32>
      %307 = vector.broadcast %306 : vector<16x1xf32> to vector<16x112xf32>
      %308 = arith.addf %304, %307 : vector<16x112xf32>
      %c0_162 = arith.constant 0 : index
      %c0_163 = arith.constant 0 : index
      %c0_164 = arith.constant 0 : index
      %c0_165 = arith.constant 0 : index
      %309 = vector.load %arg6[%c0_162, %c0_163, %c0_164, %c0_165] : memref<1x1x16x112xf32, #tpu.memory_space<vmem>>, vector<1x1x16x112xf32>
      %310 = vector.shape_cast %309 : vector<1x1x16x112xf32> to vector<16x112xf32>
      %311 = vector.shape_cast %308 : vector<16x112xf32> to vector<1x1x16x112xf32>
      tpu.vector_store %arg6[%c0_162, %c0_163, %c0_164, %c0_165], %311 {strides = array<i32>} : memref<1x1x16x112xf32, #tpu.memory_space<vmem>>, vector<1x1x16x112xf32>,
    } else {
    }
    return
  }
  func.func @transform_0(%arg0: i32, %arg1: i32, %arg2: i32) -> (i32, i32, i32, i32) {
    %0 = arith.addi %arg1, %arg2 : i32
    %c0_i32 = arith.constant 0 : i32
    %c0_i32_0 = arith.constant 0 : i32
    %c0_i32_1 = arith.constant 0 : i32
    return %arg0, %0, %c0_i32, %c0_i32_0 : i32, i32, i32, i32
  }
  func.func @transform_1(%arg0: i32, %arg1: i32, %arg2: i32) -> (i32, i32, i32, i32) {
    %c0_i32 = arith.constant 0 : i32
    %c0_i32_0 = arith.constant 0 : i32
    %c0_i32_1 = arith.constant 0 : i32
    %c0_i32_2 = arith.constant 0 : i32
    return %arg2, %c0_i32, %c0_i32_0, %c0_i32_1 : i32, i32, i32, i32
  }
  func.func @transform_2(%arg0: i32, %arg1: i32, %arg2: i32) -> (i32, i32, i32) {
    %c0_i32 = arith.constant 0 : i32
    %c0_i32_0 = arith.constant 0 : i32
    %c0_i32_1 = arith.constant 0 : i32
    return %arg0, %c0_i32, %c0_i32_0 : i32, i32, i32
  }
  func.func @transform_3(%arg0: i32, %arg1: i32, %arg2: i32) -> (i32, i32, i32, i32) {
    %c0_i32 = arith.constant 0 : i32
    %c0_i32_0 = arith.constant 0 : i32
    %c0_i32_1 = arith.constant 0 : i32
    return %arg0, %arg1, %c0_i32, %c0_i32_0 : i32, i32, i32, i32
  }
}

module attributes {stable_mosaic.version = 11 : i64} {
  func.func @kernel(%arg0: i32, %arg1: i32, %arg2: i32, %arg3: memref<1x1x16x102xf32, #tpu.memory_space<vmem>>, %arg4: memref<1x32x144xbf16, #tpu.memory_space<vmem>>, %arg5: memref<32x1xf32, #tpu.memory_space<vmem>>, %arg6: memref<1x1x32x80xf32, #tpu.memory_space<vmem>>, %arg7: memref<32x80xf32, #tpu.memory_space<vmem>>) attributes {dimension_semantics = [#tpu.dimension_semantics<parallel>, #tpu.dimension_semantics<parallel>, #tpu.dimension_semantics<arbitrary>], iteration_bounds = array<i64: 2, 8, 3>, scalar_prefetch = 0 : i64, scratch_operands = 1 : i64, tpu.core_type = #tpu.core_type<tc>, window_params = [{transform_indices = @transform_0, window_bounds = array<i64: 1, 1, 16, 102>}, {transform_indices = @transform_1, window_bounds = array<i64: 1, 32, 144>}, {pipeline_mode = #tpu.pipeline_mode<synchronous>, transform_indices = @transform_2, window_bounds = array<i64: 32, 1>}, {transform_indices = @transform_3, window_bounds = array<i64: 1, 1, 32, 80>}]} {
    %c0_i32 = arith.constant 0 : i32
    %0 = arith.cmpi eq, %arg2, %c0_i32 : i32
    %1 = arith.extui %0 : i1 to i32
    %c0_i32_0 = arith.constant 0 : i32
    %2 = arith.cmpi ne, %1, %c0_i32_0 : i32
    scf.if %2 {
      %cst_12 = arith.constant 0.000000e+00 : f32
      %25 = vector.broadcast %cst_12 : f32 to vector<32x80xf32>
      %c0_13 = arith.constant 0 : index
      %c0_14 = arith.constant 0 : index
      %26 = vector.load %arg7[%c0_13, %c0_14] : memref<32x80xf32, #tpu.memory_space<vmem>>, vector<32x80xf32>
      tpu.vector_store %arg7[%c0_13, %c0_14], %25 {strides = array<i32>} : memref<32x80xf32, #tpu.memory_space<vmem>>, vector<32x80xf32>,
    } else {
    }
    %c0 = arith.constant 0 : index
    %c0_1 = arith.constant 0 : index
    %c0_2 = arith.constant 0 : index
    %c0_3 = arith.constant 0 : index
    %3 = vector.load %arg3[%c0, %c0_1, %c0_2, %c0_3] : memref<1x1x16x102xf32, #tpu.memory_space<vmem>>, vector<1x1x16x102xf32>
    %4 = vector.shape_cast %3 : vector<1x1x16x102xf32> to vector<16x102xf32>
    %5 = vector.extract_strided_slice %4 {offsets = [0, 0], sizes = [16, 80], strides = [1, 1]} : vector<16x102xf32> to vector<16x80xf32>
    %6 = vector.extract_strided_slice %4 {offsets = [0, 1], sizes = [16, 80], strides = [1, 1]} : vector<16x102xf32> to vector<16x80xf32>
    %7 = vector.extract_strided_slice %4 {offsets = [0, 2], sizes = [16, 80], strides = [1, 1]} : vector<16x102xf32> to vector<16x80xf32>
    %8 = vector.extract_strided_slice %4 {offsets = [0, 10], sizes = [16, 80], strides = [1, 1]} : vector<16x102xf32> to vector<16x80xf32>
    %9 = vector.extract_strided_slice %4 {offsets = [0, 11], sizes = [16, 80], strides = [1, 1]} : vector<16x102xf32> to vector<16x80xf32>
    %10 = vector.extract_strided_slice %4 {offsets = [0, 12], sizes = [16, 80], strides = [1, 1]} : vector<16x102xf32> to vector<16x80xf32>
    %11 = vector.extract_strided_slice %4 {offsets = [0, 20], sizes = [16, 80], strides = [1, 1]} : vector<16x102xf32> to vector<16x80xf32>
    %12 = vector.extract_strided_slice %4 {offsets = [0, 21], sizes = [16, 80], strides = [1, 1]} : vector<16x102xf32> to vector<16x80xf32>
    %13 = vector.extract_strided_slice %4 {offsets = [0, 22], sizes = [16, 80], strides = [1, 1]} : vector<16x102xf32> to vector<16x80xf32>
    %14 = tpu.concatenate %5, %6, %7, %8, %9, %10, %11, %12, %13 in 0 : vector<16x80xf32>, vector<16x80xf32>, vector<16x80xf32>, vector<16x80xf32>, vector<16x80xf32>, vector<16x80xf32>, vector<16x80xf32>, vector<16x80xf32>, vector<16x80xf32> -> vector<144x80xf32>
    %c0_4 = arith.constant 0 : index
    %c0_5 = arith.constant 0 : index
    %15 = vector.load %arg7[%c0_4, %c0_5] : memref<32x80xf32, #tpu.memory_space<vmem>>, vector<32x80xf32>
    %c0_6 = arith.constant 0 : index
    %c0_7 = arith.constant 0 : index
    %c0_8 = arith.constant 0 : index
    %16 = vector.load %arg4[%c0_6, %c0_7, %c0_8] : memref<1x32x144xbf16, #tpu.memory_space<vmem>>, vector<1x32x144xbf16>
    %17 = vector.shape_cast %16 : vector<1x32x144xbf16> to vector<32x144xbf16>
    %18 = arith.truncf %14 : vector<144x80xf32> to vector<144x80xbf16>
    %cst = arith.constant dense<0.000000e+00> : vector<32x80xf32>
    %19 = tpu.matmul %17, %18, %cst {dimension_numbers = #tpu.dot_dimension_numbers<[1], [0], [0], [1], [0, 0, 1, 1], [], []>} : vector<32x144xbf16>, vector<144x80xbf16>, vector<32x80xf32> -> vector<32x80xf32>
    %20 = arith.addf %15, %19 : vector<32x80xf32>
    %c0_9 = arith.constant 0 : index
    %c0_10 = arith.constant 0 : index
    %21 = vector.load %arg7[%c0_9, %c0_10] : memref<32x80xf32, #tpu.memory_space<vmem>>, vector<32x80xf32>
    tpu.vector_store %arg7[%c0_9, %c0_10], %20 {strides = array<i32>} : memref<32x80xf32, #tpu.memory_space<vmem>>, vector<32x80xf32>,
    %c2_i32 = arith.constant 2 : i32
    %22 = arith.cmpi eq, %arg2, %c2_i32 : i32
    %23 = arith.extui %22 : i1 to i32
    %c0_i32_11 = arith.constant 0 : i32
    %24 = arith.cmpi ne, %23, %c0_i32_11 : i32
    scf.if %24 {
      %c0_12 = arith.constant 0 : index
      %c0_13 = arith.constant 0 : index
      %25 = vector.load %arg7[%c0_12, %c0_13] : memref<32x80xf32, #tpu.memory_space<vmem>>, vector<32x80xf32>
      %c0_14 = arith.constant 0 : index
      %c0_15 = arith.constant 0 : index
      %26 = vector.load %arg5[%c0_14, %c0_15] : memref<32x1xf32, #tpu.memory_space<vmem>>, vector<32x1xf32>
      %27 = vector.broadcast %26 : vector<32x1xf32> to vector<32x80xf32>
      %28 = arith.addf %25, %27 : vector<32x80xf32>
      %29 = arith.negf %28 : vector<32x80xf32>
      %30 = math.exp %29 : vector<32x80xf32>
      %cst_16 = arith.constant 1.000000e+00 : f32
      %31 = vector.broadcast %cst_16 : f32 to vector<32x80xf32>
      %32 = arith.addf %31, %30 : vector<32x80xf32>
      %33 = arith.divf %31, %32 : vector<32x80xf32>
      %34 = arith.mulf %28, %33 : vector<32x80xf32>
      %c0_17 = arith.constant 0 : index
      %c0_18 = arith.constant 0 : index
      %c0_19 = arith.constant 0 : index
      %c0_20 = arith.constant 0 : index
      %35 = vector.load %arg6[%c0_17, %c0_18, %c0_19, %c0_20] : memref<1x1x32x80xf32, #tpu.memory_space<vmem>>, vector<1x1x32x80xf32>
      %36 = vector.shape_cast %35 : vector<1x1x32x80xf32> to vector<32x80xf32>
      %37 = vector.shape_cast %34 : vector<32x80xf32> to vector<1x1x32x80xf32>
      tpu.vector_store %arg6[%c0_17, %c0_18, %c0_19, %c0_20], %37 {strides = array<i32>} : memref<1x1x32x80xf32, #tpu.memory_space<vmem>>, vector<1x1x32x80xf32>,
    } else {
    }
    return
  }
  func.func @transform_0(%arg0: i32, %arg1: i32, %arg2: i32) -> (i32, i32, i32, i32) {
    %0 = arith.addi %arg1, %arg2 : i32
    %c0_i32 = arith.constant 0 : i32
    %c0_i32_0 = arith.constant 0 : i32
    %c0_i32_1 = arith.constant 0 : i32
    return %arg0, %0, %c0_i32, %c0_i32_0 : i32, i32, i32, i32
  }
  func.func @transform_1(%arg0: i32, %arg1: i32, %arg2: i32) -> (i32, i32, i32) {
    %c0_i32 = arith.constant 0 : i32
    %c0_i32_0 = arith.constant 0 : i32
    %c0_i32_1 = arith.constant 0 : i32
    return %arg2, %c0_i32, %c0_i32_0 : i32, i32, i32
  }
  func.func @transform_2(%arg0: i32, %arg1: i32, %arg2: i32) -> (i32, i32) {
    %c0_i32 = arith.constant 0 : i32
    %c0_i32_0 = arith.constant 0 : i32
    %c0_i32_1 = arith.constant 0 : i32
    return %c0_i32, %c0_i32_0 : i32, i32
  }
  func.func @transform_3(%arg0: i32, %arg1: i32, %arg2: i32) -> (i32, i32, i32, i32) {
    %c0_i32 = arith.constant 0 : i32
    %c0_i32_0 = arith.constant 0 : i32
    %c0_i32_1 = arith.constant 0 : i32
    return %arg0, %arg1, %c0_i32, %c0_i32_0 : i32, i32, i32, i32
  }
}

module attributes {stable_mosaic.version = 11 : i64} {
  func.func @kernel(%arg0: i32, %arg1: i32, %arg2: i32, %arg3: memref<1x1x32x102xf32, #tpu.memory_space<vmem>>, %arg4: memref<1x16x288xbf16, #tpu.memory_space<vmem>>, %arg5: memref<16x1xf32, #tpu.memory_space<vmem>>, %arg6: memref<1x1x16x80xf32, #tpu.memory_space<vmem>>, %arg7: memref<1x1x16x80xf32, #tpu.memory_space<vmem>>, %arg8: memref<16x80xf32, #tpu.memory_space<vmem>>) attributes {dimension_semantics = [#tpu.dimension_semantics<parallel>, #tpu.dimension_semantics<parallel>, #tpu.dimension_semantics<arbitrary>], iteration_bounds = array<i64: 2, 8, 3>, scalar_prefetch = 0 : i64, scratch_operands = 1 : i64, tpu.core_type = #tpu.core_type<tc>, window_params = [{transform_indices = @transform_0, window_bounds = array<i64: 1, 1, 32, 102>}, {transform_indices = @transform_1, window_bounds = array<i64: 1, 16, 288>}, {pipeline_mode = #tpu.pipeline_mode<synchronous>, transform_indices = @transform_2, window_bounds = array<i64: 16, 1>}, {transform_indices = @transform_3, window_bounds = array<i64: 1, 1, 16, 80>}, {transform_indices = @transform_4, window_bounds = array<i64: 1, 1, 16, 80>}]} {
    %c0_i32 = arith.constant 0 : i32
    %0 = arith.cmpi eq, %arg2, %c0_i32 : i32
    %1 = arith.extui %0 : i1 to i32
    %c0_i32_0 = arith.constant 0 : i32
    %2 = arith.cmpi ne, %1, %c0_i32_0 : i32
    scf.if %2 {
      %cst_12 = arith.constant 0.000000e+00 : f32
      %25 = vector.broadcast %cst_12 : f32 to vector<16x80xf32>
      %c0_13 = arith.constant 0 : index
      %c0_14 = arith.constant 0 : index
      %26 = vector.load %arg8[%c0_13, %c0_14] : memref<16x80xf32, #tpu.memory_space<vmem>>, vector<16x80xf32>
      tpu.vector_store %arg8[%c0_13, %c0_14], %25 {strides = array<i32>} : memref<16x80xf32, #tpu.memory_space<vmem>>, vector<16x80xf32>,
    } else {
    }
    %c0 = arith.constant 0 : index
    %c0_1 = arith.constant 0 : index
    %c0_2 = arith.constant 0 : index
    %c0_3 = arith.constant 0 : index
    %3 = vector.load %arg3[%c0, %c0_1, %c0_2, %c0_3] : memref<1x1x32x102xf32, #tpu.memory_space<vmem>>, vector<1x1x32x102xf32>
    %4 = vector.shape_cast %3 : vector<1x1x32x102xf32> to vector<32x102xf32>
    %5 = vector.extract_strided_slice %4 {offsets = [0, 0], sizes = [32, 80], strides = [1, 1]} : vector<32x102xf32> to vector<32x80xf32>
    %6 = vector.extract_strided_slice %4 {offsets = [0, 1], sizes = [32, 80], strides = [1, 1]} : vector<32x102xf32> to vector<32x80xf32>
    %7 = vector.extract_strided_slice %4 {offsets = [0, 2], sizes = [32, 80], strides = [1, 1]} : vector<32x102xf32> to vector<32x80xf32>
    %8 = vector.extract_strided_slice %4 {offsets = [0, 10], sizes = [32, 80], strides = [1, 1]} : vector<32x102xf32> to vector<32x80xf32>
    %9 = vector.extract_strided_slice %4 {offsets = [0, 11], sizes = [32, 80], strides = [1, 1]} : vector<32x102xf32> to vector<32x80xf32>
    %10 = vector.extract_strided_slice %4 {offsets = [0, 12], sizes = [32, 80], strides = [1, 1]} : vector<32x102xf32> to vector<32x80xf32>
    %11 = vector.extract_strided_slice %4 {offsets = [0, 20], sizes = [32, 80], strides = [1, 1]} : vector<32x102xf32> to vector<32x80xf32>
    %12 = vector.extract_strided_slice %4 {offsets = [0, 21], sizes = [32, 80], strides = [1, 1]} : vector<32x102xf32> to vector<32x80xf32>
    %13 = vector.extract_strided_slice %4 {offsets = [0, 22], sizes = [32, 80], strides = [1, 1]} : vector<32x102xf32> to vector<32x80xf32>
    %14 = tpu.concatenate %5, %6, %7, %8, %9, %10, %11, %12, %13 in 0 : vector<32x80xf32>, vector<32x80xf32>, vector<32x80xf32>, vector<32x80xf32>, vector<32x80xf32>, vector<32x80xf32>, vector<32x80xf32>, vector<32x80xf32>, vector<32x80xf32> -> vector<288x80xf32>
    %c0_4 = arith.constant 0 : index
    %c0_5 = arith.constant 0 : index
    %15 = vector.load %arg8[%c0_4, %c0_5] : memref<16x80xf32, #tpu.memory_space<vmem>>, vector<16x80xf32>
    %c0_6 = arith.constant 0 : index
    %c0_7 = arith.constant 0 : index
    %c0_8 = arith.constant 0 : index
    %16 = vector.load %arg4[%c0_6, %c0_7, %c0_8] : memref<1x16x288xbf16, #tpu.memory_space<vmem>>, vector<1x16x288xbf16>
    %17 = vector.shape_cast %16 : vector<1x16x288xbf16> to vector<16x288xbf16>
    %18 = arith.truncf %14 : vector<288x80xf32> to vector<288x80xbf16>
    %cst = arith.constant dense<0.000000e+00> : vector<16x80xf32>
    %19 = tpu.matmul %17, %18, %cst {dimension_numbers = #tpu.dot_dimension_numbers<[1], [0], [0], [1], [0, 0, 1, 1], [], []>} : vector<16x288xbf16>, vector<288x80xbf16>, vector<16x80xf32> -> vector<16x80xf32>
    %20 = arith.addf %15, %19 : vector<16x80xf32>
    %c0_9 = arith.constant 0 : index
    %c0_10 = arith.constant 0 : index
    %21 = vector.load %arg8[%c0_9, %c0_10] : memref<16x80xf32, #tpu.memory_space<vmem>>, vector<16x80xf32>
    tpu.vector_store %arg8[%c0_9, %c0_10], %20 {strides = array<i32>} : memref<16x80xf32, #tpu.memory_space<vmem>>, vector<16x80xf32>,
    %c2_i32 = arith.constant 2 : i32
    %22 = arith.cmpi eq, %arg2, %c2_i32 : i32
    %23 = arith.extui %22 : i1 to i32
    %c0_i32_11 = arith.constant 0 : i32
    %24 = arith.cmpi ne, %23, %c0_i32_11 : i32
    scf.if %24 {
      %c0_12 = arith.constant 0 : index
      %c0_13 = arith.constant 0 : index
      %25 = vector.load %arg8[%c0_12, %c0_13] : memref<16x80xf32, #tpu.memory_space<vmem>>, vector<16x80xf32>
      %c0_14 = arith.constant 0 : index
      %c0_15 = arith.constant 0 : index
      %26 = vector.load %arg5[%c0_14, %c0_15] : memref<16x1xf32, #tpu.memory_space<vmem>>, vector<16x1xf32>
      %27 = vector.broadcast %26 : vector<16x1xf32> to vector<16x80xf32>
      %28 = arith.addf %25, %27 : vector<16x80xf32>
      %c0_16 = arith.constant 0 : index
      %c0_17 = arith.constant 0 : index
      %c0_18 = arith.constant 0 : index
      %c0_19 = arith.constant 0 : index
      %29 = vector.load %arg6[%c0_16, %c0_17, %c0_18, %c0_19] : memref<1x1x16x80xf32, #tpu.memory_space<vmem>>, vector<1x1x16x80xf32>
      %30 = vector.shape_cast %29 : vector<1x1x16x80xf32> to vector<16x80xf32>
      %31 = arith.addf %28, %30 : vector<16x80xf32>
      %c0_20 = arith.constant 0 : index
      %c0_21 = arith.constant 0 : index
      %c0_22 = arith.constant 0 : index
      %c0_23 = arith.constant 0 : index
      %32 = vector.load %arg7[%c0_20, %c0_21, %c0_22, %c0_23] : memref<1x1x16x80xf32, #tpu.memory_space<vmem>>, vector<1x1x16x80xf32>
      %33 = vector.shape_cast %32 : vector<1x1x16x80xf32> to vector<16x80xf32>
      %34 = vector.shape_cast %31 : vector<16x80xf32> to vector<1x1x16x80xf32>
      tpu.vector_store %arg7[%c0_20, %c0_21, %c0_22, %c0_23], %34 {strides = array<i32>} : memref<1x1x16x80xf32, #tpu.memory_space<vmem>>, vector<1x1x16x80xf32>,
    } else {
    }
    return
  }
  func.func @transform_0(%arg0: i32, %arg1: i32, %arg2: i32) -> (i32, i32, i32, i32) {
    %0 = arith.addi %arg1, %arg2 : i32
    %c0_i32 = arith.constant 0 : i32
    %c0_i32_0 = arith.constant 0 : i32
    %c0_i32_1 = arith.constant 0 : i32
    return %arg0, %0, %c0_i32, %c0_i32_0 : i32, i32, i32, i32
  }
  func.func @transform_1(%arg0: i32, %arg1: i32, %arg2: i32) -> (i32, i32, i32) {
    %c0_i32 = arith.constant 0 : i32
    %c0_i32_0 = arith.constant 0 : i32
    %c0_i32_1 = arith.constant 0 : i32
    return %arg2, %c0_i32, %c0_i32_0 : i32, i32, i32
  }
  func.func @transform_2(%arg0: i32, %arg1: i32, %arg2: i32) -> (i32, i32) {
    %c0_i32 = arith.constant 0 : i32
    %c0_i32_0 = arith.constant 0 : i32
    %c0_i32_1 = arith.constant 0 : i32
    return %c0_i32, %c0_i32_0 : i32, i32
  }
  func.func @transform_3(%arg0: i32, %arg1: i32, %arg2: i32) -> (i32, i32, i32, i32) {
    %c0_i32 = arith.constant 0 : i32
    %c0_i32_0 = arith.constant 0 : i32
    %c0_i32_1 = arith.constant 0 : i32
    return %arg0, %arg1, %c0_i32, %c0_i32_0 : i32, i32, i32, i32
  }
  func.func @transform_4(%arg0: i32, %arg1: i32, %arg2: i32) -> (i32, i32, i32, i32) {
    %c0_i32 = arith.constant 0 : i32
    %c0_i32_0 = arith.constant 0 : i32
    %c0_i32_1 = arith.constant 0 : i32
    return %arg0, %arg1, %c0_i32, %c0_i32_0 : i32, i32, i32, i32
  }
}

</mosaic_0001>

<llo_original>
// kernel: convnext_block_forward.3
$region0: #{convnext_block_forward.3}
  #allocation0 [shape = 'u32[]', space=smem, size = 0x4, offset = 0x4, fixed_abs, tag = 'smem constant byte address 0x4 - core index']
  #allocation1 [shape = 'u32[144,128]{1,0:T(1,128)}', space=vmem, size = 0x12000, scoped, tag = 'internal scratch']
  #allocation2 [shape = 'f32[16,112]{1,0:T(8,128)}', space=vmem, size = 0x2000, scoped, tag = 'scratch operand']
  %s0 = inlined_call_operand.vmem [shape: f32[2,14,16,202], index: 0, kind: input, shape index: {}]
  %s1 = inlined_call_operand.vmem [shape: f32[7,49,16,1], index: 1, kind: input, shape index: {}]
  %s2 = inlined_call_operand.vmem [shape: f32[2,16,1], index: 2, kind: input, shape index: {}]
  %s3 = inlined_call_operand.vmem [shape: f32[2,8,16,112], index: 3, kind: output, shape index: {}]
  %s4 = sld [smem:[#allocation0]]
  $region53: #{convnext_block_forward.3} parent=0
    _
  %s6 = ssub.s32 1, %s4
  %s7 = scalar_select 0, %s6, %s4
  loop: start=0, step=1, limit=114
  $region2: #{convnext_block_forward.3} parent=0 // loop_pre_header
    _
  $region3: #{convnext_block_forward.3} parent=0 // loop_header
    %s9 = sphi 0, %s13
    %p10 = scmp.ge.s32.totalorder %s9, 114
    %s16 = sphi 0, %s35
    %s17 = sphi 0, %s31
    %s18 = sphi 0, %s27
    %s19 = sphi 0, %s16
    %s20 = sphi 0, %s17
    %s21 = sphi 0, %s18
    %s22 = sphi 0, %s19
    %s23 = sphi 0, %s20
    %s24 = sphi 0, %s21
    %s42 = sphi 0, %s44
    %s45 = sphi 0, %s42
    %s46 = sphi 0, %s45
    %s62 = sphi 0, %s46
    %s68 = sphi 0, %s70
    %s71 = sphi 0, %s68
    %s72 = sphi 0, %s71
    %s88 = sphi 0, %s72
    %s94 = sphi 0, %s96
    %s97 = sphi 0, %s94
    %s98 = sphi 0, %s97
    %s114 = sphi 0, %s98
    %s122 = sphi 0, %s124
    %s125 = sphi 0, %s122
    %s126 = sphi 0, %s125
    %s142 = sphi 0, %s126
  $region4: #{convnext_block_forward.3} parent=0 // loop_header_branch
    %12 = sbr.rel (%p10) target = $region8
  $region5: #{convnext_block_forward.3} parent=0 // loop_body
    %s14 = ssub.s32 %s9, 1
    %s15 = ssub.s32 %s9, 2
    %s25 = sadd.s32 1, %s18
    %p26 = scmp.ge.s32.totalorder %s25, 7
    %s27 = scalar_select %p26, 0, %s25
    %s28 = sadd.s32 1, %s17
    %s29 = scalar_select %p26, %s28, %s17
    %p30 = scmp.ge.s32.totalorder %s29, 8
    %s31 = scalar_select %p30, 0, %s29
    %s32 = sadd.s32 1, %s16
    %s33 = scalar_select %p30, %s32, %s16
    %p34 = scmp.ge.s32.totalorder %s33, 2
    %s35 = scalar_select %p34, 0, %s33
    %s36 = sadd.s32 %s17, %s18
    %s37 = sadd.s32 %s31, %s27
    %s38 = ssub.s32 %s16, %s35
    %s39 = ssub.s32 %s36, %s37
    %s40 = sor.u32 %s38, %s39
    %p41 = scmp.eq.s32.totalorder %s40, 0
    %s43 = sadd.s32 %s42, 1
    %s44 = scalar_select %p41, %s42, %s43
    %p47 = pneg %p41
    %p48 = scmp.eq.s32.totalorder %s9, 111
    %p49 = por %p47, %p48
    %p50 = scmp.ne.s32.totalorder %s42, %s45
    %p51 = scmp.eq.s32.totalorder %s9, 0
    %p52 = por %p50, %p51
    %p53 = scmp.ne.s32.totalorder %s42, %s45
    %p54 = scmp.eq.s32.totalorder %s14, 111
    %p55 = por %p53, %p54
    %p56 = scmp.ne.s32.totalorder %s45, %s46
    %p57 = scmp.eq.s32.totalorder %s14, 0
    %p58 = por %p56, %p57
    %p59 = scmp.ne.s32.totalorder %s45, %s46
    %p60 = scmp.eq.s32.totalorder %s15, 111
    %p61 = por %p59, %p60
    %p63 = scmp.ne.s32.totalorder %s46, %s62
    %p64 = scmp.eq.s32.totalorder %s15, 0
    %p65 = por %p63, %p64
    %s66 = ssub.s32 %s18, %s27
    %p67 = scmp.eq.s32.totalorder %s66, 0
    %s69 = sadd.s32 %s68, 1
    %s70 = scalar_select %p67, %s68, %s69
    %p73 = pneg %p67
    %p74 = scmp.eq.s32.totalorder %s9, 111
    %p75 = por %p73, %p74
    %p76 = scmp.ne.s32.totalorder %s68, %s71
    %p77 = scmp.eq.s32.totalorder %s9, 0
    %p78 = por %p76, %p77
    %p79 = scmp.ne.s32.totalorder %s68, %s71
    %p80 = scmp.eq.s32.totalorder %s14, 111
    %p81 = por %p79, %p80
    %p82 = scmp.ne.s32.totalorder %s71, %s72
    %p83 = scmp.eq.s32.totalorder %s14, 0
    %p84 = por %p82, %p83
    %p85 = scmp.ne.s32.totalorder %s71, %s72
    %p86 = scmp.eq.s32.totalorder %s15, 111
    %p87 = por %p85, %p86
    %p89 = scmp.ne.s32.totalorder %s72, %s88
    %p90 = scmp.eq.s32.totalorder %s15, 0
    %p91 = por %p89, %p90
    %s92 = ssub.s32 %s16, %s35
    %p93 = scmp.eq.s32.totalorder %s92, 0
    %s95 = sadd.s32 %s94, 1
    %s96 = scalar_select %p93, %s94, %s95
    %p99 = pneg %p93
    %p100 = scmp.eq.s32.totalorder %s9, 111
    %p101 = por %p99, %p100
    %p102 = scmp.ne.s32.totalorder %s94, %s97
    %p103 = scmp.eq.s32.totalorder %s9, 0
    %p104 = por %p102, %p103
    %p105 = scmp.ne.s32.totalorder %s94, %s97
    %p106 = scmp.eq.s32.totalorder %s14, 111
    %p107 = por %p105, %p106
    %p108 = scmp.ne.s32.totalorder %s97, %s98
    %p109 = scmp.eq.s32.totalorder %s14, 0
    %p110 = por %p108, %p109
    %p111 = scmp.ne.s32.totalorder %s97, %s98
    %p112 = scmp.eq.s32.totalorder %s15, 111
    %p113 = por %p111, %p112
    %p115 = scmp.ne.s32.totalorder %s98, %s114
    %p116 = scmp.eq.s32.totalorder %s15, 0
    %p117 = por %p115, %p116
    %s118 = ssub.s32 %s16, %s35
    %s119 = ssub.s32 %s17, %s31
    %s120 = sor.u32 %s118, %s119
    %p121 = scmp.eq.s32.totalorder %s120, 0
    %s123 = sadd.s32 %s122, 1
    %s124 = scalar_select %p121, %s122, %s123
    %p127 = pneg %p121
    %p128 = scmp.eq.s32.totalorder %s9, 111
    %p129 = por %p127, %p128
    %p130 = scmp.ne.s32.totalorder %s122, %s125
    %p131 = scmp.eq.s32.totalorder %s9, 0
    %p132 = por %p130, %p131
    %p133 = scmp.ne.s32.totalorder %s122, %s125
    %p134 = scmp.eq.s32.totalorder %s14, 111
    %p135 = por %p133, %p134
    %p136 = scmp.ne.s32.totalorder %s125, %s126
    %p137 = scmp.eq.s32.totalorder %s14, 0
    %p138 = por %p136, %p137
    %p139 = scmp.ne.s32.totalorder %s125, %s126
    %p140 = scmp.eq.s32.totalorder %s15, 111
    %p141 = por %p139, %p140
    %p143 = scmp.ne.s32.totalorder %s126, %s142
    %p144 = scmp.eq.s32.totalorder %s15, 0
    %p145 = por %p143, %p144
    %p146 = scmp.le.s32.totalorder 1, %s9
    %p147 = scmp.lt.s32.totalorder %s9, 113
    %p148 = pnand %p146, %p147
    %p149 = pneg %p148
    // Predicated region
    $region9: #{convnext_block_forward.3} parent=5 // pred_check
      _
    $region10: #{convnext_block_forward.3} parent=5 // pred_check_branch
      %151 = sbr.rel (%p148) target = $region12
    $region11: #{convnext_block_forward.3} parent=5 // pred_region
      %s152 = ssub.s32 %s9, 1
    $region12: #{convnext_block_forward.3} parent=5 // pred_fallthru
      _
    %p153 = scmp.lt.s32.totalorder %s9, 112
    // Predicated region
    $region13: #{convnext_block_forward.3} parent=5 // pred_check
      %p154 = pneg %p153
    $region14: #{convnext_block_forward.3} parent=5 // pred_check_branch
      %156 = sbr.rel (%p154) target = $region16
    $region15: #{convnext_block_forward.3} parent=5 // pred_region
      // Predicated region
      $region17: #{convnext_block_forward.3} parent=15 // pred_check
        %p157 = pneg %p52
      $region18: #{convnext_block_forward.3} parent=15 // pred_check_branch
        %159 = sbr.rel (%p157) target = $region20
      $region19: #{convnext_block_forward.3} parent=15 // pred_region
        %s160 = sadd.s32 %s17, %s18
        %p161 = scmp.lt.s32.totalorder %s16, 1
        %s162 = scalar_select %p161, %s16, 1
        %p163 = scmp.lt.s32.totalorder %s160, 13
        %s164 = scalar_select %p163, %s160, 13
        %s165 = smul.addr %s164, 4
        %s166 = smul.addr %s162, 56
        %s167 = sadd.s32 %s165, %s166
        %s168 = smul.addr %s167, 8
        %s169 = scalar_lea.vmem %s0, %s168
        %s170 = sadd.s32 %s17, %s18
      $region20: #{convnext_block_forward.3} parent=15 // pred_fallthru
        _
      // Predicated region
      $region21: #{convnext_block_forward.3} parent=15 // pred_check
        %p171 = pneg %p78
      $region22: #{convnext_block_forward.3} parent=15 // pred_check_branch
        %173 = sbr.rel (%p171) target = $region24
      $region23: #{convnext_block_forward.3} parent=15 // pred_region
        %p174 = scmp.lt.s32.totalorder %s18, 6
        %s175 = scalar_select %p174, %s18, 6
        %s176 = smul.addr %s175, 98
        %s177 = smul.addr %s176, 8
        %s178 = scalar_lea.vmem %s1, %s177
      $region24: #{convnext_block_forward.3} parent=15 // pred_fallthru
        _
      // Predicated region
      $region25: #{convnext_block_forward.3} parent=15 // pred_check
        %p179 = pneg %p104
      $region26: #{convnext_block_forward.3} parent=15 // pred_check_branch
        %181 = sbr.rel (%p179) target = $region28
      $region27: #{convnext_block_forward.3} parent=15 // pred_region
        %p182 = scmp.lt.s32.totalorder %s16, 1
        %s183 = scalar_select %p182, %s16, 1
        %s184 = smul.addr %s183, 2
        %s185 = smul.addr %s184, 8
        %s186 = scalar_lea.vmem %s2, %s185
      $region28: #{convnext_block_forward.3} parent=15 // pred_fallthru
        _
    $region16: #{convnext_block_forward.3} parent=5 // pred_fallthru
      _
    %p187 = scmp.le.s32.totalorder 1, %s9
    %p188 = scmp.lt.s32.totalorder %s9, 113
    %p189 = pnand %p187, %p188
    %p190 = pneg %p189
    // Predicated region
    $region29: #{convnext_block_forward.3} parent=5 // pred_check
      _
    $region30: #{convnext_block_forward.3} parent=5 // pred_check_branch
      %192 = sbr.rel (%p189) target = $region32
    $region31: #{convnext_block_forward.3} parent=5 // pred_region
      %s193 = ssub.s32 %s9, 1
      %s194 = sadd.s32 %s20, %s21
      %p195 = scmp.lt.s32.totalorder %s19, 1
      %s196 = scalar_select %p195, %s19, 1
      %p197 = scmp.lt.s32.totalorder %s194, 13
      %s198 = scalar_select %p197, %s194, 13
      %s199 = smul.addr %s198, 4
      %s200 = smul.addr %s196, 56
      %s201 = sadd.s32 %s199, %s200
      %s202 = smul.addr %s201, 8
      %s203 = scalar_lea.vmem %s0, %s202
      %p204 = pneg %p58
      %p205 = pneg %p55
      %p206 = scmp.lt.s32.totalorder %s21, 6
      %s207 = scalar_select %p206, %s21, 6
      %s208 = smul.addr %s207, 98
      %s209 = smul.addr %s208, 8
      %s210 = scalar_lea.vmem %s1, %s209
      %p211 = pneg %p84
      %p212 = pneg %p81
      %p213 = scmp.lt.s32.totalorder %s19, 1
      %s214 = scalar_select %p213, %s19, 1
      %s215 = smul.addr %s214, 2
      %s216 = smul.addr %s215, 8
      %s217 = scalar_lea.vmem %s2, %s216
      %p218 = pneg %p110
      %p219 = pneg %p107
      %p220 = pneg %p138
      %p221 = pneg %p135
      %p222 = scmp.lt.s32.totalorder %s19, 1
      %s223 = scalar_select %p222, %s19, 1
      %p224 = scmp.lt.s32.totalorder %s20, 7
      %s225 = scalar_select %p224, %s20, 7
      %s226 = smul.addr %s225, 2
      %s227 = smul.addr %s223, 16
      %s228 = sadd.s32 %s226, %s227
      %s229 = smul.addr %s228, 8
      %s230 = scalar_lea.vmem %s3, %s229
      %s231 = sadd.s32 %s20, %s21
      %p232 = scmp.lt.s32.totalorder %s19, 1
      %s233 = scalar_select %p232, %s19, 1
      %p234 = scmp.lt.s32.totalorder %s231, 13
      %s235 = scalar_select %p234, %s231, 13
      %s236 = smul.addr %s235, 4
      %s237 = smul.addr %s233, 56
      %s238 = sadd.s32 %s236, %s237
      %s239 = smul.addr %s238, 8
      %s240 = scalar_lea.vmem %s0, %s239
      %s241 = sadd.s32 %s20, %s21
      %p242 = scmp.lt.s32.totalorder %s21, 6
      %s243 = scalar_select %p242, %s21, 6
      %s244 = smul.addr %s243, 98
      %s245 = smul.addr %s244, 8
      %s246 = scalar_lea.vmem %s1, %s245
      %p247 = scmp.lt.s32.totalorder %s19, 1
      %s248 = scalar_select %p247, %s19, 1
      %s249 = smul.addr %s248, 2
      %s250 = smul.addr %s249, 8
      %s251 = scalar_lea.vmem %s2, %s250
      %p252 = scmp.lt.s32.totalorder %s19, 1
      %s253 = scalar_select %p252, %s19, 1
      %p254 = scmp.lt.s32.totalorder %s20, 7
      %s255 = scalar_select %p254, %s20, 7
      %s256 = smul.addr %s255, 2
      %s257 = smul.addr %s253, 16
      %s258 = sadd.s32 %s256, %s257
      %s259 = smul.addr %s258, 8
      %s260 = scalar_lea.vmem %s3, %s259
      %p261 = scmp.eq.s32.totalorder %s21, 0
      // Predicated region
      $region33: #{convnext_block_forward.3} parent=31 // pred_check
        %p262 = pneg %p261
      $region34: #{convnext_block_forward.3} parent=31 // pred_check_branch
        %264 = sbr.rel (%p262) target = $region36
      $region35: #{convnext_block_forward.3} parent=31 // pred_region
        %vm265 = vcmask 916480
        %266 = vst.msk [vmem:[#allocation2] sm:$0xff] %vm265, 0.0
        %267 = vst.msk [vmem:[#allocation2 + $0x8] sm:$0xff] %vm265, 0.0
      $region36: #{convnext_block_forward.3} parent=31 // pred_fallthru
        _
      %v268 = vld [vmem:[%s240] sm:$0xff]
      %v269 = vld [vmem:[%s240 + $0x8] sm:$0xff]
      %v270 = vld [vmem:[%s240 + $0x10] sm:$0xff]
      %v271 = vld [vmem:[%s240 + $0x18] sm:$0xff]
      %v272 = vld [vmem:[#allocation2] sm:$0xff]
      %v273 = vld [vmem:[#allocation2 + $0x8] sm:$0xff]
      %v274 = vld [vmem:[%s246] sm:$0xff]
      %v275 = vld [vmem:[%s246 + $0x8] sm:$0xff]
      %277 = vset.pattern.permute.xlu0 0
      %278 = vperm.xlu0 %277, %v274
      %v279 = vpop.permute.xlu0 %278
      %282 = vset.pattern.permute.xlu0 0
      %283 = vperm.xlu0 %282, %v275
      %v284 = vpop.permute.xlu0 %283
      %v286 = vmul.f32 %v268, %v279
      %v287 = vmul.f32 %v270, %v284
      %v288 = vadd.f32 %v272, %v286
      %v289 = vadd.f32 %v273, %v287
      %s290 = scalar_lea.vmem %s246, 16
      %v291 = vld [vmem:[%s290] sm:$0xff]
      %v292 = vld [vmem:[%s290 + $0x8] sm:$0xff]
      %294 = vset.pattern.permute.xlu0 0
      %295 = vperm.xlu0 %294, %v291
      %v296 = vpop.permute.xlu0 %295
      %299 = vset.pattern.permute.xlu0 0
      %300 = vperm.xlu0 %299, %v292
      %v301 = vpop.permute.xlu0 %300
      %v303 = vmul.f32 %v268, %v296
      %v304 = vmul.f32 %v270, %v301
      %307 = vrot.lane.b32.xlu0 %v303, 127
      %v308 = vpop.permute.xlu0 %307
      %309 = vrot.lane.b32.xlu0 %v304, 127
      %v310 = vpop.permute.xlu0 %309
      %v313 = vadd.f32 %v288, %v308
      %v314 = vadd.f32 %v289, %v310
      %s315 = scalar_lea.vmem %s246, 32
      %v316 = vld [vmem:[%s315] sm:$0xff]
      %v317 = vld [vmem:[%s315 + $0x8] sm:$0xff]
      %319 = vset.pattern.permute.xlu0 0
      %320 = vperm.xlu0 %319, %v316
      %v321 = vpop.permute.xlu0 %320
      %324 = vset.pattern.permute.xlu0 0
      %325 = vperm.xlu0 %324, %v317
      %v326 = vpop.permute.xlu0 %325
      %v328 = vmul.f32 %v268, %v321
      %v329 = vmul.f32 %v270, %v326
      %332 = vrot.lane.b32.xlu0 %v328, 126
      %v333 = vpop.permute.xlu0 %332
      %334 = vrot.lane.b32.xlu0 %v329, 126
      %v335 = vpop.permute.xlu0 %334
      %v338 = vadd.f32 %v313, %v333
      %v339 = vadd.f32 %v314, %v335
      %s340 = scalar_lea.vmem %s246, 48
      %v341 = vld [vmem:[%s340] sm:$0xff]
      %v342 = vld [vmem:[%s340 + $0x8] sm:$0xff]
      %344 = vset.pattern.permute.xlu0 0
      %345 = vperm.xlu0 %344, %v341
      %v346 = vpop.permute.xlu0 %345
      %349 = vset.pattern.permute.xlu0 0
      %350 = vperm.xlu0 %349, %v342
      %v351 = vpop.permute.xlu0 %350
      %v353 = vmul.f32 %v268, %v346
      %v354 = vmul.f32 %v270, %v351
      %357 = vrot.lane.b32.xlu0 %v353, 125
      %v358 = vpop.permute.xlu0 %357
      %359 = vrot.lane.b32.xlu0 %v354, 125
      %v360 = vpop.permute.xlu0 %359
      %v363 = vadd.f32 %v338, %v358
      %v364 = vadd.f32 %v339, %v360
      %s365 = scalar_lea.vmem %s246, 64
      %v366 = vld [vmem:[%s365] sm:$0xff]
      %v367 = vld [vmem:[%s365 + $0x8] sm:$0xff]
      %369 = vset.pattern.permute.xlu0 0
      %370 = vperm.xlu0 %369, %v366
      %v371 = vpop.permute.xlu0 %370
      %374 = vset.pattern.permute.xlu0 0
      %375 = vperm.xlu0 %374, %v367
      %v376 = vpop.permute.xlu0 %375
      %v378 = vmul.f32 %v268, %v371
      %v379 = vmul.f32 %v270, %v376
      %382 = vrot.lane.b32.xlu0 %v378, 124
      %v383 = vpop.permute.xlu0 %382
      %384 = vrot.lane.b32.xlu0 %v379, 124
      %v385 = vpop.permute.xlu0 %384
      %v388 = vadd.f32 %v363, %v383
      %v389 = vadd.f32 %v364, %v385
      %s390 = scalar_lea.vmem %s246, 80
      %v391 = vld [vmem:[%s390] sm:$0xff]
      %v392 = vld [vmem:[%s390 + $0x8] sm:$0xff]
      %394 = vset.pattern.permute.xlu0 0
      %395 = vperm.xlu0 %394, %v391
      %v396 = vpop.permute.xlu0 %395
      %399 = vset.pattern.permute.xlu0 0
      %400 = vperm.xlu0 %399, %v392
      %v401 = vpop.permute.xlu0 %400
      %v403 = vmul.f32 %v268, %v396
      %v404 = vmul.f32 %v270, %v401
      %407 = vrot.lane.b32.xlu0 %v403, 123
      %v408 = vpop.permute.xlu0 %407
      %409 = vrot.lane.b32.xlu0 %v404, 123
      %v410 = vpop.permute.xlu0 %409
      %v413 = vadd.f32 %v388, %v408
      %v414 = vadd.f32 %v389, %v410
      %s415 = scalar_lea.vmem %s246, 96
      %v416 = vld [vmem:[%s415] sm:$0xff]
      %v417 = vld [vmem:[%s415 + $0x8] sm:$0xff]
      %419 = vset.pattern.permute.xlu0 0
      %420 = vperm.xlu0 %419, %v416
      %v421 = vpop.permute.xlu0 %420
      %424 = vset.pattern.permute.xlu0 0
      %425 = vperm.xlu0 %424, %v417
      %v426 = vpop.permute.xlu0 %425
      %v428 = vmul.f32 %v268, %v421
      %v429 = vmul.f32 %v270, %v426
      %432 = vrot.lane.b32.xlu0 %v428, 122
      %v433 = vpop.permute.xlu0 %432
      %434 = vrot.lane.b32.xlu0 %v429, 122
      %v435 = vpop.permute.xlu0 %434
      %v438 = vadd.f32 %v413, %v433
      %v439 = vadd.f32 %v414, %v435
      %s440 = scalar_lea.vmem %s246, 112
      %v441 = vld [vmem:[%s440] sm:$0xff]
      %v442 = vld [vmem:[%s440 + $0x8] sm:$0xff]
      %444 = vset.pattern.permute.xlu0 0
      %445 = vperm.xlu0 %444, %v441
      %v446 = vpop.permute.xlu0 %445
      %449 = vset.pattern.permute.xlu0 0
      %450 = vperm.xlu0 %449, %v442
      %v451 = vpop.permute.xlu0 %450
      %v453 = vmul.f32 %v268, %v446
      %v454 = vmul.f32 %v270, %v451
      %457 = vrot.lane.b32.xlu0 %v453, 114
      %v458 = vpop.permute.xlu0 %457
      %459 = vrot.lane.b32.xlu0 %v454, 114
      %v460 = vpop.permute.xlu0 %459
      %v463 = vadd.f32 %v438, %v458
      %v464 = vadd.f32 %v439, %v460
      %s465 = scalar_lea.vmem %s246, 128
      %v466 = vld [vmem:[%s465] sm:$0xff]
      %v467 = vld [vmem:[%s465 + $0x8] sm:$0xff]
      %469 = vset.pattern.permute.xlu0 0
      %470 = vperm.xlu0 %469, %v466
      %v471 = vpop.permute.xlu0 %470
      %474 = vset.pattern.permute.xlu0 0
      %475 = vperm.xlu0 %474, %v467
      %v476 = vpop.permute.xlu0 %475
      %v478 = vmul.f32 %v268, %v471
      %v479 = vmul.f32 %v270, %v476
      %482 = vrot.lane.b32.xlu0 %v478, 113
      %v483 = vpop.permute.xlu0 %482
      %484 = vrot.lane.b32.xlu0 %v479, 113
      %v485 = vpop.permute.xlu0 %484
      %v488 = vadd.f32 %v463, %v483
      %v489 = vadd.f32 %v464, %v485
      %s490 = scalar_lea.vmem %s246, 144
      %v491 = vld [vmem:[%s490] sm:$0xff]
      %v492 = vld [vmem:[%s490 + $0x8] sm:$0xff]
      %494 = vset.pattern.permute.xlu0 0
      %495 = vperm.xlu0 %494, %v491
      %v496 = vpop.permute.xlu0 %495
      %499 = vset.pattern.permute.xlu0 0
      %500 = vperm.xlu0 %499, %v492
      %v501 = vpop.permute.xlu0 %500
      %v503 = vmul.f32 %v268, %v496
      %v504 = vmul.f32 %v270, %v501
      %507 = vrot.lane.b32.xlu0 %v503, 112
      %v508 = vpop.permute.xlu0 %507
      %509 = vrot.lane.b32.xlu0 %v504, 112
      %v510 = vpop.permute.xlu0 %509
      %v513 = vadd.f32 %v488, %v508
      %v514 = vadd.f32 %v489, %v510
      %s515 = scalar_lea.vmem %s246, 160
      %v516 = vld [vmem:[%s515] sm:$0xff]
      %v517 = vld [vmem:[%s515 + $0x8] sm:$0xff]
      %519 = vset.pattern.permute.xlu0 0
      %520 = vperm.xlu0 %519, %v516
      %v521 = vpop.permute.xlu0 %520
      %524 = vset.pattern.permute.xlu0 0
      %525 = vperm.xlu0 %524, %v517
      %v526 = vpop.permute.xlu0 %525
      %v528 = vmul.f32 %v268, %v521
      %v529 = vmul.f32 %v269, %v521
      %v530 = vmul.f32 %v270, %v526
      %v531 = vmul.f32 %v271, %v526
      %536 = vrot.lane.b32.xlu0 %v528, 111
      %v537 = vpop.permute.xlu0 %536
      %538 = vrot.lane.b32.xlu0 %v529, 111
      %v539 = vpop.permute.xlu0 %538
      %540 = vrot.lane.b32.xlu0 %v530, 111
      %v541 = vpop.permute.xlu0 %540
      %542 = vrot.lane.b32.xlu0 %v531, 111
      %v543 = vpop.permute.xlu0 %542
      %vm544 = vcmask 908288
      %v545 = vsel %vm544, %v537, %v539
      %v546 = vsel %vm544, %v541, %v543
      %v549 = vadd.f32 %v513, %v545
      %v550 = vadd.f32 %v514, %v546
      %s551 = scalar_lea.vmem %s246, 176
      %v552 = vld [vmem:[%s551] sm:$0xff]
      %v553 = vld [vmem:[%s551 + $0x8] sm:$0xff]
      %555 = vset.pattern.permute.xlu0 0
      %556 = vperm.xlu0 %555, %v552
      %v557 = vpop.permute.xlu0 %556
      %560 = vset.pattern.permute.xlu0 0
      %561 = vperm.xlu0 %560, %v553
      %v562 = vpop.permute.xlu0 %561
      %v564 = vmul.f32 %v268, %v557
      %v565 = vmul.f32 %v269, %v557
      %v566 = vmul.f32 %v270, %v562
      %v567 = vmul.f32 %v271, %v562
      %572 = vrot.lane.b32.xlu0 %v564, 110
      %v573 = vpop.permute.xlu0 %572
      %574 = vrot.lane.b32.xlu0 %v565, 110
      %v575 = vpop.permute.xlu0 %574
      %576 = vrot.lane.b32.xlu0 %v566, 110
      %v577 = vpop.permute.xlu0 %576
      %578 = vrot.lane.b32.xlu0 %v567, 110
      %v579 = vpop.permute.xlu0 %578
      %vm580 = vcmask 900096
      %v581 = vsel %vm580, %v573, %v575
      %v582 = vsel %vm580, %v577, %v579
      %v585 = vadd.f32 %v549, %v581
      %v586 = vadd.f32 %v550, %v582
      %s587 = scalar_lea.vmem %s246, 192
      %v588 = vld [vmem:[%s587] sm:$0xff]
      %v589 = vld [vmem:[%s587 + $0x8] sm:$0xff]
      %591 = vset.pattern.permute.xlu0 0
      %592 = vperm.xlu0 %591, %v588
      %v593 = vpop.permute.xlu0 %592
      %596 = vset.pattern.permute.xlu0 0
      %597 = vperm.xlu0 %596, %v589
      %v598 = vpop.permute.xlu0 %597
      %v600 = vmul.f32 %v268, %v593
      %v601 = vmul.f32 %v269, %v593
      %v602 = vmul.f32 %v270, %v598
      %v603 = vmul.f32 %v271, %v598
      %608 = vrot.lane.b32.xlu0 %v600, 109
      %v609 = vpop.permute.xlu0 %608
      %610 = vrot.lane.b32.xlu0 %v601, 109
      %v611 = vpop.permute.xlu0 %610
      %612 = vrot.lane.b32.xlu0 %v602, 109
      %v613 = vpop.permute.xlu0 %612
      %614 = vrot.lane.b32.xlu0 %v603, 109
      %v615 = vpop.permute.xlu0 %614
      %vm616 = vcmask 891904
      %v617 = vsel %vm616, %v609, %v611
      %v618 = vsel %vm616, %v613, %v615
      %v621 = vadd.f32 %v585, %v617
      %v622 = vadd.f32 %v586, %v618
      %s623 = scalar_lea.vmem %s246, 208
      %v624 = vld [vmem:[%s623] sm:$0xff]
      %v625 = vld [vmem:[%s623 + $0x8] sm:$0xff]
      %627 = vset.pattern.permute.xlu0 0
      %628 = vperm.xlu0 %627, %v624
      %v629 = vpop.permute.xlu0 %628
      %632 = vset.pattern.permute.xlu0 0
      %633 = vperm.xlu0 %632, %v625
      %v634 = vpop.permute.xlu0 %633
      %v636 = vmul.f32 %v268, %v629
      %v637 = vmul.f32 %v269, %v629
      %v638 = vmul.f32 %v270, %v634
      %v639 = vmul.f32 %v271, %v634
      %644 = vrot.lane.b32.xlu0 %v636, 108
      %v645 = vpop.permute.xlu0 %644
      %646 = vrot.lane.b32.xlu0 %v637, 108
      %v647 = vpop.permute.xlu0 %646
      %648 = vrot.lane.b32.xlu0 %v638, 108
      %v649 = vpop.permute.xlu0 %648
      %650 = vrot.lane.b32.xlu0 %v639, 108
      %v651 = vpop.permute.xlu0 %650
      %vm652 = vcmask 883712
      %v653 = vsel %vm652, %v645, %v647
      %v654 = vsel %vm652, %v649, %v651
      %v657 = vadd.f32 %v621, %v653
      %v658 = vadd.f32 %v622, %v654
      %s659 = scalar_lea.vmem %s246, 224
      %v660 = vld [vmem:[%s659] sm:$0xff]
      %v661 = vld [vmem:[%s659 + $0x8] sm:$0xff]
      %663 = vset.pattern.permute.xlu0 0
      %664 = vperm.xlu0 %663, %v660
      %v665 = vpop.permute.xlu0 %664
      %668 = vset.pattern.permute.xlu0 0
      %669 = vperm.xlu0 %668, %v661
      %v670 = vpop.permute.xlu0 %669
      %v672 = vmul.f32 %v268, %v665
      %v673 = vmul.f32 %v269, %v665
      %v674 = vmul.f32 %v270, %v670
      %v675 = vmul.f32 %v271, %v670
      %680 = vrot.lane.b32.xlu0 %v672, 100
      %v681 = vpop.permute.xlu0 %680
      %682 = vrot.lane.b32.xlu0 %v673, 100
      %v683 = vpop.permute.xlu0 %682
      %684 = vrot.lane.b32.xlu0 %v674, 100
      %v685 = vpop.permute.xlu0 %684
      %686 = vrot.lane.b32.xlu0 %v675, 100
      %v687 = vpop.permute.xlu0 %686
      %vm688 = vcmask 818176
      %v689 = vsel %vm688, %v681, %v683
      %v690 = vsel %vm688, %v685, %v687
      %v693 = vadd.f32 %v657, %v689
      %v694 = vadd.f32 %v658, %v690
      %s695 = scalar_lea.vmem %s246, 240
      %v696 = vld [vmem:[%s695] sm:$0xff]
      %v697 = vld [vmem:[%s695 + $0x8] sm:$0xff]
      %699 = vset.pattern.permute.xlu0 0
      %700 = vperm.xlu0 %699, %v696
      %v701 = vpop.permute.xlu0 %700
      %704 = vset.pattern.permute.xlu0 0
      %705 = vperm.xlu0 %704, %v697
      %v706 = vpop.permute.xlu0 %705
      %v708 = vmul.f32 %v268, %v701
      %v709 = vmul.f32 %v269, %v701
      %v710 = vmul.f32 %v270, %v706
      %v711 = vmul.f32 %v271, %v706
      %716 = vrot.lane.b32.xlu0 %v708, 99
      %v717 = vpop.permute.xlu0 %716
      %718 = vrot.lane.b32.xlu0 %v709, 99
      %v719 = vpop.permute.xlu0 %718
      %720 = vrot.lane.b32.xlu0 %v710, 99
      %v721 = vpop.permute.xlu0 %720
      %722 = vrot.lane.b32.xlu0 %v711, 99
      %v723 = vpop.permute.xlu0 %722
      %vm724 = vcmask 809984
      %v725 = vsel %vm724, %v717, %v719
      %v726 = vsel %vm724, %v721, %v723
      %v729 = vadd.f32 %v693, %v725
      %v730 = vadd.f32 %v694, %v726
      %s731 = scalar_lea.vmem %s246, 256
      %v732 = vld [vmem:[%s731] sm:$0xff]
      %v733 = vld [vmem:[%s731 + $0x8] sm:$0xff]
      %735 = vset.pattern.permute.xlu0 0
      %736 = vperm.xlu0 %735, %v732
      %v737 = vpop.permute.xlu0 %736
      %740 = vset.pattern.permute.xlu0 0
      %741 = vperm.xlu0 %740, %v733
      %v742 = vpop.permute.xlu0 %741
      %v744 = vmul.f32 %v268, %v737
      %v745 = vmul.f32 %v269, %v737
      %v746 = vmul.f32 %v270, %v742
      %v747 = vmul.f32 %v271, %v742
      %752 = vrot.lane.b32.xlu0 %v744, 98
      %v753 = vpop.permute.xlu0 %752
      %754 = vrot.lane.b32.xlu0 %v745, 98
      %v755 = vpop.permute.xlu0 %754
      %756 = vrot.lane.b32.xlu0 %v746, 98
      %v757 = vpop.permute.xlu0 %756
      %758 = vrot.lane.b32.xlu0 %v747, 98
      %v759 = vpop.permute.xlu0 %758
      %vm760 = vcmask 801792
      %v761 = vsel %vm760, %v753, %v755
      %v762 = vsel %vm760, %v757, %v759
      %v765 = vadd.f32 %v729, %v761
      %v766 = vadd.f32 %v730, %v762
      %s767 = scalar_lea.vmem %s246, 272
      %v768 = vld [vmem:[%s767] sm:$0xff]
      %v769 = vld [vmem:[%s767 + $0x8] sm:$0xff]
      %771 = vset.pattern.permute.xlu0 0
      %772 = vperm.xlu0 %771, %v768
      %v773 = vpop.permute.xlu0 %772
      %776 = vset.pattern.permute.xlu0 0
      %777 = vperm.xlu0 %776, %v769
      %v778 = vpop.permute.xlu0 %777
      %v780 = vmul.f32 %v268, %v773
      %v781 = vmul.f32 %v269, %v773
      %v782 = vmul.f32 %v270, %v778
      %v783 = vmul.f32 %v271, %v778
      %788 = vrot.lane.b32.xlu0 %v780, 97
      %v789 = vpop.permute.xlu0 %788
      %790 = vrot.lane.b32.xlu0 %v781, 97
      %v791 = vpop.permute.xlu0 %790
      %792 = vrot.lane.b32.xlu0 %v782, 97
      %v793 = vpop.permute.xlu0 %792
      %794 = vrot.lane.b32.xlu0 %v783, 97
      %v795 = vpop.permute.xlu0 %794
      %vm796 = vcmask 793600
      %v797 = vsel %vm796, %v789, %v791
      %v798 = vsel %vm796, %v793, %v795
      %v801 = vadd.f32 %v765, %v797
      %v802 = vadd.f32 %v766, %v798
      %s803 = scalar_lea.vmem %s246, 288
      %v804 = vld [vmem:[%s803] sm:$0xff]
      %v805 = vld [vmem:[%s803 + $0x8] sm:$0xff]
      %807 = vset.pattern.permute.xlu0 0
      %808 = vperm.xlu0 %807, %v804
      %v809 = vpop.permute.xlu0 %808
      %812 = vset.pattern.permute.xlu0 0
      %813 = vperm.xlu0 %812, %v805
      %v814 = vpop.permute.xlu0 %813
      %v816 = vmul.f32 %v268, %v809
      %v817 = vmul.f32 %v269, %v809
      %v818 = vmul.f32 %v270, %v814
      %v819 = vmul.f32 %v271, %v814
      %824 = vrot.lane.b32.xlu0 %v816, 96
      %v825 = vpop.permute.xlu0 %824
      %826 = vrot.lane.b32.xlu0 %v817, 96
      %v827 = vpop.permute.xlu0 %826
      %828 = vrot.lane.b32.xlu0 %v818, 96
      %v829 = vpop.permute.xlu0 %828
      %830 = vrot.lane.b32.xlu0 %v819, 96
      %v831 = vpop.permute.xlu0 %830
      %vm832 = vcmask 785408
      %v833 = vsel %vm832, %v825, %v827
      %v834 = vsel %vm832, %v829, %v831
      %v837 = vadd.f32 %v801, %v833
      %v838 = vadd.f32 %v802, %v834
      %s839 = scalar_lea.vmem %s246, 304
      %v840 = vld [vmem:[%s839] sm:$0xff]
      %v841 = vld [vmem:[%s839 + $0x8] sm:$0xff]
      %843 = vset.pattern.permute.xlu0 0
      %844 = vperm.xlu0 %843, %v840
      %v845 = vpop.permute.xlu0 %844
      %848 = vset.pattern.permute.xlu0 0
      %849 = vperm.xlu0 %848, %v841
      %v850 = vpop.permute.xlu0 %849
      %v852 = vmul.f32 %v268, %v845
      %v853 = vmul.f32 %v269, %v845
      %v854 = vmul.f32 %v270, %v850
      %v855 = vmul.f32 %v271, %v850
      %860 = vrot.lane.b32.xlu0 %v852, 95
      %v861 = vpop.permute.xlu0 %860
      %862 = vrot.lane.b32.xlu0 %v853, 95
      %v863 = vpop.permute.xlu0 %862
      %864 = vrot.lane.b32.xlu0 %v854, 95
      %v865 = vpop.permute.xlu0 %864
      %866 = vrot.lane.b32.xlu0 %v855, 95
      %v867 = vpop.permute.xlu0 %866
      %vm868 = vcmask 777216
      %v869 = vsel %vm868, %v861, %v863
      %v870 = vsel %vm868, %v865, %v867
      %v873 = vadd.f32 %v837, %v869
      %v874 = vadd.f32 %v838, %v870
      %s875 = scalar_lea.vmem %s246, 320
      %v876 = vld [vmem:[%s875] sm:$0xff]
      %v877 = vld [vmem:[%s875 + $0x8] sm:$0xff]
      %879 = vset.pattern.permute.xlu0 0
      %880 = vperm.xlu0 %879, %v876
      %v881 = vpop.permute.xlu0 %880
      %884 = vset.pattern.permute.xlu0 0
      %885 = vperm.xlu0 %884, %v877
      %v886 = vpop.permute.xlu0 %885
      %v888 = vmul.f32 %v268, %v881
      %v889 = vmul.f32 %v269, %v881
      %v890 = vmul.f32 %v270, %v886
      %v891 = vmul.f32 %v271, %v886
      %896 = vrot.lane.b32.xlu0 %v888, 94
      %v897 = vpop.permute.xlu0 %896
      %898 = vrot.lane.b32.xlu0 %v889, 94
      %v899 = vpop.permute.xlu0 %898
      %900 = vrot.lane.b32.xlu0 %v890, 94
      %v901 = vpop.permute.xlu0 %900
      %902 = vrot.lane.b32.xlu0 %v891, 94
      %v903 = vpop.permute.xlu0 %902
      %vm904 = vcmask 769024
      %v905 = vsel %vm904, %v897, %v899
      %v906 = vsel %vm904, %v901, %v903
      %v909 = vadd.f32 %v873, %v905
      %v910 = vadd.f32 %v874, %v906
      %s911 = scalar_lea.vmem %s246, 336
      %v912 = vld [vmem:[%s911] sm:$0xff]
      %v913 = vld [vmem:[%s911 + $0x8] sm:$0xff]
      %915 = vset.pattern.permute.xlu0 0
      %916 = vperm.xlu0 %915, %v912
      %v917 = vpop.permute.xlu0 %916
      %920 = vset.pattern.permute.xlu0 0
      %921 = vperm.xlu0 %920, %v913
      %v922 = vpop.permute.xlu0 %921
      %v924 = vmul.f32 %v268, %v917
      %v925 = vmul.f32 %v269, %v917
      %v926 = vmul.f32 %v270, %v922
      %v927 = vmul.f32 %v271, %v922
      %932 = vrot.lane.b32.xlu0 %v924, 86
      %v933 = vpop.permute.xlu0 %932
      %934 = vrot.lane.b32.xlu0 %v925, 86
      %v935 = vpop.permute.xlu0 %934
      %936 = vrot.lane.b32.xlu0 %v926, 86
      %v937 = vpop.permute.xlu0 %936
      %938 = vrot.lane.b32.xlu0 %v927, 86
      %v939 = vpop.permute.xlu0 %938
      %vm940 = vcmask 703488
      %v941 = vsel %vm940, %v933, %v935
      %v942 = vsel %vm940, %v937, %v939
      %v945 = vadd.f32 %v909, %v941
      %v946 = vadd.f32 %v910, %v942
      %s947 = scalar_lea.vmem %s246, 352
      %v948 = vld [vmem:[%s947] sm:$0xff]
      %v949 = vld [vmem:[%s947 + $0x8] sm:$0xff]
      %951 = vset.pattern.permute.xlu0 0
      %952 = vperm.xlu0 %951, %v948
      %v953 = vpop.permute.xlu0 %952
      %956 = vset.pattern.permute.xlu0 0
      %957 = vperm.xlu0 %956, %v949
      %v958 = vpop.permute.xlu0 %957
      %v960 = vmul.f32 %v268, %v953
      %v961 = vmul.f32 %v269, %v953
      %v962 = vmul.f32 %v270, %v958
      %v963 = vmul.f32 %v271, %v958
      %968 = vrot.lane.b32.xlu0 %v960, 85
      %v969 = vpop.permute.xlu0 %968
      %970 = vrot.lane.b32.xlu0 %v961, 85
      %v971 = vpop.permute.xlu0 %970
      %972 = vrot.lane.b32.xlu0 %v962, 85
      %v973 = vpop.permute.xlu0 %972
      %974 = vrot.lane.b32.xlu0 %v963, 85
      %v975 = vpop.permute.xlu0 %974
      %vm976 = vcmask 695296
      %v977 = vsel %vm976, %v969, %v971
      %v978 = vsel %vm976, %v973, %v975
      %v981 = vadd.f32 %v945, %v977
      %v982 = vadd.f32 %v946, %v978
      %s983 = scalar_lea.vmem %s246, 368
      %v984 = vld [vmem:[%s983] sm:$0xff]
      %v985 = vld [vmem:[%s983 + $0x8] sm:$0xff]
      %987 = vset.pattern.permute.xlu0 0
      %988 = vperm.xlu0 %987, %v984
      %v989 = vpop.permute.xlu0 %988
      %992 = vset.pattern.permute.xlu0 0
      %993 = vperm.xlu0 %992, %v985
      %v994 = vpop.permute.xlu0 %993
      %v996 = vmul.f32 %v268, %v989
      %v997 = vmul.f32 %v269, %v989
      %v998 = vmul.f32 %v270, %v994
      %v999 = vmul.f32 %v271, %v994
      %1004 = vrot.lane.b32.xlu0 %v996, 84
      %v1005 = vpop.permute.xlu0 %1004
      %1006 = vrot.lane.b32.xlu0 %v997, 84
      %v1007 = vpop.permute.xlu0 %1006
      %1008 = vrot.lane.b32.xlu0 %v998, 84
      %v1009 = vpop.permute.xlu0 %1008
      %1010 = vrot.lane.b32.xlu0 %v999, 84
      %v1011 = vpop.permute.xlu0 %1010
      %vm1012 = vcmask 687104
      %v1013 = vsel %vm1012, %v1005, %v1007
      %v1014 = vsel %vm1012, %v1009, %v1011
      %v1017 = vadd.f32 %v981, %v1013
      %v1018 = vadd.f32 %v982, %v1014
      %s1019 = scalar_lea.vmem %s246, 384
      %v1020 = vld [vmem:[%s1019] sm:$0xff]
      %v1021 = vld [vmem:[%s1019 + $0x8] sm:$0xff]
      %1023 = vset.pattern.permute.xlu0 0
      %1024 = vperm.xlu0 %1023, %v1020
      %v1025 = vpop.permute.xlu0 %1024
      %1028 = vset.pattern.permute.xlu0 0
      %1029 = vperm.xlu0 %1028, %v1021
      %v1030 = vpop.permute.xlu0 %1029
      %v1032 = vmul.f32 %v268, %v1025
      %v1033 = vmul.f32 %v269, %v1025
      %v1034 = vmul.f32 %v270, %v1030
      %v1035 = vmul.f32 %v271, %v1030
      %1040 = vrot.lane.b32.xlu0 %v1032, 83
      %v1041 = vpop.permute.xlu0 %1040
      %1042 = vrot.lane.b32.xlu0 %v1033, 83
      %v1043 = vpop.permute.xlu0 %1042
      %1044 = vrot.lane.b32.xlu0 %v1034, 83
      %v1045 = vpop.permute.xlu0 %1044
      %1046 = vrot.lane.b32.xlu0 %v1035, 83
      %v1047 = vpop.permute.xlu0 %1046
      %vm1048 = vcmask 678912
      %v1049 = vsel %vm1048, %v1041, %v1043
      %v1050 = vsel %vm1048, %v1045, %v1047
      %v1053 = vadd.f32 %v1017, %v1049
      %v1054 = vadd.f32 %v1018, %v1050
      %s1055 = scalar_lea.vmem %s246, 400
      %v1056 = vld [vmem:[%s1055] sm:$0xff]
      %v1057 = vld [vmem:[%s1055 + $0x8] sm:$0xff]
      %1059 = vset.pattern.permute.xlu0 0
      %1060 = vperm.xlu0 %1059, %v1056
      %v1061 = vpop.permute.xlu0 %1060
      %1064 = vset.pattern.permute.xlu0 0
      %1065 = vperm.xlu0 %1064, %v1057
      %v1066 = vpop.permute.xlu0 %1065
      %v1068 = vmul.f32 %v268, %v1061
      %v1069 = vmul.f32 %v269, %v1061
      %v1070 = vmul.f32 %v270, %v1066
      %v1071 = vmul.f32 %v271, %v1066
      %1076 = vrot.lane.b32.xlu0 %v1068, 82
      %v1077 = vpop.permute.xlu0 %1076
      %1078 = vrot.lane.b32.xlu0 %v1069, 82
      %v1079 = vpop.permute.xlu0 %1078
      %1080 = vrot.lane.b32.xlu0 %v1070, 82
      %v1081 = vpop.permute.xlu0 %1080
      %1082 = vrot.lane.b32.xlu0 %v1071, 82
      %v1083 = vpop.permute.xlu0 %1082
      %vm1084 = vcmask 670720
      %v1085 = vsel %vm1084, %v1077, %v1079
      %v1086 = vsel %vm1084, %v1081, %v1083
      %v1089 = vadd.f32 %v1053, %v1085
      %v1090 = vadd.f32 %v1054, %v1086
      %s1091 = scalar_lea.vmem %s246, 416
      %v1092 = vld [vmem:[%s1091] sm:$0xff]
      %v1093 = vld [vmem:[%s1091 + $0x8] sm:$0xff]
      %1095 = vset.pattern.permute.xlu0 0
      %1096 = vperm.xlu0 %1095, %v1092
      %v1097 = vpop.permute.xlu0 %1096
      %1100 = vset.pattern.permute.xlu0 0
      %1101 = vperm.xlu0 %1100, %v1093
      %v1102 = vpop.permute.xlu0 %1101
      %v1104 = vmul.f32 %v268, %v1097
      %v1105 = vmul.f32 %v269, %v1097
      %v1106 = vmul.f32 %v270, %v1102
      %v1107 = vmul.f32 %v271, %v1102
      %1112 = vrot.lane.b32.xlu0 %v1104, 81
      %v1113 = vpop.permute.xlu0 %1112
      %1114 = vrot.lane.b32.xlu0 %v1105, 81
      %v1115 = vpop.permute.xlu0 %1114
      %1116 = vrot.lane.b32.xlu0 %v1106, 81
      %v1117 = vpop.permute.xlu0 %1116
      %1118 = vrot.lane.b32.xlu0 %v1107, 81
      %v1119 = vpop.permute.xlu0 %1118
      %vm1120 = vcmask 662528
      %v1121 = vsel %vm1120, %v1113, %v1115
      %v1122 = vsel %vm1120, %v1117, %v1119
      %v1125 = vadd.f32 %v1089, %v1121
      %v1126 = vadd.f32 %v1090, %v1122
      %s1127 = scalar_lea.vmem %s246, 432
      %v1128 = vld [vmem:[%s1127] sm:$0xff]
      %v1129 = vld [vmem:[%s1127 + $0x8] sm:$0xff]
      %1131 = vset.pattern.permute.xlu0 0
      %1132 = vperm.xlu0 %1131, %v1128
      %v1133 = vpop.permute.xlu0 %1132
      %1136 = vset.pattern.permute.xlu0 0
      %1137 = vperm.xlu0 %1136, %v1129
      %v1138 = vpop.permute.xlu0 %1137
      %v1140 = vmul.f32 %v268, %v1133
      %v1141 = vmul.f32 %v269, %v1133
      %v1142 = vmul.f32 %v270, %v1138
      %v1143 = vmul.f32 %v271, %v1138
      %1148 = vrot.lane.b32.xlu0 %v1140, 80
      %v1149 = vpop.permute.xlu0 %1148
      %1150 = vrot.lane.b32.xlu0 %v1141, 80
      %v1151 = vpop.permute.xlu0 %1150
      %1152 = vrot.lane.b32.xlu0 %v1142, 80
      %v1153 = vpop.permute.xlu0 %1152
      %1154 = vrot.lane.b32.xlu0 %v1143, 80
      %v1155 = vpop.permute.xlu0 %1154
      %vm1156 = vcmask 654336
      %v1157 = vsel %vm1156, %v1149, %v1151
      %v1158 = vsel %vm1156, %v1153, %v1155
      %v1161 = vadd.f32 %v1125, %v1157
      %v1162 = vadd.f32 %v1126, %v1158
      %s1163 = scalar_lea.vmem %s246, 448
      %v1164 = vld [vmem:[%s1163] sm:$0xff]
      %v1165 = vld [vmem:[%s1163 + $0x8] sm:$0xff]
      %1167 = vset.pattern.permute.xlu0 0
      %1168 = vperm.xlu0 %1167, %v1164
      %v1169 = vpop.permute.xlu0 %1168
      %1172 = vset.pattern.permute.xlu0 0
      %1173 = vperm.xlu0 %1172, %v1165
      %v1174 = vpop.permute.xlu0 %1173
      %v1176 = vmul.f32 %v268, %v1169
      %v1177 = vmul.f32 %v269, %v1169
      %v1178 = vmul.f32 %v270, %v1174
      %v1179 = vmul.f32 %v271, %v1174
      %1184 = vrot.lane.b32.xlu0 %v1176, 72
      %v1185 = vpop.permute.xlu0 %1184
      %1186 = vrot.lane.b32.xlu0 %v1177, 72
      %v1187 = vpop.permute.xlu0 %1186
      %1188 = vrot.lane.b32.xlu0 %v1178, 72
      %v1189 = vpop.permute.xlu0 %1188
      %1190 = vrot.lane.b32.xlu0 %v1179, 72
      %v1191 = vpop.permute.xlu0 %1190
      %vm1192 = vcmask 588800
      %v1193 = vsel %vm1192, %v1185, %v1187
      %v1194 = vsel %vm1192, %v1189, %v1191
      %v1197 = vadd.f32 %v1161, %v1193
      %v1198 = vadd.f32 %v1162, %v1194
      %s1199 = scalar_lea.vmem %s246, 464
      %v1200 = vld [vmem:[%s1199] sm:$0xff]
      %v1201 = vld [vmem:[%s1199 + $0x8] sm:$0xff]
      %1203 = vset.pattern.permute.xlu0 0
      %1204 = vperm.xlu0 %1203, %v1200
      %v1205 = vpop.permute.xlu0 %1204
      %1208 = vset.pattern.permute.xlu0 0
      %1209 = vperm.xlu0 %1208, %v1201
      %v1210 = vpop.permute.xlu0 %1209
      %v1212 = vmul.f32 %v268, %v1205
      %v1213 = vmul.f32 %v269, %v1205
      %v1214 = vmul.f32 %v270, %v1210
      %v1215 = vmul.f32 %v271, %v1210
      %1220 = vrot.lane.b32.xlu0 %v1212, 71
      %v1221 = vpop.permute.xlu0 %1220
      %1222 = vrot.lane.b32.xlu0 %v1213, 71
      %v1223 = vpop.permute.xlu0 %1222
      %1224 = vrot.lane.b32.xlu0 %v1214, 71
      %v1225 = vpop.permute.xlu0 %1224
      %1226 = vrot.lane.b32.xlu0 %v1215, 71
      %v1227 = vpop.permute.xlu0 %1226
      %vm1228 = vcmask 580608
      %v1229 = vsel %vm1228, %v1221, %v1223
      %v1230 = vsel %vm1228, %v1225, %v1227
      %v1233 = vadd.f32 %v1197, %v1229
      %v1234 = vadd.f32 %v1198, %v1230
      %s1235 = scalar_lea.vmem %s246, 480
      %v1236 = vld [vmem:[%s1235] sm:$0xff]
      %v1237 = vld [vmem:[%s1235 + $0x8] sm:$0xff]
      %1239 = vset.pattern.permute.xlu0 0
      %1240 = vperm.xlu0 %1239, %v1236
      %v1241 = vpop.permute.xlu0 %1240
      %1244 = vset.pattern.permute.xlu0 0
      %1245 = vperm.xlu0 %1244, %v1237
      %v1246 = vpop.permute.xlu0 %1245
      %v1248 = vmul.f32 %v268, %v1241
      %v1249 = vmul.f32 %v269, %v1241
      %v1250 = vmul.f32 %v270, %v1246
      %v1251 = vmul.f32 %v271, %v1246
      %1256 = vrot.lane.b32.xlu0 %v1248, 70
      %v1257 = vpop.permute.xlu0 %1256
      %1258 = vrot.lane.b32.xlu0 %v1249, 70
      %v1259 = vpop.permute.xlu0 %1258
      %1260 = vrot.lane.b32.xlu0 %v1250, 70
      %v1261 = vpop.permute.xlu0 %1260
      %1262 = vrot.lane.b32.xlu0 %v1251, 70
      %v1263 = vpop.permute.xlu0 %1262
      %vm1264 = vcmask 572416
      %v1265 = vsel %vm1264, %v1257, %v1259
      %v1266 = vsel %vm1264, %v1261, %v1263
      %v1269 = vadd.f32 %v1233, %v1265
      %v1270 = vadd.f32 %v1234, %v1266
      %s1271 = scalar_lea.vmem %s246, 496
      %v1272 = vld [vmem:[%s1271] sm:$0xff]
      %v1273 = vld [vmem:[%s1271 + $0x8] sm:$0xff]
      %1275 = vset.pattern.permute.xlu0 0
      %1276 = vperm.xlu0 %1275, %v1272
      %v1277 = vpop.permute.xlu0 %1276
      %1280 = vset.pattern.permute.xlu0 0
      %1281 = vperm.xlu0 %1280, %v1273
      %v1282 = vpop.permute.xlu0 %1281
      %v1284 = vmul.f32 %v268, %v1277
      %v1285 = vmul.f32 %v269, %v1277
      %v1286 = vmul.f32 %v270, %v1282
      %v1287 = vmul.f32 %v271, %v1282
      %1292 = vrot.lane.b32.xlu0 %v1284, 69
      %v1293 = vpop.permute.xlu0 %1292
      %1294 = vrot.lane.b32.xlu0 %v1285, 69
      %v1295 = vpop.permute.xlu0 %1294
      %1296 = vrot.lane.b32.xlu0 %v1286, 69
      %v1297 = vpop.permute.xlu0 %1296
      %1298 = vrot.lane.b32.xlu0 %v1287, 69
      %v1299 = vpop.permute.xlu0 %1298
      %vm1300 = vcmask 564224
      %v1301 = vsel %vm1300, %v1293, %v1295
      %v1302 = vsel %vm1300, %v1297, %v1299
      %v1305 = vadd.f32 %v1269, %v1301
      %v1306 = vadd.f32 %v1270, %v1302
      %s1307 = scalar_lea.vmem %s246, 512
      %v1308 = vld [vmem:[%s1307] sm:$0xff]
      %v1309 = vld [vmem:[%s1307 + $0x8] sm:$0xff]
      %1311 = vset.pattern.permute.xlu0 0
      %1312 = vperm.xlu0 %1311, %v1308
      %v1313 = vpop.permute.xlu0 %1312
      %1316 = vset.pattern.permute.xlu0 0
      %1317 = vperm.xlu0 %1316, %v1309
      %v1318 = vpop.permute.xlu0 %1317
      %v1320 = vmul.f32 %v268, %v1313
      %v1321 = vmul.f32 %v269, %v1313
      %v1322 = vmul.f32 %v270, %v1318
      %v1323 = vmul.f32 %v271, %v1318
      %1328 = vrot.lane.b32.xlu0 %v1320, 68
      %v1329 = vpop.permute.xlu0 %1328
      %1330 = vrot.lane.b32.xlu0 %v1321, 68
      %v1331 = vpop.permute.xlu0 %1330
      %1332 = vrot.lane.b32.xlu0 %v1322, 68
      %v1333 = vpop.permute.xlu0 %1332
      %1334 = vrot.lane.b32.xlu0 %v1323, 68
      %v1335 = vpop.permute.xlu0 %1334
      %vm1336 = vcmask 556032
      %v1337 = vsel %vm1336, %v1329, %v1331
      %v1338 = vsel %vm1336, %v1333, %v1335
      %v1341 = vadd.f32 %v1305, %v1337
      %v1342 = vadd.f32 %v1306, %v1338
      %s1343 = scalar_lea.vmem %s246, 528
      %v1344 = vld [vmem:[%s1343] sm:$0xff]
      %v1345 = vld [vmem:[%s1343 + $0x8] sm:$0xff]
      %1347 = vset.pattern.permute.xlu0 0
      %1348 = vperm.xlu0 %1347, %v1344
      %v1349 = vpop.permute.xlu0 %1348
      %1352 = vset.pattern.permute.xlu0 0
      %1353 = vperm.xlu0 %1352, %v1345
      %v1354 = vpop.permute.xlu0 %1353
      %v1356 = vmul.f32 %v268, %v1349
      %v1357 = vmul.f32 %v269, %v1349
      %v1358 = vmul.f32 %v270, %v1354
      %v1359 = vmul.f32 %v271, %v1354
      %1364 = vrot.lane.b32.xlu0 %v1356, 67
      %v1365 = vpop.permute.xlu0 %1364
      %1366 = vrot.lane.b32.xlu0 %v1357, 67
      %v1367 = vpop.permute.xlu0 %1366
      %1368 = vrot.lane.b32.xlu0 %v1358, 67
      %v1369 = vpop.permute.xlu0 %1368
      %1370 = vrot.lane.b32.xlu0 %v1359, 67
      %v1371 = vpop.permute.xlu0 %1370
      %vm1372 = vcmask 547840
      %v1373 = vsel %vm1372, %v1365, %v1367
      %v1374 = vsel %vm1372, %v1369, %v1371
      %v1377 = vadd.f32 %v1341, %v1373
      %v1378 = vadd.f32 %v1342, %v1374
      %s1379 = scalar_lea.vmem %s246, 544
      %v1380 = vld [vmem:[%s1379] sm:$0xff]
      %v1381 = vld [vmem:[%s1379 + $0x8] sm:$0xff]
      %1383 = vset.pattern.permute.xlu0 0
      %1384 = vperm.xlu0 %1383, %v1380
      %v1385 = vpop.permute.xlu0 %1384
      %1388 = vset.pattern.permute.xlu0 0
      %1389 = vperm.xlu0 %1388, %v1381
      %v1390 = vpop.permute.xlu0 %1389
      %v1392 = vmul.f32 %v268, %v1385
      %v1393 = vmul.f32 %v269, %v1385
      %v1394 = vmul.f32 %v270, %v1390
      %v1395 = vmul.f32 %v271, %v1390
      %1400 = vrot.lane.b32.xlu0 %v1392, 66
      %v1401 = vpop.permute.xlu0 %1400
      %1402 = vrot.lane.b32.xlu0 %v1393, 66
      %v1403 = vpop.permute.xlu0 %1402
      %1404 = vrot.lane.b32.xlu0 %v1394, 66
      %v1405 = vpop.permute.xlu0 %1404
      %1406 = vrot.lane.b32.xlu0 %v1395, 66
      %v1407 = vpop.permute.xlu0 %1406
      %vm1408 = vcmask 539648
      %v1409 = vsel %vm1408, %v1401, %v1403
      %v1410 = vsel %vm1408, %v1405, %v1407
      %v1413 = vadd.f32 %v1377, %v1409
      %v1414 = vadd.f32 %v1378, %v1410
      %s1415 = scalar_lea.vmem %s246, 560
      %v1416 = vld [vmem:[%s1415] sm:$0xff]
      %v1417 = vld [vmem:[%s1415 + $0x8] sm:$0xff]
      %1419 = vset.pattern.permute.xlu0 0
      %1420 = vperm.xlu0 %1419, %v1416
      %v1421 = vpop.permute.xlu0 %1420
      %1424 = vset.pattern.permute.xlu0 0
      %1425 = vperm.xlu0 %1424, %v1417
      %v1426 = vpop.permute.xlu0 %1425
      %v1428 = vmul.f32 %v268, %v1421
      %v1429 = vmul.f32 %v269, %v1421
      %v1430 = vmul.f32 %v270, %v1426
      %v1431 = vmul.f32 %v271, %v1426
      %1436 = vrot.lane.b32.xlu0 %v1428, 58
      %v1437 = vpop.permute.xlu0 %1436
      %1438 = vrot.lane.b32.xlu0 %v1429, 58
      %v1439 = vpop.permute.xlu0 %1438
      %1440 = vrot.lane.b32.xlu0 %v1430, 58
      %v1441 = vpop.permute.xlu0 %1440
      %1442 = vrot.lane.b32.xlu0 %v1431, 58
      %v1443 = vpop.permute.xlu0 %1442
      %vm1444 = vcmask 474112
      %v1445 = vsel %vm1444, %v1437, %v1439
      %v1446 = vsel %vm1444, %v1441, %v1443
      %v1449 = vadd.f32 %v1413, %v1445
      %v1450 = vadd.f32 %v1414, %v1446
      %s1451 = scalar_lea.vmem %s246, 576
      %v1452 = vld [vmem:[%s1451] sm:$0xff]
      %v1453 = vld [vmem:[%s1451 + $0x8] sm:$0xff]
      %1455 = vset.pattern.permute.xlu0 0
      %1456 = vperm.xlu0 %1455, %v1452
      %v1457 = vpop.permute.xlu0 %1456
      %1460 = vset.pattern.permute.xlu0 0
      %1461 = vperm.xlu0 %1460, %v1453
      %v1462 = vpop.permute.xlu0 %1461
      %v1464 = vmul.f32 %v268, %v1457
      %v1465 = vmul.f32 %v269, %v1457
      %v1466 = vmul.f32 %v270, %v1462
      %v1467 = vmul.f32 %v271, %v1462
      %1472 = vrot.lane.b32.xlu0 %v1464, 57
      %v1473 = vpop.permute.xlu0 %1472
      %1474 = vrot.lane.b32.xlu0 %v1465, 57
      %v1475 = vpop.permute.xlu0 %1474
      %1476 = vrot.lane.b32.xlu0 %v1466, 57
      %v1477 = vpop.permute.xlu0 %1476
      %1478 = vrot.lane.b32.xlu0 %v1467, 57
      %v1479 = vpop.permute.xlu0 %1478
      %vm1480 = vcmask 465920
      %v1481 = vsel %vm1480, %v1473, %v1475
      %v1482 = vsel %vm1480, %v1477, %v1479
      %v1485 = vadd.f32 %v1449, %v1481
      %v1486 = vadd.f32 %v1450, %v1482
      %s1487 = scalar_lea.vmem %s246, 592
      %v1488 = vld [vmem:[%s1487] sm:$0xff]
      %v1489 = vld [vmem:[%s1487 + $0x8] sm:$0xff]
      %1491 = vset.pattern.permute.xlu0 0
      %1492 = vperm.xlu0 %1491, %v1488
      %v1493 = vpop.permute.xlu0 %1492
      %1496 = vset.pattern.permute.xlu0 0
      %1497 = vperm.xlu0 %1496, %v1489
      %v1498 = vpop.permute.xlu0 %1497
      %v1500 = vmul.f32 %v268, %v1493
      %v1501 = vmul.f32 %v269, %v1493
      %v1502 = vmul.f32 %v270, %v1498
      %v1503 = vmul.f32 %v271, %v1498
      %1508 = vrot.lane.b32.xlu0 %v1500, 56
      %v1509 = vpop.permute.xlu0 %1508
      %1510 = vrot.lane.b32.xlu0 %v1501, 56
      %v1511 = vpop.permute.xlu0 %1510
      %1512 = vrot.lane.b32.xlu0 %v1502, 56
      %v1513 = vpop.permute.xlu0 %1512
      %1514 = vrot.lane.b32.xlu0 %v1503, 56
      %v1515 = vpop.permute.xlu0 %1514
      %vm1516 = vcmask 457728
      %v1517 = vsel %vm1516, %v1509, %v1511
      %v1518 = vsel %vm1516, %v1513, %v1515
      %v1521 = vadd.f32 %v1485, %v1517
      %v1522 = vadd.f32 %v1486, %v1518
      %s1523 = scalar_lea.vmem %s246, 608
      %v1524 = vld [vmem:[%s1523] sm:$0xff]
      %v1525 = vld [vmem:[%s1523 + $0x8] sm:$0xff]
      %1527 = vset.pattern.permute.xlu0 0
      %1528 = vperm.xlu0 %1527, %v1524
      %v1529 = vpop.permute.xlu0 %1528
      %1532 = vset.pattern.permute.xlu0 0
      %1533 = vperm.xlu0 %1532, %v1525
      %v1534 = vpop.permute.xlu0 %1533
      %v1536 = vmul.f32 %v268, %v1529
      %v1537 = vmul.f32 %v269, %v1529
      %v1538 = vmul.f32 %v270, %v1534
      %v1539 = vmul.f32 %v271, %v1534
      %1544 = vrot.lane.b32.xlu0 %v1536, 55
      %v1545 = vpop.permute.xlu0 %1544
      %1546 = vrot.lane.b32.xlu0 %v1537, 55
      %v1547 = vpop.permute.xlu0 %1546
      %1548 = vrot.lane.b32.xlu0 %v1538, 55
      %v1549 = vpop.permute.xlu0 %1548
      %1550 = vrot.lane.b32.xlu0 %v1539, 55
      %v1551 = vpop.permute.xlu0 %1550
      %vm1552 = vcmask 449536
      %v1553 = vsel %vm1552, %v1545, %v1547
      %v1554 = vsel %vm1552, %v1549, %v1551
      %v1557 = vadd.f32 %v1521, %v1553
      %v1558 = vadd.f32 %v1522, %v1554
      %s1559 = scalar_lea.vmem %s246, 624
      %v1560 = vld [vmem:[%s1559] sm:$0xff]
      %v1561 = vld [vmem:[%s1559 + $0x8] sm:$0xff]
      %1563 = vset.pattern.permute.xlu0 0
      %1564 = vperm.xlu0 %1563, %v1560
      %v1565 = vpop.permute.xlu0 %1564
      %1568 = vset.pattern.permute.xlu0 0
      %1569 = vperm.xlu0 %1568, %v1561
      %v1570 = vpop.permute.xlu0 %1569
      %v1572 = vmul.f32 %v268, %v1565
      %v1573 = vmul.f32 %v269, %v1565
      %v1574 = vmul.f32 %v270, %v1570
      %v1575 = vmul.f32 %v271, %v1570
      %1580 = vrot.lane.b32.xlu0 %v1572, 54
      %v1581 = vpop.permute.xlu0 %1580
      %1582 = vrot.lane.b32.xlu0 %v1573, 54
      %v1583 = vpop.permute.xlu0 %1582
      %1584 = vrot.lane.b32.xlu0 %v1574, 54
      %v1585 = vpop.permute.xlu0 %1584
      %1586 = vrot.lane.b32.xlu0 %v1575, 54
      %v1587 = vpop.permute.xlu0 %1586
      %vm1588 = vcmask 441344
      %v1589 = vsel %vm1588, %v1581, %v1583
      %v1590 = vsel %vm1588, %v1585, %v1587
      %v1593 = vadd.f32 %v1557, %v1589
      %v1594 = vadd.f32 %v1558, %v1590
      %s1595 = scalar_lea.vmem %s246, 640
      %v1596 = vld [vmem:[%s1595] sm:$0xff]
      %v1597 = vld [vmem:[%s1595 + $0x8] sm:$0xff]
      %1599 = vset.pattern.permute.xlu0 0
      %1600 = vperm.xlu0 %1599, %v1596
      %v1601 = vpop.permute.xlu0 %1600
      %1604 = vset.pattern.permute.xlu0 0
      %1605 = vperm.xlu0 %1604, %v1597
      %v1606 = vpop.permute.xlu0 %1605
      %v1608 = vmul.f32 %v268, %v1601
      %v1609 = vmul.f32 %v269, %v1601
      %v1610 = vmul.f32 %v270, %v1606
      %v1611 = vmul.f32 %v271, %v1606
      %1616 = vrot.lane.b32.xlu0 %v1608, 53
      %v1617 = vpop.permute.xlu0 %1616
      %1618 = vrot.lane.b32.xlu0 %v1609, 53
      %v1619 = vpop.permute.xlu0 %1618
      %1620 = vrot.lane.b32.xlu0 %v1610, 53
      %v1621 = vpop.permute.xlu0 %1620
      %1622 = vrot.lane.b32.xlu0 %v1611, 53
      %v1623 = vpop.permute.xlu0 %1622
      %vm1624 = vcmask 433152
      %v1625 = vsel %vm1624, %v1617, %v1619
      %v1626 = vsel %vm1624, %v1621, %v1623
      %v1629 = vadd.f32 %v1593, %v1625
      %v1630 = vadd.f32 %v1594, %v1626
      %s1631 = scalar_lea.vmem %s246, 656
      %v1632 = vld [vmem:[%s1631] sm:$0xff]
      %v1633 = vld [vmem:[%s1631 + $0x8] sm:$0xff]
      %1635 = vset.pattern.permute.xlu0 0
      %1636 = vperm.xlu0 %1635, %v1632
      %v1637 = vpop.permute.xlu0 %1636
      %1640 = vset.pattern.permute.xlu0 0
      %1641 = vperm.xlu0 %1640, %v1633
      %v1642 = vpop.permute.xlu0 %1641
      %v1644 = vmul.f32 %v268, %v1637
      %v1645 = vmul.f32 %v269, %v1637
      %v1646 = vmul.f32 %v270, %v1642
      %v1647 = vmul.f32 %v271, %v1642
      %1652 = vrot.lane.b32.xlu0 %v1644, 52
      %v1653 = vpop.permute.xlu0 %1652
      %1654 = vrot.lane.b32.xlu0 %v1645, 52
      %v1655 = vpop.permute.xlu0 %1654
      %1656 = vrot.lane.b32.xlu0 %v1646, 52
      %v1657 = vpop.permute.xlu0 %1656
      %1658 = vrot.lane.b32.xlu0 %v1647, 52
      %v1659 = vpop.permute.xlu0 %1658
      %vm1660 = vcmask 424960
      %v1661 = vsel %vm1660, %v1653, %v1655
      %v1662 = vsel %vm1660, %v1657, %v1659
      %v1665 = vadd.f32 %v1629, %v1661
      %v1666 = vadd.f32 %v1630, %v1662
      %s1667 = scalar_lea.vmem %s246, 672
      %v1668 = vld [vmem:[%s1667] sm:$0xff]
      %v1669 = vld [vmem:[%s1667 + $0x8] sm:$0xff]
      %1671 = vset.pattern.permute.xlu0 0
      %1672 = vperm.xlu0 %1671, %v1668
      %v1673 = vpop.permute.xlu0 %1672
      %1676 = vset.pattern.permute.xlu0 0
      %1677 = vperm.xlu0 %1676, %v1669
      %v1678 = vpop.permute.xlu0 %1677
      %v1680 = vmul.f32 %v268, %v1673
      %v1681 = vmul.f32 %v269, %v1673
      %v1682 = vmul.f32 %v270, %v1678
      %v1683 = vmul.f32 %v271, %v1678
      %1688 = vrot.lane.b32.xlu0 %v1680, 44
      %v1689 = vpop.permute.xlu0 %1688
      %1690 = vrot.lane.b32.xlu0 %v1681, 44
      %v1691 = vpop.permute.xlu0 %1690
      %1692 = vrot.lane.b32.xlu0 %v1682, 44
      %v1693 = vpop.permute.xlu0 %1692
      %1694 = vrot.lane.b32.xlu0 %v1683, 44
      %v1695 = vpop.permute.xlu0 %1694
      %vm1696 = vcmask 359424
      %v1697 = vsel %vm1696, %v1689, %v1691
      %v1698 = vsel %vm1696, %v1693, %v1695
      %v1701 = vadd.f32 %v1665, %v1697
      %v1702 = vadd.f32 %v1666, %v1698
      %s1703 = scalar_lea.vmem %s246, 688
      %v1704 = vld [vmem:[%s1703] sm:$0xff]
      %v1705 = vld [vmem:[%s1703 + $0x8] sm:$0xff]
      %1707 = vset.pattern.permute.xlu0 0
      %1708 = vperm.xlu0 %1707, %v1704
      %v1709 = vpop.permute.xlu0 %1708
      %1712 = vset.pattern.permute.xlu0 0
      %1713 = vperm.xlu0 %1712, %v1705
      %v1714 = vpop.permute.xlu0 %1713
      %v1716 = vmul.f32 %v268, %v1709
      %v1717 = vmul.f32 %v269, %v1709
      %v1718 = vmul.f32 %v270, %v1714
      %v1719 = vmul.f32 %v271, %v1714
      %1724 = vrot.lane.b32.xlu0 %v1716, 43
      %v1725 = vpop.permute.xlu0 %1724
      %1726 = vrot.lane.b32.xlu0 %v1717, 43
      %v1727 = vpop.permute.xlu0 %1726
      %1728 = vrot.lane.b32.xlu0 %v1718, 43
      %v1729 = vpop.permute.xlu0 %1728
      %1730 = vrot.lane.b32.xlu0 %v1719, 43
      %v1731 = vpop.permute.xlu0 %1730
      %vm1732 = vcmask 351232
      %v1733 = vsel %vm1732, %v1725, %v1727
      %v1734 = vsel %vm1732, %v1729, %v1731
      %v1737 = vadd.f32 %v1701, %v1733
      %v1738 = vadd.f32 %v1702, %v1734
      %s1739 = scalar_lea.vmem %s246, 704
      %v1740 = vld [vmem:[%s1739] sm:$0xff]
      %v1741 = vld [vmem:[%s1739 + $0x8] sm:$0xff]
      %1743 = vset.pattern.permute.xlu0 0
      %1744 = vperm.xlu0 %1743, %v1740
      %v1745 = vpop.permute.xlu0 %1744
      %1748 = vset.pattern.permute.xlu0 0
      %1749 = vperm.xlu0 %1748, %v1741
      %v1750 = vpop.permute.xlu0 %1749
      %v1752 = vmul.f32 %v268, %v1745
      %v1753 = vmul.f32 %v269, %v1745
      %v1754 = vmul.f32 %v270, %v1750
      %v1755 = vmul.f32 %v271, %v1750
      %1760 = vrot.lane.b32.xlu0 %v1752, 42
      %v1761 = vpop.permute.xlu0 %1760
      %1762 = vrot.lane.b32.xlu0 %v1753, 42
      %v1763 = vpop.permute.xlu0 %1762
      %1764 = vrot.lane.b32.xlu0 %v1754, 42
      %v1765 = vpop.permute.xlu0 %1764
      %1766 = vrot.lane.b32.xlu0 %v1755, 42
      %v1767 = vpop.permute.xlu0 %1766
      %vm1768 = vcmask 343040
      %v1769 = vsel %vm1768, %v1761, %v1763
      %v1770 = vsel %vm1768, %v1765, %v1767
      %v1773 = vadd.f32 %v1737, %v1769
      %v1774 = vadd.f32 %v1738, %v1770
      %s1775 = scalar_lea.vmem %s246, 720
      %v1776 = vld [vmem:[%s1775] sm:$0xff]
      %v1777 = vld [vmem:[%s1775 + $0x8] sm:$0xff]
      %1779 = vset.pattern.permute.xlu0 0
      %1780 = vperm.xlu0 %1779, %v1776
      %v1781 = vpop.permute.xlu0 %1780
      %1784 = vset.pattern.permute.xlu0 0
      %1785 = vperm.xlu0 %1784, %v1777
      %v1786 = vpop.permute.xlu0 %1785
      %v1788 = vmul.f32 %v268, %v1781
      %v1789 = vmul.f32 %v269, %v1781
      %v1790 = vmul.f32 %v270, %v1786
      %v1791 = vmul.f32 %v271, %v1786
      %1796 = vrot.lane.b32.xlu0 %v1788, 41
      %v1797 = vpop.permute.xlu0 %1796
      %1798 = vrot.lane.b32.xlu0 %v1789, 41
      %v1799 = vpop.permute.xlu0 %1798
      %1800 = vrot.lane.b32.xlu0 %v1790, 41
      %v1801 = vpop.permute.xlu0 %1800
      %1802 = vrot.lane.b32.xlu0 %v1791, 41
      %v1803 = vpop.permute.xlu0 %1802
      %vm1804 = vcmask 334848
      %v1805 = vsel %vm1804, %v1797, %v1799
      %v1806 = vsel %vm1804, %v1801, %v1803
      %v1809 = vadd.f32 %v1773, %v1805
      %v1810 = vadd.f32 %v1774, %v1806
      %s1811 = scalar_lea.vmem %s246, 736
      %v1812 = vld [vmem:[%s1811] sm:$0xff]
      %v1813 = vld [vmem:[%s1811 + $0x8] sm:$0xff]
      %1815 = vset.pattern.permute.xlu0 0
      %1816 = vperm.xlu0 %1815, %v1812
      %v1817 = vpop.permute.xlu0 %1816
      %1820 = vset.pattern.permute.xlu0 0
      %1821 = vperm.xlu0 %1820, %v1813
      %v1822 = vpop.permute.xlu0 %1821
      %v1824 = vmul.f32 %v268, %v1817
      %v1825 = vmul.f32 %v269, %v1817
      %v1826 = vmul.f32 %v270, %v1822
      %v1827 = vmul.f32 %v271, %v1822
      %1832 = vrot.lane.b32.xlu0 %v1824, 40
      %v1833 = vpop.permute.xlu0 %1832
      %1834 = vrot.lane.b32.xlu0 %v1825, 40
      %v1835 = vpop.permute.xlu0 %1834
      %1836 = vrot.lane.b32.xlu0 %v1826, 40
      %v1837 = vpop.permute.xlu0 %1836
      %1838 = vrot.lane.b32.xlu0 %v1827, 40
      %v1839 = vpop.permute.xlu0 %1838
      %vm1840 = vcmask 326656
      %v1841 = vsel %vm1840, %v1833, %v1835
      %v1842 = vsel %vm1840, %v1837, %v1839
      %v1845 = vadd.f32 %v1809, %v1841
      %v1846 = vadd.f32 %v1810, %v1842
      %s1847 = scalar_lea.vmem %s246, 752
      %v1848 = vld [vmem:[%s1847] sm:$0xff]
      %v1849 = vld [vmem:[%s1847 + $0x8] sm:$0xff]
      %1851 = vset.pattern.permute.xlu0 0
      %1852 = vperm.xlu0 %1851, %v1848
      %v1853 = vpop.permute.xlu0 %1852
      %1856 = vset.pattern.permute.xlu0 0
      %1857 = vperm.xlu0 %1856, %v1849
      %v1858 = vpop.permute.xlu0 %1857
      %v1860 = vmul.f32 %v268, %v1853
      %v1861 = vmul.f32 %v269, %v1853
      %v1862 = vmul.f32 %v270, %v1858
      %v1863 = vmul.f32 %v271, %v1858
      %1868 = vrot.lane.b32.xlu0 %v1860, 39
      %v1869 = vpop.permute.xlu0 %1868
      %1870 = vrot.lane.b32.xlu0 %v1861, 39
      %v1871 = vpop.permute.xlu0 %1870
      %1872 = vrot.lane.b32.xlu0 %v1862, 39
      %v1873 = vpop.permute.xlu0 %1872
      %1874 = vrot.lane.b32.xlu0 %v1863, 39
      %v1875 = vpop.permute.xlu0 %1874
      %vm1876 = vcmask 318464
      %v1877 = vsel %vm1876, %v1869, %v1871
      %v1878 = vsel %vm1876, %v1873, %v1875
      %v1881 = vadd.f32 %v1845, %v1877
      %v1882 = vadd.f32 %v1846, %v1878
      %s1883 = scalar_lea.vmem %s246, 768
      %v1884 = vld [vmem:[%s1883] sm:$0xff]
      %v1885 = vld [vmem:[%s1883 + $0x8] sm:$0xff]
      %1887 = vset.pattern.permute.xlu0 0
      %1888 = vperm.xlu0 %1887, %v1884
      %v1889 = vpop.permute.xlu0 %1888
      %1892 = vset.pattern.permute.xlu0 0
      %1893 = vperm.xlu0 %1892, %v1885
      %v1894 = vpop.permute.xlu0 %1893
      %v1896 = vmul.f32 %v268, %v1889
      %v1897 = vmul.f32 %v269, %v1889
      %v1898 = vmul.f32 %v270, %v1894
      %v1899 = vmul.f32 %v271, %v1894
      %1904 = vrot.lane.b32.xlu0 %v1896, 38
      %v1905 = vpop.permute.xlu0 %1904
      %1906 = vrot.lane.b32.xlu0 %v1897, 38
      %v1907 = vpop.permute.xlu0 %1906
      %1908 = vrot.lane.b32.xlu0 %v1898, 38
      %v1909 = vpop.permute.xlu0 %1908
      %1910 = vrot.lane.b32.xlu0 %v1899, 38
      %v1911 = vpop.permute.xlu0 %1910
      %vm1912 = vcmask 310272
      %v1913 = vsel %vm1912, %v1905, %v1907
      %v1914 = vsel %vm1912, %v1909, %v1911
      %v1917 = vadd.f32 %v1881, %v1913
      %v1918 = vadd.f32 %v1882, %v1914
      %vm1919 = vcmask 916480
      %1920 = vst.msk [vmem:[#allocation2] sm:$0xff] %vm1919, %v1917
      %1921 = vst.msk [vmem:[#allocation2 + $0x8] sm:$0xff] %vm1919, %v1918
      %p1922 = scmp.eq.s32.totalorder %s21, 6
      // Predicated region
      $region37: #{convnext_block_forward.3} parent=31 // pred_check
        %p1923 = pneg %p1922
      $region38: #{convnext_block_forward.3} parent=31 // pred_check_branch
        %1925 = sbr.rel (%p1923) target = $region40
      $region39: #{convnext_block_forward.3} parent=31 // pred_region
        %v1926 = vld [vmem:[#allocation2] sm:$0xff]
        %v1927 = vld [vmem:[#allocation2 + $0x8] sm:$0xff]
        %v1928 = vld [vmem:[%s251] sm:$0xff]
        %v1929 = vld [vmem:[%s251 + $0x8] sm:$0xff]
        %1931 = vset.pattern.permute.xlu0 0
        %1932 = vperm.xlu0 %1931, %v1928
        %v1933 = vpop.permute.xlu0 %1932
        %1936 = vset.pattern.permute.xlu0 0
        %1937 = vperm.xlu0 %1936, %v1929
        %v1938 = vpop.permute.xlu0 %1937
        %v1940 = vadd.f32 %v1926, %v1933
        %v1941 = vadd.f32 %v1927, %v1938
        %1942 = vst.msk [vmem:[%s260] sm:$0xff] %vm1919, %v1940
        %1943 = vst.msk [vmem:[%s260 + $0x8] sm:$0xff] %vm1919, %v1941
      $region40: #{convnext_block_forward.3} parent=31 // pred_fallthru
        _
      %p1944 = scmp.lt.s32.totalorder %s19, 1
      %s1945 = scalar_select %p1944, %s19, 1
      %p1946 = scmp.lt.s32.totalorder %s20, 7
      %s1947 = scalar_select %p1946, %s20, 7
      %s1948 = smul.addr %s1947, 2
      %s1949 = smul.addr %s1945, 16
      %s1950 = sadd.s32 %s1948, %s1949
      %s1951 = smul.addr %s1950, 8
      %s1952 = scalar_lea.vmem %s3, %s1951
      // Predicated region
      $region41: #{convnext_block_forward.3} parent=31 // pred_check
        %p1953 = pneg %p135
      $region42: #{convnext_block_forward.3} parent=31 // pred_check_branch
        %1955 = sbr.rel (%p1953) target = $region44
      $region43: #{convnext_block_forward.3} parent=31 // pred_region
        _
      $region44: #{convnext_block_forward.3} parent=31 // pred_fallthru
        _
    $region32: #{convnext_block_forward.3} parent=5 // pred_fallthru
      _
    %p1956 = scmp.le.s32.totalorder 2, %s9
    // Predicated region
    $region45: #{convnext_block_forward.3} parent=5 // pred_check
      %p1957 = pneg %p1956
    $region46: #{convnext_block_forward.3} parent=5 // pred_check_branch
      %1959 = sbr.rel (%p1957) target = $region48
    $region47: #{convnext_block_forward.3} parent=5 // pred_region
      %s1960 = ssub.s32 %s9, 2
      // Predicated region
      $region49: #{convnext_block_forward.3} parent=47 // pred_check
        %p1961 = pneg %p141
      $region50: #{convnext_block_forward.3} parent=47 // pred_check_branch
        %1963 = sbr.rel (%p1961) target = $region52
      $region51: #{convnext_block_forward.3} parent=47 // pred_region
        %p1964 = scmp.lt.s32.totalorder %s22, 1
        %s1965 = scalar_select %p1964, %s22, 1
        %p1966 = scmp.lt.s32.totalorder %s23, 7
        %s1967 = scalar_select %p1966, %s23, 7
        %s1968 = smul.addr %s1967, 2
        %s1969 = smul.addr %s1965, 16
        %s1970 = sadd.s32 %s1968, %s1969
        %s1971 = smul.addr %s1970, 8
        %s1972 = scalar_lea.vmem %s3, %s1971
      $region52: #{convnext_block_forward.3} parent=47 // pred_fallthru
        _
    $region48: #{convnext_block_forward.3} parent=5 // pred_fallthru
      _
  $region6: #{convnext_block_forward.3} parent=0 // loop_footer
    %s13 = sadd.s32 1, %s9
  $region7: #{convnext_block_forward.3} parent=0 // loop_footer_branch
    %8 = sbr.rel target = $region3
  $region8: #{convnext_block_forward.3} parent=0 // loop_exit
    _

// kernel: convnext_block_forward.4
$region0: #{convnext_block_forward.4}
  #allocation0 [shape = 'u32[]', space=smem, size = 0x4, offset = 0x4, fixed_abs, tag = 'smem constant byte address 0x4 - core index']
  #allocation1 [shape = 'u32[144,128]{1,0:T(1,128)}', space=vmem, size = 0x12000, scoped, tag = 'internal scratch']
  #allocation2 [shape = 'f32[32,80]{1,0:T(8,128)}', space=vmem, size = 0x4000, scoped, tag = 'scratch operand']
  %s0 = inlined_call_operand.vmem [shape: f32[2,10,16,102], index: 0, kind: input, shape index: {}]
  %s1 = inlined_call_operand.vmem [shape: bf16[3,32,144], index: 1, kind: input, shape index: {}]
  %s2 = inlined_call_operand.vmem [shape: f32[32,1], index: 2, kind: input, shape index: {}]
  %s3 = inlined_call_operand.vmem [shape: f32[2,8,32,80], index: 3, kind: output, shape index: {}]
  %s4 = sld [smem:[#allocation0]]
  $region53: #{convnext_block_forward.4} parent=0
    _
  %s6 = ssub.s32 1, %s4
  %s7 = scalar_select 0, %s6, %s4
  loop: start=0, step=1, limit=50
  $region2: #{convnext_block_forward.4} parent=0 // loop_pre_header
    _
  $region3: #{convnext_block_forward.4} parent=0 // loop_header
    %s9 = sphi 0, %s13
    %p10 = scmp.ge.s32.totalorder %s9, 50
    %s16 = sphi 0, %s35
    %s17 = sphi 0, %s31
    %s18 = sphi 0, %s27
    %s19 = sphi 0, %s16
    %s20 = sphi 0, %s17
    %s21 = sphi 0, %s18
    %s22 = sphi 0, %s19
    %s23 = sphi 0, %s20
    %s24 = sphi 0, %s21
    %s42 = sphi 0, %s44
    %s45 = sphi 0, %s42
    %s46 = sphi 0, %s45
    %s62 = sphi 0, %s46
    %s68 = sphi 0, %s70
    %s71 = sphi 0, %s68
    %s72 = sphi 0, %s71
    %s88 = sphi 0, %s72
    %s92 = sphi 0, %s92
    %s94 = sphi 0, %s92
    %s95 = sphi 0, %s94
    %s109 = sphi 0, %s95
    %s117 = sphi 0, %s119
    %s120 = sphi 0, %s117
    %s121 = sphi 0, %s120
    %s137 = sphi 0, %s121
  $region4: #{convnext_block_forward.4} parent=0 // loop_header_branch
    %12 = sbr.rel (%p10) target = $region8
  $region5: #{convnext_block_forward.4} parent=0 // loop_body
    %s14 = ssub.s32 %s9, 1
    %s15 = ssub.s32 %s9, 2
    %s25 = sadd.s32 1, %s18
    %p26 = scmp.ge.s32.totalorder %s25, 3
    %s27 = scalar_select %p26, 0, %s25
    %s28 = sadd.s32 1, %s17
    %s29 = scalar_select %p26, %s28, %s17
    %p30 = scmp.ge.s32.totalorder %s29, 8
    %s31 = scalar_select %p30, 0, %s29
    %s32 = sadd.s32 1, %s16
    %s33 = scalar_select %p30, %s32, %s16
    %p34 = scmp.ge.s32.totalorder %s33, 2
    %s35 = scalar_select %p34, 0, %s33
    %s36 = sadd.s32 %s17, %s18
    %s37 = sadd.s32 %s31, %s27
    %s38 = ssub.s32 %s16, %s35
    %s39 = ssub.s32 %s36, %s37
    %s40 = sor.u32 %s38, %s39
    %p41 = scmp.eq.s32.totalorder %s40, 0
    %s43 = sadd.s32 %s42, 1
    %s44 = scalar_select %p41, %s42, %s43
    %p47 = pneg %p41
    %p48 = scmp.eq.s32.totalorder %s9, 47
    %p49 = por %p47, %p48
    %p50 = scmp.ne.s32.totalorder %s42, %s45
    %p51 = scmp.eq.s32.totalorder %s9, 0
    %p52 = por %p50, %p51
    %p53 = scmp.ne.s32.totalorder %s42, %s45
    %p54 = scmp.eq.s32.totalorder %s14, 47
    %p55 = por %p53, %p54
    %p56 = scmp.ne.s32.totalorder %s45, %s46
    %p57 = scmp.eq.s32.totalorder %s14, 0
    %p58 = por %p56, %p57
    %p59 = scmp.ne.s32.totalorder %s45, %s46
    %p60 = scmp.eq.s32.totalorder %s15, 47
    %p61 = por %p59, %p60
    %p63 = scmp.ne.s32.totalorder %s46, %s62
    %p64 = scmp.eq.s32.totalorder %s15, 0
    %p65 = por %p63, %p64
    %s66 = ssub.s32 %s18, %s27
    %p67 = scmp.eq.s32.totalorder %s66, 0
    %s69 = sadd.s32 %s68, 1
    %s70 = scalar_select %p67, %s68, %s69
    %p73 = pneg %p67
    %p74 = scmp.eq.s32.totalorder %s9, 47
    %p75 = por %p73, %p74
    %p76 = scmp.ne.s32.totalorder %s68, %s71
    %p77 = scmp.eq.s32.totalorder %s9, 0
    %p78 = por %p76, %p77
    %p79 = scmp.ne.s32.totalorder %s68, %s71
    %p80 = scmp.eq.s32.totalorder %s14, 47
    %p81 = por %p79, %p80
    %p82 = scmp.ne.s32.totalorder %s71, %s72
    %p83 = scmp.eq.s32.totalorder %s14, 0
    %p84 = por %p82, %p83
    %p85 = scmp.ne.s32.totalorder %s71, %s72
    %p86 = scmp.eq.s32.totalorder %s15, 47
    %p87 = por %p85, %p86
    %p89 = scmp.ne.s32.totalorder %s72, %s88
    %p90 = scmp.eq.s32.totalorder %s15, 0
    %p91 = por %p89, %p90
    %s93 = sadd.s32 %s92, 1
    %p96 = scmp.eq.s32.totalorder %s9, 47
    %p97 = scmp.ne.s32.totalorder %s92, %s94
    %p98 = scmp.eq.s32.totalorder %s9, 0
    %p99 = por %p97, %p98
    %p100 = scmp.ne.s32.totalorder %s92, %s94
    %p101 = scmp.eq.s32.totalorder %s14, 47
    %p102 = por %p100, %p101
    %p103 = scmp.ne.s32.totalorder %s94, %s95
    %p104 = scmp.eq.s32.totalorder %s14, 0
    %p105 = por %p103, %p104
    %p106 = scmp.ne.s32.totalorder %s94, %s95
    %p107 = scmp.eq.s32.totalorder %s15, 47
    %p108 = por %p106, %p107
    %p110 = scmp.ne.s32.totalorder %s95, %s109
    %p111 = scmp.eq.s32.totalorder %s15, 0
    %p112 = por %p110, %p111
    %s113 = ssub.s32 %s16, %s35
    %s114 = ssub.s32 %s17, %s31
    %s115 = sor.u32 %s113, %s114
    %p116 = scmp.eq.s32.totalorder %s115, 0
    %s118 = sadd.s32 %s117, 1
    %s119 = scalar_select %p116, %s117, %s118
    %p122 = pneg %p116
    %p123 = scmp.eq.s32.totalorder %s9, 47
    %p124 = por %p122, %p123
    %p125 = scmp.ne.s32.totalorder %s117, %s120
    %p126 = scmp.eq.s32.totalorder %s9, 0
    %p127 = por %p125, %p126
    %p128 = scmp.ne.s32.totalorder %s117, %s120
    %p129 = scmp.eq.s32.totalorder %s14, 47
    %p130 = por %p128, %p129
    %p131 = scmp.ne.s32.totalorder %s120, %s121
    %p132 = scmp.eq.s32.totalorder %s14, 0
    %p133 = por %p131, %p132
    %p134 = scmp.ne.s32.totalorder %s120, %s121
    %p135 = scmp.eq.s32.totalorder %s15, 47
    %p136 = por %p134, %p135
    %p138 = scmp.ne.s32.totalorder %s121, %s137
    %p139 = scmp.eq.s32.totalorder %s15, 0
    %p140 = por %p138, %p139
    %p141 = scmp.le.s32.totalorder 1, %s9
    %p142 = scmp.lt.s32.totalorder %s9, 49
    %p143 = pnand %p141, %p142
    %p144 = pneg %p143
    // Predicated region
    $region9: #{convnext_block_forward.4} parent=5 // pred_check
      _
    $region10: #{convnext_block_forward.4} parent=5 // pred_check_branch
      %146 = sbr.rel (%p143) target = $region12
    $region11: #{convnext_block_forward.4} parent=5 // pred_region
      %s147 = ssub.s32 %s9, 1
      // Predicated region
      $region13: #{convnext_block_forward.4} parent=11 // pred_check
        %p148 = pneg %p105
      $region14: #{convnext_block_forward.4} parent=11 // pred_check_branch
        %150 = sbr.rel (%p148) target = $region16
      $region15: #{convnext_block_forward.4} parent=11 // pred_region
        _
      $region16: #{convnext_block_forward.4} parent=11 // pred_fallthru
        _
    $region12: #{convnext_block_forward.4} parent=5 // pred_fallthru
      _
    %p151 = scmp.lt.s32.totalorder %s9, 48
    // Predicated region
    $region17: #{convnext_block_forward.4} parent=5 // pred_check
      %p152 = pneg %p151
    $region18: #{convnext_block_forward.4} parent=5 // pred_check_branch
      %154 = sbr.rel (%p152) target = $region20
    $region19: #{convnext_block_forward.4} parent=5 // pred_region
      // Predicated region
      $region21: #{convnext_block_forward.4} parent=19 // pred_check
        %p155 = pneg %p52
      $region22: #{convnext_block_forward.4} parent=19 // pred_check_branch
        %157 = sbr.rel (%p155) target = $region24
      $region23: #{convnext_block_forward.4} parent=19 // pred_region
        %s158 = sadd.s32 %s17, %s18
        %p159 = scmp.lt.s32.totalorder %s16, 1
        %s160 = scalar_select %p159, %s16, 1
        %p161 = scmp.lt.s32.totalorder %s158, 9
        %s162 = scalar_select %p161, %s158, 9
        %s163 = smul.addr %s162, 2
        %s164 = smul.addr %s160, 20
        %s165 = sadd.s32 %s163, %s164
        %s166 = smul.addr %s165, 8
        %s167 = scalar_lea.vmem %s0, %s166
        %s168 = sadd.s32 %s17, %s18
      $region24: #{convnext_block_forward.4} parent=19 // pred_fallthru
        _
      // Predicated region
      $region25: #{convnext_block_forward.4} parent=19 // pred_check
        %p169 = pneg %p78
      $region26: #{convnext_block_forward.4} parent=19 // pred_check_branch
        %171 = sbr.rel (%p169) target = $region28
      $region27: #{convnext_block_forward.4} parent=19 // pred_region
        %p172 = scmp.lt.s32.totalorder %s18, 2
        %s173 = scalar_select %p172, %s18, 2
        %s174 = smul.addr %s173, 8
        %s175 = smul.addr %s174, 4
        %s176 = scalar_lea.vmem %s1, %s175
      $region28: #{convnext_block_forward.4} parent=19 // pred_fallthru
        _
    $region20: #{convnext_block_forward.4} parent=5 // pred_fallthru
      _
    %p177 = scmp.le.s32.totalorder 1, %s9
    %p178 = scmp.lt.s32.totalorder %s9, 49
    %p179 = pnand %p177, %p178
    %p180 = pneg %p179
    // Predicated region
    $region29: #{convnext_block_forward.4} parent=5 // pred_check
      _
    $region30: #{convnext_block_forward.4} parent=5 // pred_check_branch
      %182 = sbr.rel (%p179) target = $region32
    $region31: #{convnext_block_forward.4} parent=5 // pred_region
      %s183 = ssub.s32 %s9, 1
      %s184 = sadd.s32 %s20, %s21
      %p185 = scmp.lt.s32.totalorder %s19, 1
      %s186 = scalar_select %p185, %s19, 1
      %p187 = scmp.lt.s32.totalorder %s184, 9
      %s188 = scalar_select %p187, %s184, 9
      %s189 = smul.addr %s188, 2
      %s190 = smul.addr %s186, 20
      %s191 = sadd.s32 %s189, %s190
      %s192 = smul.addr %s191, 8
      %s193 = scalar_lea.vmem %s0, %s192
      %p194 = pneg %p58
      %p195 = pneg %p55
      %p196 = scmp.lt.s32.totalorder %s21, 2
      %s197 = scalar_select %p196, %s21, 2
      %s198 = smul.addr %s197, 8
      %s199 = smul.addr %s198, 4
      %s200 = scalar_lea.vmem %s1, %s199
      %p201 = pneg %p84
      %p202 = pneg %p81
      %p203 = pneg %p105
      %p204 = pneg %p102
      %p205 = pneg %p133
      %p206 = pneg %p130
      %p207 = scmp.lt.s32.totalorder %s19, 1
      %s208 = scalar_select %p207, %s19, 1
      %p209 = scmp.lt.s32.totalorder %s20, 7
      %s210 = scalar_select %p209, %s20, 7
      %s211 = smul.addr %s210, 4
      %s212 = smul.addr %s208, 32
      %s213 = sadd.s32 %s211, %s212
      %s214 = smul.addr %s213, 8
      %s215 = scalar_lea.vmem %s3, %s214
      %s216 = sadd.s32 %s20, %s21
      %p217 = scmp.lt.s32.totalorder %s19, 1
      %s218 = scalar_select %p217, %s19, 1
      %p219 = scmp.lt.s32.totalorder %s216, 9
      %s220 = scalar_select %p219, %s216, 9
      %s221 = smul.addr %s220, 2
      %s222 = smul.addr %s218, 20
      %s223 = sadd.s32 %s221, %s222
      %s224 = smul.addr %s223, 8
      %s225 = scalar_lea.vmem %s0, %s224
      %s226 = sadd.s32 %s20, %s21
      %p227 = scmp.lt.s32.totalorder %s21, 2
      %s228 = scalar_select %p227, %s21, 2
      %s229 = smul.addr %s228, 8
      %s230 = smul.addr %s229, 4
      %s231 = scalar_lea.vmem %s1, %s230
      %p232 = scmp.lt.s32.totalorder %s19, 1
      %s233 = scalar_select %p232, %s19, 1
      %p234 = scmp.lt.s32.totalorder %s20, 7
      %s235 = scalar_select %p234, %s20, 7
      %s236 = smul.addr %s235, 4
      %s237 = smul.addr %s233, 32
      %s238 = sadd.s32 %s236, %s237
      %s239 = smul.addr %s238, 8
      %s240 = scalar_lea.vmem %s3, %s239
      %p242 = scmp.eq.s32.totalorder %s21, 0
      // Predicated region
      $region33: #{convnext_block_forward.4} parent=31 // pred_check
        %p243 = pneg %p242
      $region34: #{convnext_block_forward.4} parent=31 // pred_check_branch
        %245 = sbr.rel (%p243) target = $region36
      $region35: #{convnext_block_forward.4} parent=31 // pred_region
        %vm246 = vcmask 654336
        %247 = vst.msk [vmem:[#allocation2] sm:$0xff] %vm246, 0.0
        %248 = vst.msk [vmem:[#allocation2 + $0x8] sm:$0xff] %vm246, 0.0
        %249 = vst.msk [vmem:[#allocation2 + $0x10] sm:$0xff] %vm246, 0.0
        %250 = vst.msk [vmem:[#allocation2 + $0x18] sm:$0xff] %vm246, 0.0
      $region36: #{convnext_block_forward.4} parent=31 // pred_fallthru
        _
      %v251 = vld [vmem:[%s225] sm:$0xff]
      %v252 = vld [vmem:[%s225 + $0x8] sm:$0xff]
      %255 = vrot.lane.b32.xlu0 %v251, 127
      %v256 = vpop.permute.xlu0 %255
      %257 = vrot.lane.b32.xlu0 %v252, 127
      %v258 = vpop.permute.xlu0 %257
      %261 = vrot.lane.b32.xlu0 %v251, 126
      %v262 = vpop.permute.xlu0 %261
      %263 = vrot.lane.b32.xlu0 %v252, 126
      %v264 = vpop.permute.xlu0 %263
      %267 = vrot.lane.b32.xlu0 %v251, 118
      %v268 = vpop.permute.xlu0 %267
      %269 = vrot.lane.b32.xlu0 %v252, 118
      %v270 = vpop.permute.xlu0 %269
      %273 = vrot.lane.b32.xlu0 %v251, 117
      %v274 = vpop.permute.xlu0 %273
      %275 = vrot.lane.b32.xlu0 %v252, 117
      %v276 = vpop.permute.xlu0 %275
      %279 = vrot.lane.b32.xlu0 %v251, 116
      %v280 = vpop.permute.xlu0 %279
      %281 = vrot.lane.b32.xlu0 %v252, 116
      %v282 = vpop.permute.xlu0 %281
      %285 = vrot.lane.b32.xlu0 %v251, 108
      %v286 = vpop.permute.xlu0 %285
      %287 = vrot.lane.b32.xlu0 %v252, 108
      %v288 = vpop.permute.xlu0 %287
      %291 = vrot.lane.b32.xlu0 %v251, 107
      %v292 = vpop.permute.xlu0 %291
      %293 = vrot.lane.b32.xlu0 %v252, 107
      %v294 = vpop.permute.xlu0 %293
      %297 = vrot.lane.b32.xlu0 %v251, 106
      %v298 = vpop.permute.xlu0 %297
      %299 = vrot.lane.b32.xlu0 %v252, 106
      %v300 = vpop.permute.xlu0 %299
      %v303 = vld [vmem:[#allocation2] sm:$0xff]
      %v304 = vld [vmem:[#allocation2 + $0x8] sm:$0xff]
      %v305 = vld [vmem:[#allocation2 + $0x10] sm:$0xff]
      %v306 = vld [vmem:[#allocation2 + $0x18] sm:$0xff]
      %v307 = vld [vmem:[%s231] sm:$0xff]
      %v308 = vld [vmem:[%s231 + $0x8] sm:$0xff]
      %v309 = vld [vmem:[%s231 + $0x10] sm:$0xff]
      %v310 = vld [vmem:[%s231 + $0x18] sm:$0xff]
      %v311 = vpack.c.bf16 %v252, %v251
      %v312 = vpack.c.bf16 %v258, %v256
      %v313 = vpack.c.bf16 %v264, %v262
      %v314 = vpack.c.bf16 %v270, %v268
      %v315 = vpack.c.bf16 %v276, %v274
      %v316 = vpack.c.bf16 %v282, %v280
      %v317 = vpack.c.bf16 %v288, %v286
      %v318 = vpack.c.bf16 %v294, %v292
      %v319 = vpack.c.bf16 %v300, %v298
      %v324 = vunpack.c.l.b16 %v307
      %v325 = vunpack.c.h.b16 %v307
      %v326 = vunpack.c.l.b16 %v308
      %v327 = vunpack.c.h.b16 %v308
      %v328 = vunpack.c.l.b16 %v309
      %v329 = vunpack.c.h.b16 %v309
      %v330 = vunpack.c.l.b16 %v310
      %v331 = vunpack.c.h.b16 %v310
      %v332 = vpack.c.b16 %v326, %v324
      %v333 = vpack.c.b16 %v327, %v325
      %v334 = vpack.c.b16 %v330, %v328
      %v335 = vpack.c.b16 %v331, %v329
      %vm338 = vcmask 130048
      %v340 = vsel %vm338, %v333, 0
      %v343 = vsel %vm338, %v335, 0
      %345 = vmatprep.subr.bf16.mxu0 0
      %346 = vmatpush1.bf16.msra.mxu0 %v311
      %347 = vmatprep.subr.bf16.mxu0 0
      %348 = vmatpush1.bf16.msra.mxu0 %v312
      %349 = vmatprep.subr.bf16.mxu0 0
      %350 = vmatpush1.bf16.msra.mxu0 %v313
      %351 = vmatprep.subr.bf16.mxu0 0
      %352 = vmatpush1.bf16.msra.mxu0 %v314
      %353 = vmatprep.subr.bf16.mxu0 0
      %354 = vmatpush1.bf16.msra.mxu0 %v315
      %355 = vmatprep.subr.bf16.mxu0 0
      %356 = vmatpush1.bf16.msra.mxu0 %v316
      %357 = vmatprep.subr.bf16.mxu0 0
      %358 = vmatpush1.bf16.msra.mxu0 %v317
      %359 = vmatprep.subr.bf16.mxu0 0
      %360 = vmatpush1.bf16.msra.mxu0 %v318
      %361 = vmatprep.subr.bf16.mxu0 0
      %362 = vmatpush1.bf16.msra.mxu0 %v319
      %363 = vmatprep.subr.bf16.mxu0 0
      %364 = vmatpush1.bf16.msra.mxu0 0
      %365 = vmatprep.subr.bf16.mxu0 0
      %366 = vmatpush1.bf16.msra.mxu0 0
      %367 = vmatprep.subr.bf16.mxu0 0
      %368 = vmatpush1.bf16.msra.mxu0 0
      %369 = vmatprep.subr.bf16.mxu0 0
      %370 = vmatpush1.bf16.msra.mxu0 0
      %371 = vmatprep.subr.bf16.mxu0 0
      %372 = vmatpush1.bf16.msra.mxu0 0
      %373 = vmatprep.subr.bf16.mxu0 0
      %374 = vmatpush1.bf16.msra.mxu0 0
      %375 = vmatprep.subr.bf16.mxu0 0
      %376 = vmatpush1.bf16.msra.mxu0 0
      %377 = vmatprep.mubr.bf16.mxu0 %v340
      %378 = vmatmul.mubr.bf16.gmra.mrb[0].mxu0 %v332
      %v379 = vpop.f32.mrb[0].mxu0
      %v380 = vadd.f32 0.0, %v379
      %v381 = vpop.f32.mrb[0].mxu0
      %v382 = vpop.f32.mrb[0].mxu0
      %v383 = vadd.f32 0.0, %v382
      %v384 = vpop.f32.mrb[0].mxu0
      %385 = vmatprep.mubr.bf16.mxu0 %v343
      %386 = vmatmul.mubr.bf16.gmra.mrb[0].mxu0 %v334
      %v387 = vpop.f32.mrb[0].mxu0
      %v388 = vadd.f32 0.0, %v387
      %v389 = vpop.f32.mrb[0].mxu0
      %v390 = vpop.f32.mrb[0].mxu0
      %v391 = vadd.f32 0.0, %v390
      %v392 = vpop.f32.mrb[0].mxu0
      %393 = vdwg.mxu0
      %v394 = vadd.f32 %v303, %v380
      %v395 = vadd.f32 %v304, %v383
      %v396 = vadd.f32 %v305, %v388
      %v397 = vadd.f32 %v306, %v391
      %vm398 = vcmask 654336
      %399 = vst.msk [vmem:[#allocation2] sm:$0xff] %vm398, %v394
      %400 = vst.msk [vmem:[#allocation2 + $0x8] sm:$0xff] %vm398, %v395
      %401 = vst.msk [vmem:[#allocation2 + $0x10] sm:$0xff] %vm398, %v396
      %402 = vst.msk [vmem:[#allocation2 + $0x18] sm:$0xff] %vm398, %v397
      %p403 = scmp.eq.s32.totalorder %s21, 2
      // Predicated region
      $region37: #{convnext_block_forward.4} parent=31 // pred_check
        %p404 = pneg %p403
      $region38: #{convnext_block_forward.4} parent=31 // pred_check_branch
        %406 = sbr.rel (%p404) target = $region40
      $region39: #{convnext_block_forward.4} parent=31 // pred_region
        %v407 = vld [vmem:[#allocation2] sm:$0xff]
        %v408 = vld [vmem:[#allocation2 + $0x8] sm:$0xff]
        %v409 = vld [vmem:[#allocation2 + $0x10] sm:$0xff]
        %v410 = vld [vmem:[#allocation2 + $0x18] sm:$0xff]
        %v411 = vld [vmem:[%s2] sm:$0xff]
        %v412 = vld [vmem:[%s2 + $0x8] sm:$0xff]
        %v413 = vld [vmem:[%s2 + $0x10] sm:$0xff]
        %v414 = vld [vmem:[%s2 + $0x18] sm:$0xff]
        %416 = vset.pattern.permute.xlu0 0
        %417 = vperm.xlu0 %416, %v411
        %v418 = vpop.permute.xlu0 %417
        %421 = vset.pattern.permute.xlu0 0
        %422 = vperm.xlu0 %421, %v412
        %v423 = vpop.permute.xlu0 %422
        %426 = vset.pattern.permute.xlu0 0
        %427 = vperm.xlu0 %426, %v413
        %v428 = vpop.permute.xlu0 %427
        %431 = vset.pattern.permute.xlu0 0
        %432 = vperm.xlu0 %431, %v414
        %v433 = vpop.permute.xlu0 %432
        %v435 = vadd.f32 %v407, %v418
        %v436 = vadd.f32 %v408, %v423
        %v437 = vadd.f32 %v409, %v428
        %v438 = vadd.f32 %v410, %v433
        %v439 = vxor.u32 %v435, 2147483648
        %v440 = vxor.u32 %v436, 2147483648
        %v441 = vxor.u32 %v437, 2147483648
        %v442 = vxor.u32 %v438, 2147483648
        %v443 = vmul.f32 %v439, 1.442695
        %v444 = vpow.pop %v443
        %v445 = vmul.f32 %v440, 1.442695
        %v446 = vpow.pop %v445
        %v447 = vmul.f32 %v441, 1.442695
        %v448 = vpow.pop %v447
        %v449 = vmul.f32 %v442, 1.442695
        %v450 = vpow.pop %v449
        %v451 = vadd.f32 %v444, 1.0
        %v452 = vadd.f32 %v446, 1.0
        %v453 = vadd.f32 %v448, 1.0
        %v454 = vadd.f32 %v450, 1.0
        %v455 = vrcp.pop %v451
        %v456 = vmul.f32 1.0, %v455
        %v457 = vrcp.pop %v452
        %v458 = vmul.f32 1.0, %v457
        %v459 = vrcp.pop %v453
        %v460 = vmul.f32 1.0, %v459
        %v461 = vrcp.pop %v454
        %v462 = vmul.f32 1.0, %v461
        %v463 = vmul.f32 %v435, %v456
        %v464 = vmul.f32 %v436, %v458
        %v465 = vmul.f32 %v437, %v460
        %v466 = vmul.f32 %v438, %v462
        %467 = vst.msk [vmem:[%s240] sm:$0xff] %vm398, %v463
        %468 = vst.msk [vmem:[%s240 + $0x8] sm:$0xff] %vm398, %v464
        %469 = vst.msk [vmem:[%s240 + $0x10] sm:$0xff] %vm398, %v465
        %470 = vst.msk [vmem:[%s240 + $0x18] sm:$0xff] %vm398, %v466
      $region40: #{convnext_block_forward.4} parent=31 // pred_fallthru
        _
      %p471 = scmp.lt.s32.totalorder %s19, 1
      %s472 = scalar_select %p471, %s19, 1
      %p473 = scmp.lt.s32.totalorder %s20, 7
      %s474 = scalar_select %p473, %s20, 7
      %s475 = smul.addr %s474, 4
      %s476 = smul.addr %s472, 32
      %s477 = sadd.s32 %s475, %s476
      %s478 = smul.addr %s477, 8
      %s479 = scalar_lea.vmem %s3, %s478
      // Predicated region
      $region41: #{convnext_block_forward.4} parent=31 // pred_check
        %p480 = pneg %p130
      $region42: #{convnext_block_forward.4} parent=31 // pred_check_branch
        %482 = sbr.rel (%p480) target = $region44
      $region43: #{convnext_block_forward.4} parent=31 // pred_region
        _
      $region44: #{convnext_block_forward.4} parent=31 // pred_fallthru
        _
    $region32: #{convnext_block_forward.4} parent=5 // pred_fallthru
      _
    %p483 = scmp.le.s32.totalorder 2, %s9
    // Predicated region
    $region45: #{convnext_block_forward.4} parent=5 // pred_check
      %p484 = pneg %p483
    $region46: #{convnext_block_forward.4} parent=5 // pred_check_branch
      %486 = sbr.rel (%p484) target = $region48
    $region47: #{convnext_block_forward.4} parent=5 // pred_region
      %s487 = ssub.s32 %s9, 2
      // Predicated region
      $region49: #{convnext_block_forward.4} parent=47 // pred_check
        %p488 = pneg %p136
      $region50: #{convnext_block_forward.4} parent=47 // pred_check_branch
        %490 = sbr.rel (%p488) target = $region52
      $region51: #{convnext_block_forward.4} parent=47 // pred_region
        %p491 = scmp.lt.s32.totalorder %s22, 1
        %s492 = scalar_select %p491, %s22, 1
        %p493 = scmp.lt.s32.totalorder %s23, 7
        %s494 = scalar_select %p493, %s23, 7
        %s495 = smul.addr %s494, 4
        %s496 = smul.addr %s492, 32
        %s497 = sadd.s32 %s495, %s496
        %s498 = smul.addr %s497, 8
        %s499 = scalar_lea.vmem %s3, %s498
      $region52: #{convnext_block_forward.4} parent=47 // pred_fallthru
        _
    $region48: #{convnext_block_forward.4} parent=5 // pred_fallthru
      _
  $region6: #{convnext_block_forward.4} parent=0 // loop_footer
    %s13 = sadd.s32 1, %s9
  $region7: #{convnext_block_forward.4} parent=0 // loop_footer_branch
    %8 = sbr.rel target = $region3
  $region8: #{convnext_block_forward.4} parent=0 // loop_exit
    _

// kernel: convnext_block_forward.5
$region0: #{convnext_block_forward.5}
  #allocation0 [shape = 'u32[]', space=smem, size = 0x4, offset = 0x4, fixed_abs, tag = 'smem constant byte address 0x4 - core index']
  #allocation1 [shape = 'u32[144,128]{1,0:T(1,128)}', space=vmem, size = 0x12000, scoped, tag = 'internal scratch']
  #allocation2 [shape = 'f32[16,80]{1,0:T(8,128)}', space=vmem, size = 0x2000, scoped, tag = 'scratch operand']
  %s0 = inlined_call_operand.vmem [shape: f32[2,10,32,102], index: 0, kind: input, shape index: {}]
  %s1 = inlined_call_operand.vmem [shape: bf16[3,16,288], index: 1, kind: input, shape index: {}]
  %s2 = inlined_call_operand.vmem [shape: f32[16,1], index: 2, kind: input, shape index: {}]
  %s3 = inlined_call_operand.vmem [shape: f32[2,8,16,80], index: 3, kind: input, shape index: {}]
  %s4 = inlined_call_operand.vmem [shape: f32[2,8,16,80], index: 4, kind: output, shape index: {}]
  %s5 = sld [smem:[#allocation0]]
  $region57: #{convnext_block_forward.5} parent=0
    _
  %s7 = ssub.s32 1, %s5
  %s8 = scalar_select 0, %s7, %s5
  loop: start=0, step=1, limit=50
  $region2: #{convnext_block_forward.5} parent=0 // loop_pre_header
    _
  $region3: #{convnext_block_forward.5} parent=0 // loop_header
    %s10 = sphi 0, %s14
    %p11 = scmp.ge.s32.totalorder %s10, 50
    %s17 = sphi 0, %s36
    %s18 = sphi 0, %s32
    %s19 = sphi 0, %s28
    %s20 = sphi 0, %s17
    %s21 = sphi 0, %s18
    %s22 = sphi 0, %s19
    %s23 = sphi 0, %s20
    %s24 = sphi 0, %s21
    %s25 = sphi 0, %s22
    %s43 = sphi 0, %s45
    %s46 = sphi 0, %s43
    %s47 = sphi 0, %s46
    %s63 = sphi 0, %s47
    %s69 = sphi 0, %s71
    %s72 = sphi 0, %s69
    %s73 = sphi 0, %s72
    %s89 = sphi 0, %s73
    %s93 = sphi 0, %s93
    %s95 = sphi 0, %s93
    %s96 = sphi 0, %s95
    %s110 = sphi 0, %s96
    %s118 = sphi 0, %s120
    %s121 = sphi 0, %s118
    %s122 = sphi 0, %s121
    %s138 = sphi 0, %s122
    %s146 = sphi 0, %s148
    %s149 = sphi 0, %s146
    %s150 = sphi 0, %s149
    %s166 = sphi 0, %s150
  $region4: #{convnext_block_forward.5} parent=0 // loop_header_branch
    %13 = sbr.rel (%p11) target = $region8
  $region5: #{convnext_block_forward.5} parent=0 // loop_body
    %s15 = ssub.s32 %s10, 1
    %s16 = ssub.s32 %s10, 2
    %s26 = sadd.s32 1, %s19
    %p27 = scmp.ge.s32.totalorder %s26, 3
    %s28 = scalar_select %p27, 0, %s26
    %s29 = sadd.s32 1, %s18
    %s30 = scalar_select %p27, %s29, %s18
    %p31 = scmp.ge.s32.totalorder %s30, 8
    %s32 = scalar_select %p31, 0, %s30
    %s33 = sadd.s32 1, %s17
    %s34 = scalar_select %p31, %s33, %s17
    %p35 = scmp.ge.s32.totalorder %s34, 2
    %s36 = scalar_select %p35, 0, %s34
    %s37 = sadd.s32 %s18, %s19
    %s38 = sadd.s32 %s32, %s28
    %s39 = ssub.s32 %s17, %s36
    %s40 = ssub.s32 %s37, %s38
    %s41 = sor.u32 %s39, %s40
    %p42 = scmp.eq.s32.totalorder %s41, 0
    %s44 = sadd.s32 %s43, 1
    %s45 = scalar_select %p42, %s43, %s44
    %p48 = pneg %p42
    %p49 = scmp.eq.s32.totalorder %s10, 47
    %p50 = por %p48, %p49
    %p51 = scmp.ne.s32.totalorder %s43, %s46
    %p52 = scmp.eq.s32.totalorder %s10, 0
    %p53 = por %p51, %p52
    %p54 = scmp.ne.s32.totalorder %s43, %s46
    %p55 = scmp.eq.s32.totalorder %s15, 47
    %p56 = por %p54, %p55
    %p57 = scmp.ne.s32.totalorder %s46, %s47
    %p58 = scmp.eq.s32.totalorder %s15, 0
    %p59 = por %p57, %p58
    %p60 = scmp.ne.s32.totalorder %s46, %s47
    %p61 = scmp.eq.s32.totalorder %s16, 47
    %p62 = por %p60, %p61
    %p64 = scmp.ne.s32.totalorder %s47, %s63
    %p65 = scmp.eq.s32.totalorder %s16, 0
    %p66 = por %p64, %p65
    %s67 = ssub.s32 %s19, %s28
    %p68 = scmp.eq.s32.totalorder %s67, 0
    %s70 = sadd.s32 %s69, 1
    %s71 = scalar_select %p68, %s69, %s70
    %p74 = pneg %p68
    %p75 = scmp.eq.s32.totalorder %s10, 47
    %p76 = por %p74, %p75
    %p77 = scmp.ne.s32.totalorder %s69, %s72
    %p78 = scmp.eq.s32.totalorder %s10, 0
    %p79 = por %p77, %p78
    %p80 = scmp.ne.s32.totalorder %s69, %s72
    %p81 = scmp.eq.s32.totalorder %s15, 47
    %p82 = por %p80, %p81
    %p83 = scmp.ne.s32.totalorder %s72, %s73
    %p84 = scmp.eq.s32.totalorder %s15, 0
    %p85 = por %p83, %p84
    %p86 = scmp.ne.s32.totalorder %s72, %s73
    %p87 = scmp.eq.s32.totalorder %s16, 47
    %p88 = por %p86, %p87
    %p90 = scmp.ne.s32.totalorder %s73, %s89
    %p91 = scmp.eq.s32.totalorder %s16, 0
    %p92 = por %p90, %p91
    %s94 = sadd.s32 %s93, 1
    %p97 = scmp.eq.s32.totalorder %s10, 47
    %p98 = scmp.ne.s32.totalorder %s93, %s95
    %p99 = scmp.eq.s32.totalorder %s10, 0
    %p100 = por %p98, %p99
    %p101 = scmp.ne.s32.totalorder %s93, %s95
    %p102 = scmp.eq.s32.totalorder %s15, 47
    %p103 = por %p101, %p102
    %p104 = scmp.ne.s32.totalorder %s95, %s96
    %p105 = scmp.eq.s32.totalorder %s15, 0
    %p106 = por %p104, %p105
    %p107 = scmp.ne.s32.totalorder %s95, %s96
    %p108 = scmp.eq.s32.totalorder %s16, 47
    %p109 = por %p107, %p108
    %p111 = scmp.ne.s32.totalorder %s96, %s110
    %p112 = scmp.eq.s32.totalorder %s16, 0
    %p113 = por %p111, %p112
    %s114 = ssub.s32 %s17, %s36
    %s115 = ssub.s32 %s18, %s32
    %s116 = sor.u32 %s114, %s115
    %p117 = scmp.eq.s32.totalorder %s116, 0
    %s119 = sadd.s32 %s118, 1
    %s120 = scalar_select %p117, %s118, %s119
    %p123 = pneg %p117
    %p124 = scmp.eq.s32.totalorder %s10, 47
    %p125 = por %p123, %p124
    %p126 = scmp.ne.s32.totalorder %s118, %s121
    %p127 = scmp.eq.s32.totalorder %s10, 0
    %p128 = por %p126, %p127
    %p129 = scmp.ne.s32.totalorder %s118, %s121
    %p130 = scmp.eq.s32.totalorder %s15, 47
    %p131 = por %p129, %p130
    %p132 = scmp.ne.s32.totalorder %s121, %s122
    %p133 = scmp.eq.s32.totalorder %s15, 0
    %p134 = por %p132, %p133
    %p135 = scmp.ne.s32.totalorder %s121, %s122
    %p136 = scmp.eq.s32.totalorder %s16, 47
    %p137 = por %p135, %p136
    %p139 = scmp.ne.s32.totalorder %s122, %s138
    %p140 = scmp.eq.s32.totalorder %s16, 0
    %p141 = por %p139, %p140
    %s142 = ssub.s32 %s17, %s36
    %s143 = ssub.s32 %s18, %s32
    %s144 = sor.u32 %s142, %s143
    %p145 = scmp.eq.s32.totalorder %s144, 0
    %s147 = sadd.s32 %s146, 1
    %s148 = scalar_select %p145, %s146, %s147
    %p151 = pneg %p145
    %p152 = scmp.eq.s32.totalorder %s10, 47
    %p153 = por %p151, %p152
    %p154 = scmp.ne.s32.totalorder %s146, %s149
    %p155 = scmp.eq.s32.totalorder %s10, 0
    %p156 = por %p154, %p155
    %p157 = scmp.ne.s32.totalorder %s146, %s149
    %p158 = scmp.eq.s32.totalorder %s15, 47
    %p159 = por %p157, %p158
    %p160 = scmp.ne.s32.totalorder %s149, %s150
    %p161 = scmp.eq.s32.totalorder %s15, 0
    %p162 = por %p160, %p161
    %p163 = scmp.ne.s32.totalorder %s149, %s150
    %p164 = scmp.eq.s32.totalorder %s16, 47
    %p165 = por %p163, %p164
    %p167 = scmp.ne.s32.totalorder %s150, %s166
    %p168 = scmp.eq.s32.totalorder %s16, 0
    %p169 = por %p167, %p168
    %p170 = scmp.le.s32.totalorder 1, %s10
    %p171 = scmp.lt.s32.totalorder %s10, 49
    %p172 = pnand %p170, %p171
    %p173 = pneg %p172
    // Predicated region
    $region9: #{convnext_block_forward.5} parent=5 // pred_check
      _
    $region10: #{convnext_block_forward.5} parent=5 // pred_check_branch
      %175 = sbr.rel (%p172) target = $region12
    $region11: #{convnext_block_forward.5} parent=5 // pred_region
      %s176 = ssub.s32 %s10, 1
      // Predicated region
      $region13: #{convnext_block_forward.5} parent=11 // pred_check
        %p177 = pneg %p106
      $region14: #{convnext_block_forward.5} parent=11 // pred_check_branch
        %179 = sbr.rel (%p177) target = $region16
      $region15: #{convnext_block_forward.5} parent=11 // pred_region
        _
      $region16: #{convnext_block_forward.5} parent=11 // pred_fallthru
        _
    $region12: #{convnext_block_forward.5} parent=5 // pred_fallthru
      _
    %p180 = scmp.lt.s32.totalorder %s10, 48
    // Predicated region
    $region17: #{convnext_block_forward.5} parent=5 // pred_check
      %p181 = pneg %p180
    $region18: #{convnext_block_forward.5} parent=5 // pred_check_branch
      %183 = sbr.rel (%p181) target = $region20
    $region19: #{convnext_block_forward.5} parent=5 // pred_region
      // Predicated region
      $region21: #{convnext_block_forward.5} parent=19 // pred_check
        %p184 = pneg %p53
      $region22: #{convnext_block_forward.5} parent=19 // pred_check_branch
        %186 = sbr.rel (%p184) target = $region24
      $region23: #{convnext_block_forward.5} parent=19 // pred_region
        %s187 = sadd.s32 %s18, %s19
        %p188 = scmp.lt.s32.totalorder %s17, 1
        %s189 = scalar_select %p188, %s17, 1
        %p190 = scmp.lt.s32.totalorder %s187, 9
        %s191 = scalar_select %p190, %s187, 9
        %s192 = smul.addr %s191, 4
        %s193 = smul.addr %s189, 40
        %s194 = sadd.s32 %s192, %s193
        %s195 = smul.addr %s194, 8
        %s196 = scalar_lea.vmem %s0, %s195
        %s197 = sadd.s32 %s18, %s19
      $region24: #{convnext_block_forward.5} parent=19 // pred_fallthru
        _
      // Predicated region
      $region25: #{convnext_block_forward.5} parent=19 // pred_check
        %p198 = pneg %p79
      $region26: #{convnext_block_forward.5} parent=19 // pred_check_branch
        %200 = sbr.rel (%p198) target = $region28
      $region27: #{convnext_block_forward.5} parent=19 // pred_region
        %p201 = scmp.lt.s32.totalorder %s19, 2
        %s202 = scalar_select %p201, %s19, 2
        %s203 = smul.addr %s202, 6
        %s204 = smul.addr %s203, 4
        %s205 = scalar_lea.vmem %s1, %s204
      $region28: #{convnext_block_forward.5} parent=19 // pred_fallthru
        _
      // Predicated region
      $region29: #{convnext_block_forward.5} parent=19 // pred_check
        %p206 = pneg %p128
      $region30: #{convnext_block_forward.5} parent=19 // pred_check_branch
        %208 = sbr.rel (%p206) target = $region32
      $region31: #{convnext_block_forward.5} parent=19 // pred_region
        %p209 = scmp.lt.s32.totalorder %s17, 1
        %s210 = scalar_select %p209, %s17, 1
        %p211 = scmp.lt.s32.totalorder %s18, 7
        %s212 = scalar_select %p211, %s18, 7
        %s213 = smul.addr %s212, 2
        %s214 = smul.addr %s210, 16
        %s215 = sadd.s32 %s213, %s214
        %s216 = smul.addr %s215, 8
        %s217 = scalar_lea.vmem %s3, %s216
      $region32: #{convnext_block_forward.5} parent=19 // pred_fallthru
        _
    $region20: #{convnext_block_forward.5} parent=5 // pred_fallthru
      _
    %p218 = scmp.le.s32.totalorder 1, %s10
    %p219 = scmp.lt.s32.totalorder %s10, 49
    %p220 = pnand %p218, %p219
    %p221 = pneg %p220
    // Predicated region
    $region33: #{convnext_block_forward.5} parent=5 // pred_check
      _
    $region34: #{convnext_block_forward.5} parent=5 // pred_check_branch
      %223 = sbr.rel (%p220) target = $region36
    $region35: #{convnext_block_forward.5} parent=5 // pred_region
      %s224 = ssub.s32 %s10, 1
      %s225 = sadd.s32 %s21, %s22
      %p226 = scmp.lt.s32.totalorder %s20, 1
      %s227 = scalar_select %p226, %s20, 1
      %p228 = scmp.lt.s32.totalorder %s225, 9
      %s229 = scalar_select %p228, %s225, 9
      %s230 = smul.addr %s229, 4
      %s231 = smul.addr %s227, 40
      %s232 = sadd.s32 %s230, %s231
      %s233 = smul.addr %s232, 8
      %s234 = scalar_lea.vmem %s0, %s233
      %p235 = pneg %p59
      %p236 = pneg %p56
      %p237 = scmp.lt.s32.totalorder %s22, 2
      %s238 = scalar_select %p237, %s22, 2
      %s239 = smul.addr %s238, 6
      %s240 = smul.addr %s239, 4
      %s241 = scalar_lea.vmem %s1, %s240
      %p242 = pneg %p85
      %p243 = pneg %p82
      %p244 = pneg %p106
      %p245 = pneg %p103
      %p246 = scmp.lt.s32.totalorder %s20, 1
      %s247 = scalar_select %p246, %s20, 1
      %p248 = scmp.lt.s32.totalorder %s21, 7
      %s249 = scalar_select %p248, %s21, 7
      %s250 = smul.addr %s249, 2
      %s251 = smul.addr %s247, 16
      %s252 = sadd.s32 %s250, %s251
      %s253 = smul.addr %s252, 8
      %s254 = scalar_lea.vmem %s3, %s253
      %p255 = pneg %p134
      %p256 = pneg %p131
      %p257 = pneg %p162
      %p258 = pneg %p159
      %p259 = scmp.lt.s32.totalorder %s20, 1
      %s260 = scalar_select %p259, %s20, 1
      %p261 = scmp.lt.s32.totalorder %s21, 7
      %s262 = scalar_select %p261, %s21, 7
      %s263 = smul.addr %s262, 2
      %s264 = smul.addr %s260, 16
      %s265 = sadd.s32 %s263, %s264
      %s266 = smul.addr %s265, 8
      %s267 = scalar_lea.vmem %s4, %s266
      %s268 = sadd.s32 %s21, %s22
      %p269 = scmp.lt.s32.totalorder %s20, 1
      %s270 = scalar_select %p269, %s20, 1
      %p271 = scmp.lt.s32.totalorder %s268, 9
      %s272 = scalar_select %p271, %s268, 9
      %s273 = smul.addr %s272, 4
      %s274 = smul.addr %s270, 40
      %s275 = sadd.s32 %s273, %s274
      %s276 = smul.addr %s275, 8
      %s277 = scalar_lea.vmem %s0, %s276
      %s278 = sadd.s32 %s21, %s22
      %p279 = scmp.lt.s32.totalorder %s22, 2
      %s280 = scalar_select %p279, %s22, 2
      %s281 = smul.addr %s280, 6
      %s282 = smul.addr %s281, 4
      %s283 = scalar_lea.vmem %s1, %s282
      %p284 = scmp.lt.s32.totalorder %s20, 1
      %s285 = scalar_select %p284, %s20, 1
      %p286 = scmp.lt.s32.totalorder %s21, 7
      %s287 = scalar_select %p286, %s21, 7
      %s288 = smul.addr %s287, 2
      %s289 = smul.addr %s285, 16
      %s290 = sadd.s32 %s288, %s289
      %s291 = smul.addr %s290, 8
      %s292 = scalar_lea.vmem %s3, %s291
      %p293 = scmp.lt.s32.totalorder %s20, 1
      %s294 = scalar_select %p293, %s20, 1
      %p295 = scmp.lt.s32.totalorder %s21, 7
      %s296 = scalar_select %p295, %s21, 7
      %s297 = smul.addr %s296, 2
      %s298 = smul.addr %s294, 16
      %s299 = sadd.s32 %s297, %s298
      %s300 = smul.addr %s299, 8
      %s301 = scalar_lea.vmem %s4, %s300
      %p303 = scmp.eq.s32.totalorder %s22, 0
      // Predicated region
      $region37: #{convnext_block_forward.5} parent=35 // pred_check
        %p304 = pneg %p303
      $region38: #{convnext_block_forward.5} parent=35 // pred_check_branch
        %306 = sbr.rel (%p304) target = $region40
      $region39: #{convnext_block_forward.5} parent=35 // pred_region
        %vm307 = vcmask 654336
        %308 = vst.msk [vmem:[#allocation2] sm:$0xff] %vm307, 0.0
        %309 = vst.msk [vmem:[#allocation2 + $0x8] sm:$0xff] %vm307, 0.0
      $region40: #{convnext_block_forward.5} parent=35 // pred_fallthru
        _
      %v310 = vld [vmem:[%s277] sm:$0xff]
      %v311 = vld [vmem:[%s277 + $0x8] sm:$0xff]
      %v312 = vld [vmem:[%s277 + $0x10] sm:$0xff]
      %v313 = vld [vmem:[%s277 + $0x18] sm:$0xff]
      %318 = vrot.lane.b32.xlu0 %v310, 127
      %v319 = vpop.permute.xlu0 %318
      %320 = vrot.lane.b32.xlu0 %v311, 127
      %v321 = vpop.permute.xlu0 %320
      %322 = vrot.lane.b32.xlu0 %v312, 127
      %v323 = vpop.permute.xlu0 %322
      %324 = vrot.lane.b32.xlu0 %v313, 127
      %v325 = vpop.permute.xlu0 %324
      %330 = vrot.lane.b32.xlu0 %v310, 126
      %v331 = vpop.permute.xlu0 %330
      %332 = vrot.lane.b32.xlu0 %v311, 126
      %v333 = vpop.permute.xlu0 %332
      %334 = vrot.lane.b32.xlu0 %v312, 126
      %v335 = vpop.permute.xlu0 %334
      %336 = vrot.lane.b32.xlu0 %v313, 126
      %v337 = vpop.permute.xlu0 %336
      %342 = vrot.lane.b32.xlu0 %v310, 118
      %v343 = vpop.permute.xlu0 %342
      %344 = vrot.lane.b32.xlu0 %v311, 118
      %v345 = vpop.permute.xlu0 %344
      %346 = vrot.lane.b32.xlu0 %v312, 118
      %v347 = vpop.permute.xlu0 %346
      %348 = vrot.lane.b32.xlu0 %v313, 118
      %v349 = vpop.permute.xlu0 %348
      %354 = vrot.lane.b32.xlu0 %v310, 117
      %v355 = vpop.permute.xlu0 %354
      %356 = vrot.lane.b32.xlu0 %v311, 117
      %v357 = vpop.permute.xlu0 %356
      %358 = vrot.lane.b32.xlu0 %v312, 117
      %v359 = vpop.permute.xlu0 %358
      %360 = vrot.lane.b32.xlu0 %v313, 117
      %v361 = vpop.permute.xlu0 %360
      %366 = vrot.lane.b32.xlu0 %v310, 116
      %v367 = vpop.permute.xlu0 %366
      %368 = vrot.lane.b32.xlu0 %v311, 116
      %v369 = vpop.permute.xlu0 %368
      %370 = vrot.lane.b32.xlu0 %v312, 116
      %v371 = vpop.permute.xlu0 %370
      %372 = vrot.lane.b32.xlu0 %v313, 116
      %v373 = vpop.permute.xlu0 %372
      %378 = vrot.lane.b32.xlu0 %v310, 108
      %v379 = vpop.permute.xlu0 %378
      %380 = vrot.lane.b32.xlu0 %v311, 108
      %v381 = vpop.permute.xlu0 %380
      %382 = vrot.lane.b32.xlu0 %v312, 108
      %v383 = vpop.permute.xlu0 %382
      %384 = vrot.lane.b32.xlu0 %v313, 108
      %v385 = vpop.permute.xlu0 %384
      %390 = vrot.lane.b32.xlu0 %v310, 107
      %v391 = vpop.permute.xlu0 %390
      %392 = vrot.lane.b32.xlu0 %v311, 107
      %v393 = vpop.permute.xlu0 %392
      %394 = vrot.lane.b32.xlu0 %v312, 107
      %v395 = vpop.permute.xlu0 %394
      %396 = vrot.lane.b32.xlu0 %v313, 107
      %v397 = vpop.permute.xlu0 %396
      %402 = vrot.lane.b32.xlu0 %v310, 106
      %v403 = vpop.permute.xlu0 %402
      %404 = vrot.lane.b32.xlu0 %v311, 106
      %v405 = vpop.permute.xlu0 %404
      %406 = vrot.lane.b32.xlu0 %v312, 106
      %v407 = vpop.permute.xlu0 %406
      %408 = vrot.lane.b32.xlu0 %v313, 106
      %v409 = vpop.permute.xlu0 %408
      %v414 = vld [vmem:[#allocation2] sm:$0xff]
      %v415 = vld [vmem:[#allocation2 + $0x8] sm:$0xff]
      %v416 = vld [vmem:[%s283] sm:$0xff]
      %v417 = vld [vmem:[%s283 + $0x8] sm:$0xf]
      %v418 = vld [vmem:[%s283 + $0xc] sm:$0xff]
      %v419 = vld [vmem:[%s283 + $0x14] sm:$0xf]
      %v420 = vpack.c.bf16 %v311, %v310
      %v421 = vpack.c.bf16 %v313, %v312
      %v422 = vpack.c.bf16 %v321, %v319
      %v423 = vpack.c.bf16 %v325, %v323
      %v424 = vpack.c.bf16 %v333, %v331
      %v425 = vpack.c.bf16 %v337, %v335
      %v426 = vpack.c.bf16 %v345, %v343
      %v427 = vpack.c.bf16 %v349, %v347
      %v428 = vpack.c.bf16 %v357, %v355
      %v429 = vpack.c.bf16 %v361, %v359
      %v430 = vpack.c.bf16 %v369, %v367
      %v431 = vpack.c.bf16 %v373, %v371
      %v432 = vpack.c.bf16 %v381, %v379
      %v433 = vpack.c.bf16 %v385, %v383
      %v434 = vpack.c.bf16 %v393, %v391
      %v435 = vpack.c.bf16 %v397, %v395
      %v436 = vpack.c.bf16 %v405, %v403
      %v437 = vpack.c.bf16 %v409, %v407
      %v442 = vunpack.c.l.b16 %v416
      %v443 = vunpack.c.h.b16 %v416
      %v444 = vunpack.c.l.b16 %v417
      %v445 = vunpack.c.l.b16 %v418
      %v446 = vunpack.c.h.b16 %v418
      %v447 = vunpack.c.l.b16 %v419
      %v448 = vpack.c.b16 %v445, %v442
      %v449 = vpack.c.b16 %v446, %v443
      %v450 = vpack.c.b16 %v447, %v444
      %vm453 = vcmask 261120
      %v455 = vsel %vm453, %v450, 0
      %457 = vmatprep.subr.bf16.mxu0 0
      %458 = vmatpush1.bf16.msra.mxu0 %v420
      %459 = vmatprep.subr.bf16.mxu0 0
      %460 = vmatpush1.bf16.msra.mxu0 %v421
      %461 = vmatprep.subr.bf16.mxu0 0
      %462 = vmatpush1.bf16.msra.mxu0 %v422
      %463 = vmatprep.subr.bf16.mxu0 0
      %464 = vmatpush1.bf16.msra.mxu0 %v423
      %465 = vmatprep.subr.bf16.mxu0 0
      %466 = vmatpush1.bf16.msra.mxu0 %v424
      %467 = vmatprep.subr.bf16.mxu0 0
      %468 = vmatpush1.bf16.msra.mxu0 %v425
      %469 = vmatprep.subr.bf16.mxu0 0
      %470 = vmatpush1.bf16.msra.mxu0 %v426
      %471 = vmatprep.subr.bf16.mxu0 0
      %472 = vmatpush1.bf16.msra.mxu0 %v427
      %473 = vmatprep.subr.bf16.mxu0 0
      %474 = vmatpush1.bf16.msra.mxu0 %v428
      %475 = vmatprep.subr.bf16.mxu0 0
      %476 = vmatpush1.bf16.msra.mxu0 %v429
      %477 = vmatprep.subr.bf16.mxu0 0
      %478 = vmatpush1.bf16.msra.mxu0 %v430
      %479 = vmatprep.subr.bf16.mxu0 0
      %480 = vmatpush1.bf16.msra.mxu0 %v431
      %481 = vmatprep.subr.bf16.mxu0 0
      %482 = vmatpush1.bf16.msra.mxu0 %v432
      %483 = vmatprep.subr.bf16.mxu0 0
      %484 = vmatpush1.bf16.msra.mxu0 %v433
      %485 = vmatprep.subr.bf16.mxu0 0
      %486 = vmatpush1.bf16.msra.mxu0 %v434
      %487 = vmatprep.subr.bf16.mxu0 0
      %488 = vmatpush1.bf16.msra.mxu0 %v435
      %489 = vmatprep.mubr.bf16.mxu0 %v449
      %490 = vmatmul.mubr.bf16.gmra.mrb[0].mxu0 %v448
      %v491 = vpop.f32.mrb[0].mxu0
      %v492 = vadd.f32 0.0, %v491
      %v493 = vpop.f32.mrb[0].mxu0
      %v494 = vpop.f32.mrb[0].mxu0
      %v495 = vadd.f32 0.0, %v494
      %v496 = vpop.f32.mrb[0].mxu0
      %497 = vdwg.mxu0
      %498 = vmatprep.subr.bf16.mxu0 0
      %499 = vmatpush1.bf16.msra.mxu0 %v436
      %500 = vmatprep.subr.bf16.mxu0 0
      %501 = vmatpush1.bf16.msra.mxu0 %v437
      %502 = vmatprep.subr.bf16.mxu0 0
      %503 = vmatpush1.bf16.msra.mxu0 0
      %504 = vmatprep.subr.bf16.mxu0 0
      %505 = vmatpush1.bf16.msra.mxu0 0
      %506 = vmatprep.subr.bf16.mxu0 0
      %507 = vmatpush1.bf16.msra.mxu0 0
      %508 = vmatprep.subr.bf16.mxu0 0
      %509 = vmatpush1.bf16.msra.mxu0 0
      %510 = vmatprep.subr.bf16.mxu0 0
      %511 = vmatpush1.bf16.msra.mxu0 0
      %512 = vmatprep.subr.bf16.mxu0 0
      %513 = vmatpush1.bf16.msra.mxu0 0
      %514 = vmatprep.subr.bf16.mxu0 0
      %515 = vmatpush1.bf16.msra.mxu0 0
      %516 = vmatprep.subr.bf16.mxu0 0
      %517 = vmatpush1.bf16.msra.mxu0 0
      %518 = vmatprep.subr.bf16.mxu0 0
      %519 = vmatpush1.bf16.msra.mxu0 0
      %520 = vmatprep.subr.bf16.mxu0 0
      %521 = vmatpush1.bf16.msra.mxu0 0
      %522 = vmatprep.subr.bf16.mxu0 0
      %523 = vmatpush1.bf16.msra.mxu0 0
      %524 = vmatprep.subr.bf16.mxu0 0
      %525 = vmatpush1.bf16.msra.mxu0 0
      %526 = vmatprep.subr.bf16.mxu0 0
      %527 = vmatpush1.bf16.msra.mxu0 0
      %528 = vmatprep.subr.bf16.mxu0 0
      %529 = vmatpush1.bf16.msra.mxu0 0
      %530 = vmatprep.mubr.bf16.mxu0 0
      %531 = vmatmul.mubr.bf16.gmra.mrb[0].mxu0 %v455
      %v532 = vpop.f32.mrb[0].mxu0
      %v533 = vadd.f32 %v492, %v532
      %v534 = vpop.f32.mrb[0].mxu0
      %v535 = vpop.f32.mrb[0].mxu0
      %v536 = vadd.f32 %v495, %v535
      %v537 = vpop.f32.mrb[0].mxu0
      %538 = vdwg.mxu0
      %v539 = vadd.f32 %v414, %v533
      %v540 = vadd.f32 %v415, %v536
      %vm541 = vcmask 654336
      %542 = vst.msk [vmem:[#allocation2] sm:$0xff] %vm541, %v539
      %543 = vst.msk [vmem:[#allocation2 + $0x8] sm:$0xff] %vm541, %v540
      %p544 = scmp.eq.s32.totalorder %s22, 2
      // Predicated region
      $region41: #{convnext_block_forward.5} parent=35 // pred_check
        %p545 = pneg %p544
      $region42: #{convnext_block_forward.5} parent=35 // pred_check_branch
        %547 = sbr.rel (%p545) target = $region44
      $region43: #{convnext_block_forward.5} parent=35 // pred_region
        %v548 = vld [vmem:[#allocation2] sm:$0xff]
        %v549 = vld [vmem:[#allocation2 + $0x8] sm:$0xff]
        %v550 = vld [vmem:[%s2] sm:$0xff]
        %v551 = vld [vmem:[%s2 + $0x8] sm:$0xff]
        %553 = vset.pattern.permute.xlu0 0
        %554 = vperm.xlu0 %553, %v550
        %v555 = vpop.permute.xlu0 %554
        %558 = vset.pattern.permute.xlu0 0
        %559 = vperm.xlu0 %558, %v551
        %v560 = vpop.permute.xlu0 %559
        %v562 = vadd.f32 %v548, %v555
        %v563 = vadd.f32 %v549, %v560
        %v564 = vld [vmem:[%s292] sm:$0xff]
        %v565 = vld [vmem:[%s292 + $0x8] sm:$0xff]
        %v566 = vadd.f32 %v562, %v564
        %v567 = vadd.f32 %v563, %v565
        %568 = vst.msk [vmem:[%s301] sm:$0xff] %vm541, %v566
        %569 = vst.msk [vmem:[%s301 + $0x8] sm:$0xff] %vm541, %v567
      $region44: #{convnext_block_forward.5} parent=35 // pred_fallthru
        _
      %p570 = scmp.lt.s32.totalorder %s20, 1
      %s571 = scalar_select %p570, %s20, 1
      %p572 = scmp.lt.s32.totalorder %s21, 7
      %s573 = scalar_select %p572, %s21, 7
      %s574 = smul.addr %s573, 2
      %s575 = smul.addr %s571, 16
      %s576 = sadd.s32 %s574, %s575
      %s577 = smul.addr %s576, 8
      %s578 = scalar_lea.vmem %s4, %s577
      // Predicated region
      $region45: #{convnext_block_forward.5} parent=35 // pred_check
        %p579 = pneg %p159
      $region46: #{convnext_block_forward.5} parent=35 // pred_check_branch
        %581 = sbr.rel (%p579) target = $region48
      $region47: #{convnext_block_forward.5} parent=35 // pred_region
        _
      $region48: #{convnext_block_forward.5} parent=35 // pred_fallthru
        _
    $region36: #{convnext_block_forward.5} parent=5 // pred_fallthru
      _
    %p582 = scmp.le.s32.totalorder 2, %s10
    // Predicated region
    $region49: #{convnext_block_forward.5} parent=5 // pred_check
      %p583 = pneg %p582
    $region50: #{convnext_block_forward.5} parent=5 // pred_check_branch
      %585 = sbr.rel (%p583) target = $region52
    $region51: #{convnext_block_forward.5} parent=5 // pred_region
      %s586 = ssub.s32 %s10, 2
      // Predicated region
      $region53: #{convnext_block_forward.5} parent=51 // pred_check
        %p587 = pneg %p165
      $region54: #{convnext_block_forward.5} parent=51 // pred_check_branch
        %589 = sbr.rel (%p587) target = $region56
      $region55: #{convnext_block_forward.5} parent=51 // pred_region
        %p590 = scmp.lt.s32.totalorder %s23, 1
        %s591 = scalar_select %p590, %s23, 1
        %p592 = scmp.lt.s32.totalorder %s24, 7
        %s593 = scalar_select %p592, %s24, 7
        %s594 = smul.addr %s593, 2
        %s595 = smul.addr %s591, 16
        %s596 = sadd.s32 %s594, %s595
        %s597 = smul.addr %s596, 8
        %s598 = scalar_lea.vmem %s4, %s597
      $region56: #{convnext_block_forward.5} parent=51 // pred_fallthru
        _
    $region52: #{convnext_block_forward.5} parent=5 // pred_fallthru
      _
  $region6: #{convnext_block_forward.5} parent=0 // loop_footer
    %s14 = sadd.s32 1, %s10
  $region7: #{convnext_block_forward.5} parent=0 // loop_footer_branch
    %9 = sbr.rel target = $region3
  $region8: #{convnext_block_forward.5} parent=0 // loop_exit
    _

</llo_original>
